<compile_context>
chip_gen: v7x
topology: tpu7x:2x2x1
jax: 0.10.0
libtpu: 0.0.40
codegen_flags: <defaults>
</compile_context>

<pallas_src>
import functools

import jax
import jax.numpy as jnp
from jax.experimental import pallas as pl
from jax.experimental.pallas import tpu as pltpu

EMB_DIM = 512
MAX_W_BLOCK_BYTES = 4 * 1024 * 1024      # ~3-4 MiB int8 weight blocks
VMEM_LIMIT_BYTES = 40 * 1024 * 1024      # fits v7x (64 MiB) with headroom

TH_DICT = {
    'fr_ir152':       (0.094632, 0.166788, 0.227922),
    'fr_irse50':      (0.14484,  0.241045, 0.312703),
    'fr_facenet':     (0.256587, 0.409131, 0.591191),
    'fr_mobile_face': (0.183635, 0.301611, 0.380878),
}

RESOLUTION_DICT = {
    'fr_ir152':       (112, 112),
    'fr_irse50':      (112, 112),
    'fr_mobile_face': (112, 112),
    'fr_facenet':     (160, 160),
}


def _pick_tk(K, tn, elem_bytes, max_block_bytes=MAX_W_BLOCK_BYTES):
    """Largest divisor of K that is a multiple of 128 and keeps the (tk, tn)
    weight block under max_block_bytes."""
    assert K % 128 == 0, K
    max_tk = max(128, (max_block_bytes // (tn * elem_bytes)) // 128 * 128)
    best = 128
    upper = min(K, max_tk)
    for cand in range(128, upper + 1, 128):
        if K % cand == 0:
            best = cand
    return best


def _fr_head_kernel(x_ref, w_ref, scale_ref, bias_ref, o_ref):
    """Streaming int8-weight matmul with folded normalization.

    x_ref     : (B, tk)   bf16 slice of the flattened resized image in [0, 1]
    w_ref     : (tk, tn)  int8 contiguous slab of the quantized folded weights
    scale_ref : (1, tn)   f32 per-column dequant scale
    bias_ref  : (1, tn)   f32 folded normalization bias
    o_ref     : (B, tn)   f32 output block; doubles as the accumulator since
                          its block index is constant across the K axis.
    """
    k = pl.program_id(1)

    @pl.when(k == 0)
    def _():
        o_ref[...] = jnp.zeros_like(o_ref)

    # int8 -> bf16 dequant on the VPU (hidden under the weight DMA).  The
    # per-column scale factors out of the K-sum and is applied in the epilogue.
    w_bf16 = w_ref[...].astype(jnp.bfloat16)
    o_ref[...] += jnp.dot(x_ref[...], w_bf16,
                          preferred_element_type=jnp.float32)

    @pl.when(k == pl.num_programs(1) - 1)
    def _():
        o_ref[...] = o_ref[...] * scale_ref[...] + bias_ref[...]


@functools.partial(jax.jit, static_argnames=("tk", "tn"))
def fr_embed(x_flat, w_tiled, scale, bias, *, tk, tn):
    """x_flat : (B, K) bf16 in [0,1]
       w_tiled: (G, K, tn) int8 pre-tiled quantized folded weights (G = E//tn)
       scale  : (1, E) f32 per-column scales;  bias: (1, E) f32 folded bias
       Returns (B, E) f32 = normalize(x*255) @ W_orig  (normalization folded)."""
    B, K = x_flat.shape
    G, Kw, tnw = w_tiled.shape
    E = G * tn
    assert K == Kw and tnw == tn and K % tk == 0, (K, Kw, tn, tnw, tk)

    cost = pl.CostEstimate(
        flops=2 * B * K * E,
        transcendentals=0,
        bytes_accessed=K * E * 1 + G * B * K * 2 + B * E * 4 + 2 * E * 4,
    )

    return pl.pallas_call(
        _fr_head_kernel,
        out_shape=jax.ShapeDtypeStruct((B, E), jnp.float32),
        grid_spec=pltpu.PrefetchScalarGridSpec(
            num_scalar_prefetch=0,
            # Parallel axis over E first (exactly 2 blocks -> even megacore
            # split of the weight stream on v7x), reduction axis K last.
            grid=(G, K // tk),
            in_specs=[
                pl.BlockSpec((B, tk), lambda n, k: (0, k)),
                # Contiguous weight slab per block (leading dim squeezed).
                pl.BlockSpec((None, tk, tn), lambda n, k: (n, k, 0)),
                pl.BlockSpec((1, tn), lambda n, k: (0, n)),
                pl.BlockSpec((1, tn), lambda n, k: (0, n)),
            ],
            out_specs=pl.BlockSpec((B, tn), lambda n, k: (0, n)),
        ),
        compiler_params=pltpu.CompilerParams(
            dimension_semantics=("parallel", "arbitrary"),
            vmem_limit_bytes=VMEM_LIMIT_BYTES,
        ),
        cost_estimate=cost,
    )(x_flat, w_tiled, scale, bias)


class EnsembleModelPallas:
    """JAX/Pallas port of EnsembleModel (synthetic FR backbones)."""

    def __init__(self, subject_arch_name, bs):
        self.bs = bs
        self.arch_name_list = []
        self.resolution_list = []

        # Build per-arch synthetic weights (deterministic), skipping the subject.
        per_arch = []   # (arch_name, resolution, W_f32)
        for i, arch_name in enumerate(TH_DICT.keys()):
            if arch_name == subject_arch_name:
                continue
            res = RESOLUTION_DICT[arch_name]
            K = 3 * res[0] * res[1]
            # TODO(synk): real pretrained FR backbones replaced by synthetic
            # linear embedding heads (no .pth checkpoints available in-script).
            wkey = jax.random.PRNGKey(1000 + i)
            w = jax.random.normal(wkey, (K, EMB_DIM), dtype=jnp.float32)
            w = w * (1.0 / jnp.sqrt(jnp.float32(K)))
            self.arch_name_list.append(arch_name)
            self.resolution_list.append(res)
            per_arch.append((arch_name, res, w))
        self.num_models = len(self.arch_name_list)

        # Group models sharing a resolution: one resize + one pallas_call per
        # group, weights concatenated along E.
        grouped, group_order = {}, []
        for name, res, w in per_arch:
            if res not in grouped:
                grouped[res] = []
                group_order.append(res)
            grouped[res].append((name, w))

        self.groups = []
        for res in group_order:
            members = grouped[res]
            K = 3 * res[0] * res[1]
            E_g = EMB_DIM * len(members)
            w_cat = jnp.concatenate([w for _, w in members], axis=1)      # (K, E_g) f32

            # Fold normalize: ((x*255 - 127.5)/128) @ W == x @ (W*255/128) + b
            w_fold = w_cat * (255.0 / 128.0)

            # Per-output-column symmetric int8 quantization of the folded weights.
            absmax = jnp.maximum(jnp.max(jnp.abs(w_fold), axis=0), 1e-12)  # (E_g,)
            scale = (absmax / 127.0).astype(jnp.float32)
            w_q = jnp.clip(jnp.round(w_fold / scale[None, :]),
                           -127, 127).astype(jnp.int8)                    # (K, E_g)
            w_deq = w_q.astype(jnp.float32) * scale[None, :]
            # b = -(127.5/128) * sum_k W = -0.5 * sum_k W_fold  (use dequantized W
            # for consistency with the quantized matmul).
            bias = (-0.5 * jnp.sum(w_deq, axis=0)).astype(jnp.float32)     # (E_g,)

            # Two E blocks per group (v7x 2-way TC split); contiguous slabs.
            tn = E_g // 2
            G = E_g // tn
            tk = _pick_tk(K, tn, elem_bytes=1)
            w_tiled = w_q.reshape(K, G, tn).transpose(1, 0, 2)             # (G, K, tn) int8

            self.groups.append(dict(
                res=res, K=K, E=E_g, tk=tk, tn=tn,
                w_q=w_tiled,
                scale=scale.reshape(1, E_g),
                bias=bias.reshape(1, E_g),
                names=[n for n, _ in members],
                slices=[(j * EMB_DIM, (j + 1) * EMB_DIM)
                        for j in range(len(members))],
            ))

        print('using ensemble models', ','.join(self.arch_name_list))

    def __call__(self, inputs):
        """inputs: (B, 3, H, W) float32 in [0, 1] (NCHW, like PyTorch).

        Kernel time is ~independent of B (weight-stream bound): batch multiple
        candidates into one call to amortize the ~156 MB int8 weight stream."""
        B = inputs.shape[0]
        per_arch_out = {}
        for g in self.groups:
            res = g["res"]
            # resize_img (bilinear, like F.interpolate) -- glue, plain JAX;
            # the *255 and normalize are folded into the kernel weights/bias.
            x_r = jax.image.resize(inputs, (B, 3, res[0], res[1]),
                                   method="bilinear")
            x_flat = x_r.reshape(B, -1).astype(jnp.bfloat16)
            emb = fr_embed(x_flat, g["w_q"], g["scale"], g["bias"],
                           tk=g["tk"], tn=g["tn"])
            for name, (lo, hi) in zip(g["names"], g["slices"]):
                per_arch_out[name] = emb[:, lo:hi]
        # torch.cat(outputs, dim=0) in the original arch order.
        return jnp.concatenate([per_arch_out[n] for n in self.arch_name_list],
                               axis=0)


if __name__ == "__main__":
    B = 2
    key = jax.random.PRNGKey(0)
    # inputs in [0, 1], NCHW
    x = jax.random.uniform(key, (B, 3, 16, 16), dtype=jnp.float32)

    model = EnsembleModelPallas(subject_arch_name='fr_ir152', bs=B)
    out = model(x)
    out = jax.block_until_ready(out)

    assert out.shape == (model.num_models * B, EMB_DIM), out.shape
    assert bool(jnp.all(jnp.isfinite(out)))

    # Pure-JAX reference with the same dequantized int8 weights / folded bias.
    ref_chunks = {}
    for g in model.groups:
        res = g["res"]
        K, E_g = g["K"], g["E"]
        x_r = jax.image.resize(x, (B, 3, res[0], res[1]), method="bilinear")
        x_flat = x_r.reshape(B, -1).astype(jnp.bfloat16).astype(jnp.float32)
        w_deq = (g["w_q"].transpose(1, 0, 2).reshape(K, E_g).astype(jnp.float32)
                 * g["scale"])
        emb = jnp.dot(x_flat, w_deq,
                      precision=jax.lax.Precision.HIGHEST) + g["bias"]
        for name, (lo, hi) in zip(g["names"], g["slices"]):
            ref_chunks[name] = emb[:, lo:hi]
    ref = jnp.concatenate([ref_chunks[n] for n in model.arch_name_list], axis=0)
    max_err = float(jnp.max(jnp.abs(out - ref)))
    assert jnp.allclose(out, ref, atol=5e-2, rtol=5e-2), max_err

    print("KERNEL_OK")
</pallas_src>

<mosaic_0001>
module attributes {stable_mosaic.version = 11 : i64} {
  func.func @_fr_head_kernel(%arg0: i32, %arg1: i32, %arg2: memref<2x6272xbf16, #tpu.memory_space<vmem>>, %arg3: memref<1x6272x512xi8, #tpu.memory_space<vmem>>, %arg4: memref<1x512xf32, #tpu.memory_space<vmem>>, %arg5: memref<1x512xf32, #tpu.memory_space<vmem>>, %arg6: memref<2x512xf32, #tpu.memory_space<vmem>>) attributes {dimension_semantics = [#tpu.dimension_semantics<parallel>, #tpu.dimension_semantics<arbitrary>], iteration_bounds = array<i64: 2, 6>, scalar_prefetch = 0 : i64, scratch_operands = 0 : i64, tpu.core_type = #tpu.core_type<tc>, window_params = [{transform_indices = @transform_0, window_bounds = array<i64: 2, 6272>}, {transform_indices = @transform_1, window_bounds = array<i64: 1, 6272, 512>}, {transform_indices = @transform_2, window_bounds = array<i64: 1, 512>}, {transform_indices = @transform_3, window_bounds = array<i64: 1, 512>}, {transform_indices = @transform_4, window_bounds = array<i64: 2, 512>}]} {
    %c0_i32 = arith.constant 0 : i32
    %0 = arith.cmpi eq, %arg1, %c0_i32 : i32
    %1 = arith.extui %0 : i1 to i32
    %c0_i32_0 = arith.constant 0 : i32
    %2 = arith.cmpi ne, %1, %c0_i32_0 : i32
    scf.if %2 {
      %cst_10 = arith.constant 0.000000e+00 : f32
      %14 = vector.broadcast %cst_10 : f32 to vector<2x512xf32>
      %c0_11 = arith.constant 0 : index
      %c0_12 = arith.constant 0 : index
      %15 = vector.load %arg6[%c0_11, %c0_12] : memref<2x512xf32, #tpu.memory_space<vmem>>, vector<2x512xf32>
      tpu.vector_store %arg6[%c0_11, %c0_12], %14 {strides = array<i32>} : memref<2x512xf32, #tpu.memory_space<vmem>>, vector<2x512xf32>,
    } else {
    }
    %c0 = arith.constant 0 : index
    %c0_1 = arith.constant 0 : index
    %c0_2 = arith.constant 0 : index
    %3 = vector.load %arg3[%c0, %c0_1, %c0_2] : memref<1x6272x512xi8, #tpu.memory_space<vmem>>, vector<1x6272x512xi8>
    %4 = vector.shape_cast %3 : vector<1x6272x512xi8> to vector<6272x512xi8>
    %5 = arith.sitofp %4 : vector<6272x512xi8> to vector<6272x512xbf16>
    %c0_3 = arith.constant 0 : index
    %c0_4 = arith.constant 0 : index
    %6 = vector.load %arg6[%c0_3, %c0_4] : memref<2x512xf32, #tpu.memory_space<vmem>>, vector<2x512xf32>
    %c0_5 = arith.constant 0 : index
    %c0_6 = arith.constant 0 : index
    %7 = vector.load %arg2[%c0_5, %c0_6] : memref<2x6272xbf16, #tpu.memory_space<vmem>>, vector<2x6272xbf16>
    %cst = arith.constant dense<0.000000e+00> : vector<2x512xf32>
    %8 = tpu.matmul %7, %5, %cst {dimension_numbers = #tpu.dot_dimension_numbers<[1], [0], [0], [1], [0, 0, 1, 1], [], []>} : vector<2x6272xbf16>, vector<6272x512xbf16>, vector<2x512xf32> -> vector<2x512xf32>
    %9 = arith.addf %6, %8 : vector<2x512xf32>
    %c0_7 = arith.constant 0 : index
    %c0_8 = arith.constant 0 : index
    %10 = vector.load %arg6[%c0_7, %c0_8] : memref<2x512xf32, #tpu.memory_space<vmem>>, vector<2x512xf32>
    tpu.vector_store %arg6[%c0_7, %c0_8], %9 {strides = array<i32>} : memref<2x512xf32, #tpu.memory_space<vmem>>, vector<2x512xf32>,
    %c5_i32 = arith.constant 5 : i32
    %11 = arith.cmpi eq, %arg1, %c5_i32 : i32
    %12 = arith.extui %11 : i1 to i32
    %c0_i32_9 = arith.constant 0 : i32
    %13 = arith.cmpi ne, %12, %c0_i32_9 : i32
    scf.if %13 {
      %c0_10 = arith.constant 0 : index
      %c0_11 = arith.constant 0 : index
      %14 = vector.load %arg6[%c0_10, %c0_11] : memref<2x512xf32, #tpu.memory_space<vmem>>, vector<2x512xf32>
      %c0_12 = arith.constant 0 : index
      %c0_13 = arith.constant 0 : index
      %15 = vector.load %arg4[%c0_12, %c0_13] : memref<1x512xf32, #tpu.memory_space<vmem>>, vector<1x512xf32>
      %16 = vector.broadcast %15 : vector<1x512xf32> to vector<2x512xf32>
      %17 = arith.mulf %14, %16 : vector<2x512xf32>
      %c0_14 = arith.constant 0 : index
      %c0_15 = arith.constant 0 : index
      %18 = vector.load %arg5[%c0_14, %c0_15] : memref<1x512xf32, #tpu.memory_space<vmem>>, vector<1x512xf32>
      %19 = vector.broadcast %18 : vector<1x512xf32> to vector<2x512xf32>
      %20 = arith.addf %17, %19 : vector<2x512xf32>
      %c0_16 = arith.constant 0 : index
      %c0_17 = arith.constant 0 : index
      %21 = vector.load %arg6[%c0_16, %c0_17] : memref<2x512xf32, #tpu.memory_space<vmem>>, vector<2x512xf32>
      tpu.vector_store %arg6[%c0_16, %c0_17], %20 {strides = array<i32>} : memref<2x512xf32, #tpu.memory_space<vmem>>, vector<2x512xf32>,
    } else {
    }
    return
  }
  func.func @transform_0(%arg0: i32, %arg1: i32) -> (i32, i32) {
    %c0_i32 = arith.constant 0 : i32
    %c0_i32_0 = arith.constant 0 : i32
    return %c0_i32, %arg1 : i32, i32
  }
  func.func @transform_1(%arg0: i32, %arg1: i32) -> (i32, i32, i32) {
    %c0_i32 = arith.constant 0 : i32
    %c0_i32_0 = arith.constant 0 : i32
    return %arg0, %arg1, %c0_i32 : i32, i32, i32
  }
  func.func @transform_2(%arg0: i32, %arg1: i32) -> (i32, i32) {
    %c0_i32 = arith.constant 0 : i32
    %c0_i32_0 = arith.constant 0 : i32
    return %c0_i32, %arg0 : i32, i32
  }
  func.func @transform_3(%arg0: i32, %arg1: i32) -> (i32, i32) {
    %c0_i32 = arith.constant 0 : i32
    %c0_i32_0 = arith.constant 0 : i32
    return %c0_i32, %arg0 : i32, i32
  }
  func.func @transform_4(%arg0: i32, %arg1: i32) -> (i32, i32) {
    %c0_i32 = arith.constant 0 : i32
    %c0_i32_0 = arith.constant 0 : i32
    return %c0_i32, %arg0 : i32, i32
  }
}

</mosaic_0001>

<llo_original>
// kernel: fr_embed.1
$region0: #{fr_embed.1}
  #allocation0 [shape = 'u32[]', space=smem, size = 0x4, offset = 0x4, fixed_abs, tag = 'smem constant byte address 0x4 - core index']
  #allocation1 [shape = 'u32[144,128]{1,0:T(1,128)}', space=vmem, size = 0x12000, scoped, tag = 'internal scratch']
  %s0 = inlined_call_operand.hbm [shape: bf16[2,37632], index: 0, kind: input, shape index: {}]
  %s1 = inlined_call_operand.hbm [shape: s8[2,37632,512], index: 1, kind: input, shape index: {}]
  %s2 = inlined_call_operand.hbm [shape: f32[1,1024], index: 2, kind: input, shape index: {}]
  %s3 = inlined_call_operand.hbm [shape: f32[1,1024], index: 3, kind: input, shape index: {}]
  %s4 = inlined_call_operand.hbm [shape: f32[2,1024], index: 4, kind: output, shape index: {}]
  %s5 = sld [smem:[#allocation0]]
  $region73: #{fr_embed.1} parent=0
    _
  %s7 = ssub.s32 1, %s5
  %s8 = scalar_select 0, %s7, %s5
  $region1: #{fr_embed.1} parent=0
    #allocation2 [shape = 'u8[50176]{0}', space=vmem, size = 0xc400, scoped, tag = 'input window, operand 0']
    #allocation3 [shape = 's32[2]{0}', space=sflag, size = 0x8, scoped, tag = 'scoped memory for fr_embed.1']
    #allocation4 [shape = 's32[2]{0}', space=sflag, size = 0x8, scoped, tag = 'scoped memory for fr_embed.1']
    #allocation5 [shape = 'u8[6422528]{0}', space=vmem, size = 0x620000, scoped, tag = 'input window, operand 1']
    #allocation6 [shape = 's32[2]{0}', space=sflag, size = 0x8, scoped, tag = 'scoped memory for fr_embed.1']
    #allocation7 [shape = 'u8[4096]{0}', space=vmem, size = 0x1000, scoped, tag = 'input window, operand 2']
    #allocation8 [shape = 'u8[4096]{0}', space=vmem, size = 0x1000, scoped, tag = 'input window, operand 3']
    #allocation9 [shape = 's32[2]{0}', space=sflag, size = 0x8, scoped, tag = 'scoped memory for fr_embed.1']
    #allocation10 [shape = 'u8[8192]{0}', space=vmem, size = 0x2000, scoped, tag = 'output window, operand 0']
    %9 = vsyncpa [#allocation3], 0
    %s10 = scalar_lea.sflag [#allocation3], 1
    %11 = vsyncpa %s10, 0
    %12 = vsyncpa [#allocation6], 0
    %s13 = scalar_lea.sflag [#allocation6], 1
    %14 = vsyncpa %s13, 0
    %15 = vsyncpa [#allocation9], 0
    %s16 = scalar_lea.sflag [#allocation9], 1
    %17 = vsyncpa %s16, 0
    %18 = vsyncpa [#allocation4], 0
    %s19 = scalar_lea.sflag [#allocation4], 1
    %20 = vsyncpa %s19, 0
    loop: start=0, step=1, limit=14
    $region2: #{fr_embed.1} parent=1 // loop_pre_header
      _
    $region3: #{fr_embed.1} parent=1 // loop_header
      %s22 = sphi 0, %s26
      %p23 = scmp.ge.s32.totalorder %s22, 14
      %s29 = sphi 0, %s41
      %s30 = sphi 0, %s37
      %s31 = sphi 0, %s29
      %s32 = sphi 0, %s30
      %s33 = sphi 0, %s31
      %s34 = sphi 0, %s32
      %s44 = sphi 0, %s46
      %s47 = sphi 0, %s44
      %s48 = sphi 0, %s47
      %s64 = sphi 0, %s48
      %s72 = sphi 0, %s74
      %s75 = sphi 0, %s72
      %s76 = sphi 0, %s75
      %s92 = sphi 0, %s76
      %s98 = sphi 0, %s100
      %s101 = sphi 0, %s98
      %s102 = sphi 0, %s101
      %s118 = sphi 0, %s102
      %s124 = sphi 0, %s126
      %s127 = sphi 0, %s124
      %s128 = sphi 0, %s127
      %s144 = sphi 0, %s128
      %s150 = sphi 0, %s152
      %s153 = sphi 0, %s150
      %s154 = sphi 0, %s153
      %s170 = sphi 0, %s154
    $region4: #{fr_embed.1} parent=1 // loop_header_branch
      %25 = sbr.rel (%p23) target = $region8
    $region5: #{fr_embed.1} parent=1 // loop_body
      %s27 = ssub.s32 %s22, 1
      %s28 = ssub.s32 %s22, 2
      %s35 = sadd.s32 1, %s30
      %p36 = scmp.ge.s32.totalorder %s35, 6
      %s37 = scalar_select %p36, 0, %s35
      %s38 = sadd.s32 1, %s29
      %s39 = scalar_select %p36, %s38, %s29
      %p40 = scmp.ge.s32.totalorder %s39, 2
      %s41 = scalar_select %p40, 0, %s39
      %s42 = ssub.s32 %s30, %s37
      %p43 = scmp.eq.s32.totalorder %s42, 0
      %s45 = sadd.s32 %s44, 1
      %s46 = scalar_select %p43, %s44, %s45
      %p49 = pneg %p43
      %p50 = scmp.eq.s32.totalorder %s22, 11
      %p51 = por %p49, %p50
      %p52 = scmp.ne.s32.totalorder %s44, %s47
      %p53 = scmp.eq.s32.totalorder %s22, 0
      %p54 = por %p52, %p53
      %p55 = scmp.ne.s32.totalorder %s44, %s47
      %p56 = scmp.eq.s32.totalorder %s27, 11
      %p57 = por %p55, %p56
      %p58 = scmp.ne.s32.totalorder %s47, %s48
      %p59 = scmp.eq.s32.totalorder %s27, 0
      %p60 = por %p58, %p59
      %p61 = scmp.ne.s32.totalorder %s47, %s48
      %p62 = scmp.eq.s32.totalorder %s28, 11
      %p63 = por %p61, %p62
      %p65 = scmp.ne.s32.totalorder %s48, %s64
      %p66 = scmp.eq.s32.totalorder %s28, 0
      %p67 = por %p65, %p66
      %s68 = ssub.s32 %s29, %s41
      %s69 = ssub.s32 %s30, %s37
      %s70 = sor.u32 %s68, %s69
      %p71 = scmp.eq.s32.totalorder %s70, 0
      %s73 = sadd.s32 %s72, 1
      %s74 = scalar_select %p71, %s72, %s73
      %p77 = pneg %p71
      %p78 = scmp.eq.s32.totalorder %s22, 11
      %p79 = por %p77, %p78
      %p80 = scmp.ne.s32.totalorder %s72, %s75
      %p81 = scmp.eq.s32.totalorder %s22, 0
      %p82 = por %p80, %p81
      %p83 = scmp.ne.s32.totalorder %s72, %s75
      %p84 = scmp.eq.s32.totalorder %s27, 11
      %p85 = por %p83, %p84
      %p86 = scmp.ne.s32.totalorder %s75, %s76
      %p87 = scmp.eq.s32.totalorder %s27, 0
      %p88 = por %p86, %p87
      %p89 = scmp.ne.s32.totalorder %s75, %s76
      %p90 = scmp.eq.s32.totalorder %s28, 11
      %p91 = por %p89, %p90
      %p93 = scmp.ne.s32.totalorder %s76, %s92
      %p94 = scmp.eq.s32.totalorder %s28, 0
      %p95 = por %p93, %p94
      %s96 = ssub.s32 %s29, %s41
      %p97 = scmp.eq.s32.totalorder %s96, 0
      %s99 = sadd.s32 %s98, 1
      %s100 = scalar_select %p97, %s98, %s99
      %p103 = pneg %p97
      %p104 = scmp.eq.s32.totalorder %s22, 11
      %p105 = por %p103, %p104
      %p106 = scmp.ne.s32.totalorder %s98, %s101
      %p107 = scmp.eq.s32.totalorder %s22, 0
      %p108 = por %p106, %p107
      %p109 = scmp.ne.s32.totalorder %s98, %s101
      %p110 = scmp.eq.s32.totalorder %s27, 11
      %p111 = por %p109, %p110
      %p112 = scmp.ne.s32.totalorder %s101, %s102
      %p113 = scmp.eq.s32.totalorder %s27, 0
      %p114 = por %p112, %p113
      %p115 = scmp.ne.s32.totalorder %s101, %s102
      %p116 = scmp.eq.s32.totalorder %s28, 11
      %p117 = por %p115, %p116
      %p119 = scmp.ne.s32.totalorder %s102, %s118
      %p120 = scmp.eq.s32.totalorder %s28, 0
      %p121 = por %p119, %p120
      %s122 = ssub.s32 %s29, %s41
      %p123 = scmp.eq.s32.totalorder %s122, 0
      %s125 = sadd.s32 %s124, 1
      %s126 = scalar_select %p123, %s124, %s125
      %p129 = pneg %p123
      %p130 = scmp.eq.s32.totalorder %s22, 11
      %p131 = por %p129, %p130
      %p132 = scmp.ne.s32.totalorder %s124, %s127
      %p133 = scmp.eq.s32.totalorder %s22, 0
      %p134 = por %p132, %p133
      %p135 = scmp.ne.s32.totalorder %s124, %s127
      %p136 = scmp.eq.s32.totalorder %s27, 11
      %p137 = por %p135, %p136
      %p138 = scmp.ne.s32.totalorder %s127, %s128
      %p139 = scmp.eq.s32.totalorder %s27, 0
      %p140 = por %p138, %p139
      %p141 = scmp.ne.s32.totalorder %s127, %s128
      %p142 = scmp.eq.s32.totalorder %s28, 11
      %p143 = por %p141, %p142
      %p145 = scmp.ne.s32.totalorder %s128, %s144
      %p146 = scmp.eq.s32.totalorder %s28, 0
      %p147 = por %p145, %p146
      %s148 = ssub.s32 %s29, %s41
      %p149 = scmp.eq.s32.totalorder %s148, 0
      %s151 = sadd.s32 %s150, 1
      %s152 = scalar_select %p149, %s150, %s151
      %p155 = pneg %p149
      %p156 = scmp.eq.s32.totalorder %s22, 11
      %p157 = por %p155, %p156
      %p158 = scmp.ne.s32.totalorder %s150, %s153
      %p159 = scmp.eq.s32.totalorder %s22, 0
      %p160 = por %p158, %p159
      %p161 = scmp.ne.s32.totalorder %s150, %s153
      %p162 = scmp.eq.s32.totalorder %s27, 11
      %p163 = por %p161, %p162
      %p164 = scmp.ne.s32.totalorder %s153, %s154
      %p165 = scmp.eq.s32.totalorder %s27, 0
      %p166 = por %p164, %p165
      %p167 = scmp.ne.s32.totalorder %s153, %s154
      %p168 = scmp.eq.s32.totalorder %s28, 11
      %p169 = por %p167, %p168
      %p171 = scmp.ne.s32.totalorder %s154, %s170
      %p172 = scmp.eq.s32.totalorder %s28, 0
      %p173 = por %p171, %p172
      %p174 = scmp.le.s32.totalorder 1, %s22
      %p175 = scmp.lt.s32.totalorder %s22, 13
      %p176 = pnand %p174, %p175
      %p177 = pneg %p176
      // Predicated region
      $region9: #{fr_embed.1} parent=5 // pred_check
        _
      $region10: #{fr_embed.1} parent=5 // pred_check_branch
        %179 = sbr.rel (%p176) target = $region12
      $region11: #{fr_embed.1} parent=5 // pred_region
        %s180 = ssub.s32 %s22, 1
      $region12: #{fr_embed.1} parent=5 // pred_fallthru
        _
      %p181 = scmp.lt.s32.totalorder %s22, 12
      // Predicated region
      $region13: #{fr_embed.1} parent=5 // pred_check
        %p182 = pneg %p181
      $region14: #{fr_embed.1} parent=5 // pred_check_branch
        %184 = sbr.rel (%p182) target = $region16
      $region15: #{fr_embed.1} parent=5 // pred_region
        // Predicated region
        $region17: #{fr_embed.1} parent=15 // pred_check
          %p185 = pneg %p54
        $region18: #{fr_embed.1} parent=15 // pred_check_branch
          %187 = sbr.rel (%p185) target = $region20
        $region19: #{fr_embed.1} parent=15 // pred_region
          %s188 = sand.u32 %s44, 1
          %s189 = scalar_lea.sflag [#allocation3], %s188
          %s190 = sand.u32 %s44, 1
          %s191 = smul.addr %s190, 49
          %s192 = scalar_lea.vmem [#allocation2], %s191
          %s193 = smul.u32 49, %s30
          %s195 = ssub.s32 784, 784
          %196 = vsyncadd %s189, %s195
          %s197 = smul.addr %s193, 16
          %s198 = scalar_lea.hbm %s0, %s197
          %s200 = sshll.u32 %s192, 4
          %s201 = int_to_ptr.vmem [resolvable:$true] %s200
          %203 = dma.hbm_to_vmem [thread:$0]  %s198, 784, %s201, %s189
        $region20: #{fr_embed.1} parent=15 // pred_fallthru
          _
        // Predicated region
        $region21: #{fr_embed.1} parent=15 // pred_check
          %p204 = pneg %p82
        $region22: #{fr_embed.1} parent=15 // pred_check_branch
          %206 = sbr.rel (%p204) target = $region24
        $region23: #{fr_embed.1} parent=15 // pred_region
          %s207 = sand.u32 %s22, 1
          %s208 = scalar_lea.sflag [#allocation6], %s207
          %s209 = sand.u32 %s72, 1
          %s210 = smul.addr %s209, 6272
          %s211 = scalar_lea.vmem [#allocation5], %s210
          %s212 = smul.u32 196, %s30
          %s214 = ssub.s32 100352, 100352
          %215 = vsyncadd %s208, %s214
          %s216 = smul.addr %s212, 4
          %s217 = smul.addr %s29, 4704
          %s218 = sadd.s32 %s216, %s217
          %s219 = smul.addr %s218, 128
          %s220 = scalar_lea.hbm %s1, %s219
          %s221 = sshll.u32 %s211, 4
          %s222 = int_to_ptr.vmem [resolvable:$true] %s221
          %227 = dma.hbm_to_vmem [thread:$0]  %s220, 100352, %s222, %s208, 512, 512, 32
        $region24: #{fr_embed.1} parent=15 // pred_fallthru
          _
        // Predicated region
        $region25: #{fr_embed.1} parent=15 // pred_check
          %p228 = pneg %p108
        $region26: #{fr_embed.1} parent=15 // pred_check_branch
          %230 = sbr.rel (%p228) target = $region28
        $region27: #{fr_embed.1} parent=15 // pred_region
          %s231 = sand.u32 %s22, 1
          %s232 = scalar_lea.sflag [#allocation6], %s231
          %s233 = sand.u32 %s98, 1
          %s234 = smul.addr %s233, 4
          %s235 = scalar_lea.vmem [#allocation7], %s234
          %s236 = smul.u32 4, %s29
          %s238 = ssub.s32 64, 64
          %239 = vsyncadd %s232, %s238
          %s240 = smul.addr %s236, 16
          %s241 = scalar_lea.hbm %s2, %s240
          %s243 = sshll.u32 %s235, 4
          %s244 = int_to_ptr.vmem [resolvable:$true] %s243
          %246 = dma.hbm_to_vmem [thread:$0]  %s241, 64, %s244, %s232
        $region28: #{fr_embed.1} parent=15 // pred_fallthru
          _
        // Predicated region
        $region29: #{fr_embed.1} parent=15 // pred_check
          %p247 = pneg %p134
        $region30: #{fr_embed.1} parent=15 // pred_check_branch
          %249 = sbr.rel (%p247) target = $region32
        $region31: #{fr_embed.1} parent=15 // pred_region
          %s250 = sand.u32 %s124, 1
          %s251 = scalar_lea.sflag [#allocation9], %s250
          %s252 = sand.u32 %s124, 1
          %s253 = smul.addr %s252, 4
          %s254 = scalar_lea.vmem [#allocation8], %s253
          %s255 = smul.u32 4, %s29
          %s257 = ssub.s32 64, 64
          %258 = vsyncadd %s251, %s257
          %s259 = smul.addr %s255, 16
          %s260 = scalar_lea.hbm %s3, %s259
          %s262 = sshll.u32 %s254, 4
          %s263 = int_to_ptr.vmem [resolvable:$true] %s262
          %265 = dma.hbm_to_vmem [thread:$0]  %s260, 64, %s263, %s251
        $region32: #{fr_embed.1} parent=15 // pred_fallthru
          _
      $region16: #{fr_embed.1} parent=5 // pred_fallthru
        _
      %p266 = scmp.le.s32.totalorder 1, %s22
      %p267 = scmp.lt.s32.totalorder %s22, 13
      %p268 = pnand %p266, %p267
      %p269 = pneg %p268
      // Predicated region
      $region33: #{fr_embed.1} parent=5 // pred_check
        _
      $region34: #{fr_embed.1} parent=5 // pred_check_branch
        %271 = sbr.rel (%p268) target = $region36
      $region35: #{fr_embed.1} parent=5 // pred_region
        %s272 = ssub.s32 %s22, 1
        %s273 = sand.u32 %s47, 1
        %s274 = scalar_lea.sflag [#allocation3], %s273
        %s275 = sand.u32 %s47, 1
        %s276 = smul.addr %s275, 49
        %s277 = scalar_lea.vmem [#allocation2], %s276
        // Predicated region
        $region37: #{fr_embed.1} parent=35 // pred_check
          %p278 = pneg %p60
        $region38: #{fr_embed.1} parent=35 // pred_check_branch
          %280 = sbr.rel (%p278) target = $region40
        $region39: #{fr_embed.1} parent=35 // pred_region
          %281 = dma.done %s274, 784
        $region40: #{fr_embed.1} parent=35 // pred_fallthru
          _
        %s282 = sand.u32 %s27, 1
        %s283 = scalar_lea.sflag [#allocation6], %s282
        %s284 = sand.u32 %s75, 1
        %s285 = smul.addr %s284, 6272
        %s286 = scalar_lea.vmem [#allocation5], %s285
        // Predicated region
        $region41: #{fr_embed.1} parent=35 // pred_check
          %p287 = pneg %p88
        $region42: #{fr_embed.1} parent=35 // pred_check_branch
          %289 = sbr.rel (%p287) target = $region44
        $region43: #{fr_embed.1} parent=35 // pred_region
          %290 = dma.done %s283, 100352
        $region44: #{fr_embed.1} parent=35 // pred_fallthru
          _
        %s291 = sand.u32 %s27, 1
        %s292 = scalar_lea.sflag [#allocation6], %s291
        %s293 = sand.u32 %s101, 1
        %s294 = smul.addr %s293, 4
        %s295 = scalar_lea.vmem [#allocation7], %s294
        // Predicated region
        $region45: #{fr_embed.1} parent=35 // pred_check
          %p296 = pneg %p114
        $region46: #{fr_embed.1} parent=35 // pred_check_branch
          %298 = sbr.rel (%p296) target = $region48
        $region47: #{fr_embed.1} parent=35 // pred_region
          %299 = dma.done %s292, 64
        $region48: #{fr_embed.1} parent=35 // pred_fallthru
          _
        %s300 = sand.u32 %s127, 1
        %s301 = scalar_lea.sflag [#allocation9], %s300
        %s302 = sand.u32 %s127, 1
        %s303 = smul.addr %s302, 4
        %s304 = scalar_lea.vmem [#allocation8], %s303
        // Predicated region
        $region49: #{fr_embed.1} parent=35 // pred_check
          %p305 = pneg %p140
        $region50: #{fr_embed.1} parent=35 // pred_check_branch
          %307 = sbr.rel (%p305) target = $region52
        $region51: #{fr_embed.1} parent=35 // pred_region
          %308 = dma.done %s301, 64
        $region52: #{fr_embed.1} parent=35 // pred_fallthru
          _
        %s309 = sand.u32 %s47, 1
        %s310 = scalar_lea.sflag [#allocation3], %s309
        %s311 = sand.u32 %s47, 1
        %s312 = smul.addr %s311, 49
        %s313 = scalar_lea.vmem [#allocation2], %s312
        %p314 = pneg %p60
        %p315 = pneg %p57
        %s316 = sand.u32 %s27, 1
        %s317 = scalar_lea.sflag [#allocation6], %s316
        %s318 = sand.u32 %s75, 1
        %s319 = smul.addr %s318, 6272
        %s320 = scalar_lea.vmem [#allocation5], %s319
        %p321 = pneg %p88
        %p322 = pneg %p85
        %s323 = sand.u32 %s27, 1
        %s324 = scalar_lea.sflag [#allocation6], %s323
        %s325 = sand.u32 %s101, 1
        %s326 = smul.addr %s325, 4
        %s327 = scalar_lea.vmem [#allocation7], %s326
        %p328 = pneg %p114
        %p329 = pneg %p111
        %s330 = sand.u32 %s127, 1
        %s331 = scalar_lea.sflag [#allocation9], %s330
        %s332 = sand.u32 %s127, 1
        %s333 = smul.addr %s332, 4
        %s334 = scalar_lea.vmem [#allocation8], %s333
        %p335 = pneg %p140
        %p336 = pneg %p137
        %p337 = pneg %p166
        %p338 = pneg %p163
        %s339 = sand.u32 %s153, 1
        %s340 = scalar_lea.sflag [#allocation4], %s339
        %s341 = sand.u32 %s153, 1
        %s342 = smul.addr %s341, 8
        %s343 = scalar_lea.vmem [#allocation10], %s342
        %s344 = smul.u32 49, %s32
        %s345 = smul.u32 196, %s32
        %s346 = smul.u32 4, %s31
        %s347 = smul.u32 4, %s31
        %s348 = smul.u32 4, %s31
        %p350 = scmp.eq.s32.totalorder %s32, 0
        // Predicated region
        $region53: #{fr_embed.1} parent=35 // pred_check
          %p351 = pneg %p350
        $region54: #{fr_embed.1} parent=35 // pred_check_branch
          %353 = sbr.rel (%p351) target = $region56
        $region55: #{fr_embed.1} parent=35 // pred_region
          %354 = vst [vmem:[%s343] sm:$0xff] 0.0
        $region56: #{fr_embed.1} parent=35 // pred_fallthru
          _
        %v355 = vld [vmem:[%s286] sm:$0xff]
        %v356 = vld [vmem:[%s286 + $0x8] sm:$0xff]
        %v357 = vld [vmem:[%s286 + $0x10] sm:$0xff]
        %v358 = vld [vmem:[%s286 + $0x18] sm:$0xff]
        %v359 = vld [vmem:[%s286 + $0x20] sm:$0xff]
        %v360 = vld [vmem:[%s286 + $0x28] sm:$0xff]
        %v361 = vld [vmem:[%s286 + $0x30] sm:$0xff]
        %v362 = vld [vmem:[%s286 + $0x38] sm:$0xff]
        %v363 = vld [vmem:[%s286 + $0x40] sm:$0xff]
        %v364 = vld [vmem:[%s286 + $0x48] sm:$0xff]
        %v365 = vld [vmem:[%s286 + $0x50] sm:$0xff]
        %v366 = vld [vmem:[%s286 + $0x58] sm:$0xff]
        %v367 = vld [vmem:[%s286 + $0x60] sm:$0xff]
        %v368 = vld [vmem:[%s286 + $0x68] sm:$0xff]
        %v369 = vld [vmem:[%s286 + $0x70] sm:$0xff]
        %v370 = vld [vmem:[%s286 + $0x78] sm:$0xff]
        %v371 = vld [vmem:[%s286 + $0x80] sm:$0xff]
        %v372 = vld [vmem:[%s286 + $0x88] sm:$0xff]
        %v373 = vld [vmem:[%s286 + $0x90] sm:$0xff]
        %v374 = vld [vmem:[%s286 + $0x98] sm:$0xff]
        %v375 = vld [vmem:[%s286 + $0xa0] sm:$0xff]
        %v376 = vld [vmem:[%s286 + $0xa8] sm:$0xff]
        %v377 = vld [vmem:[%s286 + $0xb0] sm:$0xff]
        %v378 = vld [vmem:[%s286 + $0xb8] sm:$0xff]
        %v379 = vld [vmem:[%s286 + $0xc0] sm:$0xff]
        %v380 = vld [vmem:[%s286 + $0xc8] sm:$0xff]
        %v381 = vld [vmem:[%s286 + $0xd0] sm:$0xff]
        %v382 = vld [vmem:[%s286 + $0xd8] sm:$0xff]
        %v383 = vld [vmem:[%s286 + $0xe0] sm:$0xff]
        %v384 = vld [vmem:[%s286 + $0xe8] sm:$0xff]
        %v385 = vld [vmem:[%s286 + $0xf0] sm:$0xff]
        %v386 = vld [vmem:[%s286 + $0xf8] sm:$0xff]
        %v387 = vld [vmem:[%s286 + $0x100] sm:$0xff]
        %v388 = vld [vmem:[%s286 + $0x108] sm:$0xff]
        %v389 = vld [vmem:[%s286 + $0x110] sm:$0xff]
        %v390 = vld [vmem:[%s286 + $0x118] sm:$0xff]
        %v391 = vld [vmem:[%s286 + $0x120] sm:$0xff]
        %v392 = vld [vmem:[%s286 + $0x128] sm:$0xff]
        %v393 = vld [vmem:[%s286 + $0x130] sm:$0xff]
        %v394 = vld [vmem:[%s286 + $0x138] sm:$0xff]
        %v395 = vld [vmem:[%s286 + $0x140] sm:$0xff]
        %v396 = vld [vmem:[%s286 + $0x148] sm:$0xff]
        %v397 = vld [vmem:[%s286 + $0x150] sm:$0xff]
        %v398 = vld [vmem:[%s286 + $0x158] sm:$0xff]
        %v399 = vld [vmem:[%s286 + $0x160] sm:$0xff]
        %v400 = vld [vmem:[%s286 + $0x168] sm:$0xff]
        %v401 = vld [vmem:[%s286 + $0x170] sm:$0xff]
        %v402 = vld [vmem:[%s286 + $0x178] sm:$0xff]
        %v403 = vld [vmem:[%s286 + $0x180] sm:$0xff]
        %v404 = vld [vmem:[%s286 + $0x188] sm:$0xff]
        %v405 = vld [vmem:[%s286 + $0x190] sm:$0xff]
        %v406 = vld [vmem:[%s286 + $0x198] sm:$0xff]
        %v407 = vld [vmem:[%s286 + $0x1a0] sm:$0xff]
        %v408 = vld [vmem:[%s286 + $0x1a8] sm:$0xff]
        %v409 = vld [vmem:[%s286 + $0x1b0] sm:$0xff]
        %v410 = vld [vmem:[%s286 + $0x1b8] sm:$0xff]
        %v411 = vld [vmem:[%s286 + $0x1c0] sm:$0xff]
        %v412 = vld [vmem:[%s286 + $0x1c8] sm:$0xff]
        %v413 = vld [vmem:[%s286 + $0x1d0] sm:$0xff]
        %v414 = vld [vmem:[%s286 + $0x1d8] sm:$0xff]
        %v415 = vld [vmem:[%s286 + $0x1e0] sm:$0xff]
        %v416 = vld [vmem:[%s286 + $0x1e8] sm:$0xff]
        %v417 = vld [vmem:[%s286 + $0x1f0] sm:$0xff]
        %v418 = vld [vmem:[%s286 + $0x1f8] sm:$0xff]
        %v419 = vld [vmem:[%s286 + $0x200] sm:$0xff]
        %v420 = vld [vmem:[%s286 + $0x208] sm:$0xff]
        %v421 = vld [vmem:[%s286 + $0x210] sm:$0xff]
        %v422 = vld [vmem:[%s286 + $0x218] sm:$0xff]
        %v423 = vld [vmem:[%s286 + $0x220] sm:$0xff]
        %v424 = vld [vmem:[%s286 + $0x228] sm:$0xff]
        %v425 = vld [vmem:[%s286 + $0x230] sm:$0xff]
        %v426 = vld [vmem:[%s286 + $0x238] sm:$0xff]
        %v427 = vld [vmem:[%s286 + $0x240] sm:$0xff]
        %v428 = vld [vmem:[%s286 + $0x248] sm:$0xff]
        %v429 = vld [vmem:[%s286 + $0x250] sm:$0xff]
        %v430 = vld [vmem:[%s286 + $0x258] sm:$0xff]
        %v431 = vld [vmem:[%s286 + $0x260] sm:$0xff]
        %v432 = vld [vmem:[%s286 + $0x268] sm:$0xff]
        %v433 = vld [vmem:[%s286 + $0x270] sm:$0xff]
        %v434 = vld [vmem:[%s286 + $0x278] sm:$0xff]
        %v435 = vld [vmem:[%s286 + $0x280] sm:$0xff]
        %v436 = vld [vmem:[%s286 + $0x288] sm:$0xff]
        %v437 = vld [vmem:[%s286 + $0x290] sm:$0xff]
        %v438 = vld [vmem:[%s286 + $0x298] sm:$0xff]
        %v439 = vld [vmem:[%s286 + $0x2a0] sm:$0xff]
        %v440 = vld [vmem:[%s286 + $0x2a8] sm:$0xff]
        %v441 = vld [vmem:[%s286 + $0x2b0] sm:$0xff]
        %v442 = vld [vmem:[%s286 + $0x2b8] sm:$0xff]
        %v443 = vld [vmem:[%s286 + $0x2c0] sm:$0xff]
        %v444 = vld [vmem:[%s286 + $0x2c8] sm:$0xff]
        %v445 = vld [vmem:[%s286 + $0x2d0] sm:$0xff]
        %v446 = vld [vmem:[%s286 + $0x2d8] sm:$0xff]
        %v447 = vld [vmem:[%s286 + $0x2e0] sm:$0xff]
        %v448 = vld [vmem:[%s286 + $0x2e8] sm:$0xff]
        %v449 = vld [vmem:[%s286 + $0x2f0] sm:$0xff]
        %v450 = vld [vmem:[%s286 + $0x2f8] sm:$0xff]
        %v451 = vld [vmem:[%s286 + $0x300] sm:$0xff]
        %v452 = vld [vmem:[%s286 + $0x308] sm:$0xff]
        %v453 = vld [vmem:[%s286 + $0x310] sm:$0xff]
        %v454 = vld [vmem:[%s286 + $0x318] sm:$0xff]
        %v455 = vld [vmem:[%s286 + $0x320] sm:$0xff]
        %v456 = vld [vmem:[%s286 + $0x328] sm:$0xff]
        %v457 = vld [vmem:[%s286 + $0x330] sm:$0xff]
        %v458 = vld [vmem:[%s286 + $0x338] sm:$0xff]
        %v459 = vld [vmem:[%s286 + $0x340] sm:$0xff]
        %v460 = vld [vmem:[%s286 + $0x348] sm:$0xff]
        %v461 = vld [vmem:[%s286 + $0x350] sm:$0xff]
        %v462 = vld [vmem:[%s286 + $0x358] sm:$0xff]
        %v463 = vld [vmem:[%s286 + $0x360] sm:$0xff]
        %v464 = vld [vmem:[%s286 + $0x368] sm:$0xff]
        %v465 = vld [vmem:[%s286 + $0x370] sm:$0xff]
        %v466 = vld [vmem:[%s286 + $0x378] sm:$0xff]
        %v467 = vld [vmem:[%s286 + $0x380] sm:$0xff]
        %v468 = vld [vmem:[%s286 + $0x388] sm:$0xff]
        %v469 = vld [vmem:[%s286 + $0x390] sm:$0xff]
        %v470 = vld [vmem:[%s286 + $0x398] sm:$0xff]
        %v471 = vld [vmem:[%s286 + $0x3a0] sm:$0xff]
        %v472 = vld [vmem:[%s286 + $0x3a8] sm:$0xff]
        %v473 = vld [vmem:[%s286 + $0x3b0] sm:$0xff]
        %v474 = vld [vmem:[%s286 + $0x3b8] sm:$0xff]
        %v475 = vld [vmem:[%s286 + $0x3c0] sm:$0xff]
        %v476 = vld [vmem:[%s286 + $0x3c8] sm:$0xff]
        %v477 = vld [vmem:[%s286 + $0x3d0] sm:$0xff]
        %v478 = vld [vmem:[%s286 + $0x3d8] sm:$0xff]
        %v479 = vld [vmem:[%s286 + $0x3e0] sm:$0xff]
        %v480 = vld [vmem:[%s286 + $0x3e8] sm:$0xff]
        %v481 = vld [vmem:[%s286 + $0x3f0] sm:$0xff]
        %v482 = vld [vmem:[%s286 + $0x3f8] sm:$0xff]
        %v483 = vld [vmem:[%s286 + $0x400] sm:$0xff]
        %v484 = vld [vmem:[%s286 + $0x408] sm:$0xff]
        %v485 = vld [vmem:[%s286 + $0x410] sm:$0xff]
        %v486 = vld [vmem:[%s286 + $0x418] sm:$0xff]
        %v487 = vld [vmem:[%s286 + $0x420] sm:$0xff]
        %v488 = vld [vmem:[%s286 + $0x428] sm:$0xff]
        %v489 = vld [vmem:[%s286 + $0x430] sm:$0xff]
        %v490 = vld [vmem:[%s286 + $0x438] sm:$0xff]
        %v491 = vld [vmem:[%s286 + $0x440] sm:$0xff]
        %v492 = vld [vmem:[%s286 + $0x448] sm:$0xff]
        %v493 = vld [vmem:[%s286 + $0x450] sm:$0xff]
        %v494 = vld [vmem:[%s286 + $0x458] sm:$0xff]
        %v495 = vld [vmem:[%s286 + $0x460] sm:$0xff]
        %v496 = vld [vmem:[%s286 + $0x468] sm:$0xff]
        %v497 = vld [vmem:[%s286 + $0x470] sm:$0xff]
        %v498 = vld [vmem:[%s286 + $0x478] sm:$0xff]
        %v499 = vld [vmem:[%s286 + $0x480] sm:$0xff]
        %v500 = vld [vmem:[%s286 + $0x488] sm:$0xff]
        %v501 = vld [vmem:[%s286 + $0x490] sm:$0xff]
        %v502 = vld [vmem:[%s286 + $0x498] sm:$0xff]
        %v503 = vld [vmem:[%s286 + $0x4a0] sm:$0xff]
        %v504 = vld [vmem:[%s286 + $0x4a8] sm:$0xff]
        %v505 = vld [vmem:[%s286 + $0x4b0] sm:$0xff]
        %v506 = vld [vmem:[%s286 + $0x4b8] sm:$0xff]
        %v507 = vld [vmem:[%s286 + $0x4c0] sm:$0xff]
        %v508 = vld [vmem:[%s286 + $0x4c8] sm:$0xff]
        %v509 = vld [vmem:[%s286 + $0x4d0] sm:$0xff]
        %v510 = vld [vmem:[%s286 + $0x4d8] sm:$0xff]
        %v511 = vld [vmem:[%s286 + $0x4e0] sm:$0xff]
        %v512 = vld [vmem:[%s286 + $0x4e8] sm:$0xff]
        %v513 = vld [vmem:[%s286 + $0x4f0] sm:$0xff]
        %v514 = vld [vmem:[%s286 + $0x4f8] sm:$0xff]
        %v515 = vld [vmem:[%s286 + $0x500] sm:$0xff]
        %v516 = vld [vmem:[%s286 + $0x508] sm:$0xff]
        %v517 = vld [vmem:[%s286 + $0x510] sm:$0xff]
        %v518 = vld [vmem:[%s286 + $0x518] sm:$0xff]
        %v519 = vld [vmem:[%s286 + $0x520] sm:$0xff]
        %v520 = vld [vmem:[%s286 + $0x528] sm:$0xff]
        %v521 = vld [vmem:[%s286 + $0x530] sm:$0xff]
        %v522 = vld [vmem:[%s286 + $0x538] sm:$0xff]
        %v523 = vld [vmem:[%s286 + $0x540] sm:$0xff]
        %v524 = vld [vmem:[%s286 + $0x548] sm:$0xff]
        %v525 = vld [vmem:[%s286 + $0x550] sm:$0xff]
        %v526 = vld [vmem:[%s286 + $0x558] sm:$0xff]
        %v527 = vld [vmem:[%s286 + $0x560] sm:$0xff]
        %v528 = vld [vmem:[%s286 + $0x568] sm:$0xff]
        %v529 = vld [vmem:[%s286 + $0x570] sm:$0xff]
        %v530 = vld [vmem:[%s286 + $0x578] sm:$0xff]
        %v531 = vld [vmem:[%s286 + $0x580] sm:$0xff]
        %v532 = vld [vmem:[%s286 + $0x588] sm:$0xff]
        %v533 = vld [vmem:[%s286 + $0x590] sm:$0xff]
        %v534 = vld [vmem:[%s286 + $0x598] sm:$0xff]
        %v535 = vld [vmem:[%s286 + $0x5a0] sm:$0xff]
        %v536 = vld [vmem:[%s286 + $0x5a8] sm:$0xff]
        %v537 = vld [vmem:[%s286 + $0x5b0] sm:$0xff]
        %v538 = vld [vmem:[%s286 + $0x5b8] sm:$0xff]
        %v539 = vld [vmem:[%s286 + $0x5c0] sm:$0xff]
        %v540 = vld [vmem:[%s286 + $0x5c8] sm:$0xff]
        %v541 = vld [vmem:[%s286 + $0x5d0] sm:$0xff]
        %v542 = vld [vmem:[%s286 + $0x5d8] sm:$0xff]
        %v543 = vld [vmem:[%s286 + $0x5e0] sm:$0xff]
        %v544 = vld [vmem:[%s286 + $0x5e8] sm:$0xff]
        %v545 = vld [vmem:[%s286 + $0x5f0] sm:$0xff]
        %v546 = vld [vmem:[%s286 + $0x5f8] sm:$0xff]
        %v547 = vld [vmem:[%s286 + $0x600] sm:$0xff]
        %v548 = vld [vmem:[%s286 + $0x608] sm:$0xff]
        %v549 = vld [vmem:[%s286 + $0x610] sm:$0xff]
        %v550 = vld [vmem:[%s286 + $0x618] sm:$0xff]
        %v551 = vld [vmem:[%s286 + $0x620] sm:$0xff]
        %v552 = vld [vmem:[%s286 + $0x628] sm:$0xff]
        %v553 = vld [vmem:[%s286 + $0x630] sm:$0xff]
        %v554 = vld [vmem:[%s286 + $0x638] sm:$0xff]
        %v555 = vld [vmem:[%s286 + $0x640] sm:$0xff]
        %v556 = vld [vmem:[%s286 + $0x648] sm:$0xff]
        %v557 = vld [vmem:[%s286 + $0x650] sm:$0xff]
        %v558 = vld [vmem:[%s286 + $0x658] sm:$0xff]
        %v559 = vld [vmem:[%s286 + $0x660] sm:$0xff]
        %v560 = vld [vmem:[%s286 + $0x668] sm:$0xff]
        %v561 = vld [vmem:[%s286 + $0x670] sm:$0xff]
        %v562 = vld [vmem:[%s286 + $0x678] sm:$0xff]
        %v563 = vld [vmem:[%s286 + $0x680] sm:$0xff]
        %v564 = vld [vmem:[%s286 + $0x688] sm:$0xff]
        %v565 = vld [vmem:[%s286 + $0x690] sm:$0xff]
        %v566 = vld [vmem:[%s286 + $0x698] sm:$0xff]
        %v567 = vld [vmem:[%s286 + $0x6a0] sm:$0xff]
        %v568 = vld [vmem:[%s286 + $0x6a8] sm:$0xff]
        %v569 = vld [vmem:[%s286 + $0x6b0] sm:$0xff]
        %v570 = vld [vmem:[%s286 + $0x6b8] sm:$0xff]
        %v571 = vld [vmem:[%s286 + $0x6c0] sm:$0xff]
        %v572 = vld [vmem:[%s286 + $0x6c8] sm:$0xff]
        %v573 = vld [vmem:[%s286 + $0x6d0] sm:$0xff]
        %v574 = vld [vmem:[%s286 + $0x6d8] sm:$0xff]
        %v575 = vld [vmem:[%s286 + $0x6e0] sm:$0xff]
        %v576 = vld [vmem:[%s286 + $0x6e8] sm:$0xff]
        %v577 = vld [vmem:[%s286 + $0x6f0] sm:$0xff]
        %v578 = vld [vmem:[%s286 + $0x6f8] sm:$0xff]
        %v579 = vld [vmem:[%s286 + $0x700] sm:$0xff]
        %v580 = vld [vmem:[%s286 + $0x708] sm:$0xff]
        %v581 = vld [vmem:[%s286 + $0x710] sm:$0xff]
        %v582 = vld [vmem:[%s286 + $0x718] sm:$0xff]
        %v583 = vld [vmem:[%s286 + $0x720] sm:$0xff]
        %v584 = vld [vmem:[%s286 + $0x728] sm:$0xff]
        %v585 = vld [vmem:[%s286 + $0x730] sm:$0xff]
        %v586 = vld [vmem:[%s286 + $0x738] sm:$0xff]
        %v587 = vld [vmem:[%s286 + $0x740] sm:$0xff]
        %v588 = vld [vmem:[%s286 + $0x748] sm:$0xff]
        %v589 = vld [vmem:[%s286 + $0x750] sm:$0xff]
        %v590 = vld [vmem:[%s286 + $0x758] sm:$0xff]
        %v591 = vld [vmem:[%s286 + $0x760] sm:$0xff]
        %v592 = vld [vmem:[%s286 + $0x768] sm:$0xff]
        %v593 = vld [vmem:[%s286 + $0x770] sm:$0xff]
        %v594 = vld [vmem:[%s286 + $0x778] sm:$0xff]
        %v595 = vld [vmem:[%s286 + $0x780] sm:$0xff]
        %v596 = vld [vmem:[%s286 + $0x788] sm:$0xff]
        %v597 = vld [vmem:[%s286 + $0x790] sm:$0xff]
        %v598 = vld [vmem:[%s286 + $0x798] sm:$0xff]
        %v599 = vld [vmem:[%s286 + $0x7a0] sm:$0xff]
        %v600 = vld [vmem:[%s286 + $0x7a8] sm:$0xff]
        %v601 = vld [vmem:[%s286 + $0x7b0] sm:$0xff]
        %v602 = vld [vmem:[%s286 + $0x7b8] sm:$0xff]
        %v603 = vld [vmem:[%s286 + $0x7c0] sm:$0xff]
        %v604 = vld [vmem:[%s286 + $0x7c8] sm:$0xff]
        %v605 = vld [vmem:[%s286 + $0x7d0] sm:$0xff]
        %v606 = vld [vmem:[%s286 + $0x7d8] sm:$0xff]
        %v607 = vld [vmem:[%s286 + $0x7e0] sm:$0xff]
        %v608 = vld [vmem:[%s286 + $0x7e8] sm:$0xff]
        %v609 = vld [vmem:[%s286 + $0x7f0] sm:$0xff]
        %v610 = vld [vmem:[%s286 + $0x7f8] sm:$0xff]
        %v611 = vld [vmem:[%s286 + $0x800] sm:$0xff]
        %v612 = vld [vmem:[%s286 + $0x808] sm:$0xff]
        %v613 = vld [vmem:[%s286 + $0x810] sm:$0xff]
        %v614 = vld [vmem:[%s286 + $0x818] sm:$0xff]
        %v615 = vld [vmem:[%s286 + $0x820] sm:$0xff]
        %v616 = vld [vmem:[%s286 + $0x828] sm:$0xff]
        %v617 = vld [vmem:[%s286 + $0x830] sm:$0xff]
        %v618 = vld [vmem:[%s286 + $0x838] sm:$0xff]
        %v619 = vld [vmem:[%s286 + $0x840] sm:$0xff]
        %v620 = vld [vmem:[%s286 + $0x848] sm:$0xff]
        %v621 = vld [vmem:[%s286 + $0x850] sm:$0xff]
        %v622 = vld [vmem:[%s286 + $0x858] sm:$0xff]
        %v623 = vld [vmem:[%s286 + $0x860] sm:$0xff]
        %v624 = vld [vmem:[%s286 + $0x868] sm:$0xff]
        %v625 = vld [vmem:[%s286 + $0x870] sm:$0xff]
        %v626 = vld [vmem:[%s286 + $0x878] sm:$0xff]
        %v627 = vld [vmem:[%s286 + $0x880] sm:$0xff]
        %v628 = vld [vmem:[%s286 + $0x888] sm:$0xff]
        %v629 = vld [vmem:[%s286 + $0x890] sm:$0xff]
        %v630 = vld [vmem:[%s286 + $0x898] sm:$0xff]
        %v631 = vld [vmem:[%s286 + $0x8a0] sm:$0xff]
        %v632 = vld [vmem:[%s286 + $0x8a8] sm:$0xff]
        %v633 = vld [vmem:[%s286 + $0x8b0] sm:$0xff]
        %v634 = vld [vmem:[%s286 + $0x8b8] sm:$0xff]
        %v635 = vld [vmem:[%s286 + $0x8c0] sm:$0xff]
        %v636 = vld [vmem:[%s286 + $0x8c8] sm:$0xff]
        %v637 = vld [vmem:[%s286 + $0x8d0] sm:$0xff]
        %v638 = vld [vmem:[%s286 + $0x8d8] sm:$0xff]
        %v639 = vld [vmem:[%s286 + $0x8e0] sm:$0xff]
        %v640 = vld [vmem:[%s286 + $0x8e8] sm:$0xff]
        %v641 = vld [vmem:[%s286 + $0x8f0] sm:$0xff]
        %v642 = vld [vmem:[%s286 + $0x8f8] sm:$0xff]
        %v643 = vld [vmem:[%s286 + $0x900] sm:$0xff]
        %v644 = vld [vmem:[%s286 + $0x908] sm:$0xff]
        %v645 = vld [vmem:[%s286 + $0x910] sm:$0xff]
        %v646 = vld [vmem:[%s286 + $0x918] sm:$0xff]
        %v647 = vld [vmem:[%s286 + $0x920] sm:$0xff]
        %v648 = vld [vmem:[%s286 + $0x928] sm:$0xff]
        %v649 = vld [vmem:[%s286 + $0x930] sm:$0xff]
        %v650 = vld [vmem:[%s286 + $0x938] sm:$0xff]
        %v651 = vld [vmem:[%s286 + $0x940] sm:$0xff]
        %v652 = vld [vmem:[%s286 + $0x948] sm:$0xff]
        %v653 = vld [vmem:[%s286 + $0x950] sm:$0xff]
        %v654 = vld [vmem:[%s286 + $0x958] sm:$0xff]
        %v655 = vld [vmem:[%s286 + $0x960] sm:$0xff]
        %v656 = vld [vmem:[%s286 + $0x968] sm:$0xff]
        %v657 = vld [vmem:[%s286 + $0x970] sm:$0xff]
        %v658 = vld [vmem:[%s286 + $0x978] sm:$0xff]
        %v659 = vld [vmem:[%s286 + $0x980] sm:$0xff]
        %v660 = vld [vmem:[%s286 + $0x988] sm:$0xff]
        %v661 = vld [vmem:[%s286 + $0x990] sm:$0xff]
        %v662 = vld [vmem:[%s286 + $0x998] sm:$0xff]
        %v663 = vld [vmem:[%s286 + $0x9a0] sm:$0xff]
        %v664 = vld [vmem:[%s286 + $0x9a8] sm:$0xff]
        %v665 = vld [vmem:[%s286 + $0x9b0] sm:$0xff]
        %v666 = vld [vmem:[%s286 + $0x9b8] sm:$0xff]
        %v667 = vld [vmem:[%s286 + $0x9c0] sm:$0xff]
        %v668 = vld [vmem:[%s286 + $0x9c8] sm:$0xff]
        %v669 = vld [vmem:[%s286 + $0x9d0] sm:$0xff]
        %v670 = vld [vmem:[%s286 + $0x9d8] sm:$0xff]
        %v671 = vld [vmem:[%s286 + $0x9e0] sm:$0xff]
        %v672 = vld [vmem:[%s286 + $0x9e8] sm:$0xff]
        %v673 = vld [vmem:[%s286 + $0x9f0] sm:$0xff]
        %v674 = vld [vmem:[%s286 + $0x9f8] sm:$0xff]
        %v675 = vld [vmem:[%s286 + $0xa00] sm:$0xff]
        %v676 = vld [vmem:[%s286 + $0xa08] sm:$0xff]
        %v677 = vld [vmem:[%s286 + $0xa10] sm:$0xff]
        %v678 = vld [vmem:[%s286 + $0xa18] sm:$0xff]
        %v679 = vld [vmem:[%s286 + $0xa20] sm:$0xff]
        %v680 = vld [vmem:[%s286 + $0xa28] sm:$0xff]
        %v681 = vld [vmem:[%s286 + $0xa30] sm:$0xff]
        %v682 = vld [vmem:[%s286 + $0xa38] sm:$0xff]
        %v683 = vld [vmem:[%s286 + $0xa40] sm:$0xff]
        %v684 = vld [vmem:[%s286 + $0xa48] sm:$0xff]
        %v685 = vld [vmem:[%s286 + $0xa50] sm:$0xff]
        %v686 = vld [vmem:[%s286 + $0xa58] sm:$0xff]
        %v687 = vld [vmem:[%s286 + $0xa60] sm:$0xff]
        %v688 = vld [vmem:[%s286 + $0xa68] sm:$0xff]
        %v689 = vld [vmem:[%s286 + $0xa70] sm:$0xff]
        %v690 = vld [vmem:[%s286 + $0xa78] sm:$0xff]
        %v691 = vld [vmem:[%s286 + $0xa80] sm:$0xff]
        %v692 = vld [vmem:[%s286 + $0xa88] sm:$0xff]
        %v693 = vld [vmem:[%s286 + $0xa90] sm:$0xff]
        %v694 = vld [vmem:[%s286 + $0xa98] sm:$0xff]
        %v695 = vld [vmem:[%s286 + $0xaa0] sm:$0xff]
        %v696 = vld [vmem:[%s286 + $0xaa8] sm:$0xff]
        %v697 = vld [vmem:[%s286 + $0xab0] sm:$0xff]
        %v698 = vld [vmem:[%s286 + $0xab8] sm:$0xff]
        %v699 = vld [vmem:[%s286 + $0xac0] sm:$0xff]
        %v700 = vld [vmem:[%s286 + $0xac8] sm:$0xff]
        %v701 = vld [vmem:[%s286 + $0xad0] sm:$0xff]
        %v702 = vld [vmem:[%s286 + $0xad8] sm:$0xff]
        %v703 = vld [vmem:[%s286 + $0xae0] sm:$0xff]
        %v704 = vld [vmem:[%s286 + $0xae8] sm:$0xff]
        %v705 = vld [vmem:[%s286 + $0xaf0] sm:$0xff]
        %v706 = vld [vmem:[%s286 + $0xaf8] sm:$0xff]
        %v707 = vld [vmem:[%s286 + $0xb00] sm:$0xff]
        %v708 = vld [vmem:[%s286 + $0xb08] sm:$0xff]
        %v709 = vld [vmem:[%s286 + $0xb10] sm:$0xff]
        %v710 = vld [vmem:[%s286 + $0xb18] sm:$0xff]
        %v711 = vld [vmem:[%s286 + $0xb20] sm:$0xff]
        %v712 = vld [vmem:[%s286 + $0xb28] sm:$0xff]
        %v713 = vld [vmem:[%s286 + $0xb30] sm:$0xff]
        %v714 = vld [vmem:[%s286 + $0xb38] sm:$0xff]
        %v715 = vld [vmem:[%s286 + $0xb40] sm:$0xff]
        %v716 = vld [vmem:[%s286 + $0xb48] sm:$0xff]
        %v717 = vld [vmem:[%s286 + $0xb50] sm:$0xff]
        %v718 = vld [vmem:[%s286 + $0xb58] sm:$0xff]
        %v719 = vld [vmem:[%s286 + $0xb60] sm:$0xff]
        %v720 = vld [vmem:[%s286 + $0xb68] sm:$0xff]
        %v721 = vld [vmem:[%s286 + $0xb70] sm:$0xff]
        %v722 = vld [vmem:[%s286 + $0xb78] sm:$0xff]
        %v723 = vld [vmem:[%s286 + $0xb80] sm:$0xff]
        %v724 = vld [vmem:[%s286 + $0xb88] sm:$0xff]
        %v725 = vld [vmem:[%s286 + $0xb90] sm:$0xff]
        %v726 = vld [vmem:[%s286 + $0xb98] sm:$0xff]
        %v727 = vld [vmem:[%s286 + $0xba0] sm:$0xff]
        %v728 = vld [vmem:[%s286 + $0xba8] sm:$0xff]
        %v729 = vld [vmem:[%s286 + $0xbb0] sm:$0xff]
        %v730 = vld [vmem:[%s286 + $0xbb8] sm:$0xff]
        %v731 = vld [vmem:[%s286 + $0xbc0] sm:$0xff]
        %v732 = vld [vmem:[%s286 + $0xbc8] sm:$0xff]
        %v733 = vld [vmem:[%s286 + $0xbd0] sm:$0xff]
        %v734 = vld [vmem:[%s286 + $0xbd8] sm:$0xff]
        %v735 = vld [vmem:[%s286 + $0xbe0] sm:$0xff]
        %v736 = vld [vmem:[%s286 + $0xbe8] sm:$0xff]
        %v737 = vld [vmem:[%s286 + $0xbf0] sm:$0xff]
        %v738 = vld [vmem:[%s286 + $0xbf8] sm:$0xff]
        %v739 = vld [vmem:[%s286 + $0xc00] sm:$0xff]
        %v740 = vld [vmem:[%s286 + $0xc08] sm:$0xff]
        %v741 = vld [vmem:[%s286 + $0xc10] sm:$0xff]
        %v742 = vld [vmem:[%s286 + $0xc18] sm:$0xff]
        %v743 = vld [vmem:[%s286 + $0xc20] sm:$0xff]
        %v744 = vld [vmem:[%s286 + $0xc28] sm:$0xff]
        %v745 = vld [vmem:[%s286 + $0xc30] sm:$0xff]
        %v746 = vld [vmem:[%s286 + $0xc38] sm:$0xff]
        %v747 = vld [vmem:[%s286 + $0xc40] sm:$0xff]
        %v748 = vld [vmem:[%s286 + $0xc48] sm:$0xff]
        %v749 = vld [vmem:[%s286 + $0xc50] sm:$0xff]
        %v750 = vld [vmem:[%s286 + $0xc58] sm:$0xff]
        %v751 = vld [vmem:[%s286 + $0xc60] sm:$0xff]
        %v752 = vld [vmem:[%s286 + $0xc68] sm:$0xff]
        %v753 = vld [vmem:[%s286 + $0xc70] sm:$0xff]
        %v754 = vld [vmem:[%s286 + $0xc78] sm:$0xff]
        %v755 = vld [vmem:[%s286 + $0xc80] sm:$0xff]
        %v756 = vld [vmem:[%s286 + $0xc88] sm:$0xff]
        %v757 = vld [vmem:[%s286 + $0xc90] sm:$0xff]
        %v758 = vld [vmem:[%s286 + $0xc98] sm:$0xff]
        %v759 = vld [vmem:[%s286 + $0xca0] sm:$0xff]
        %v760 = vld [vmem:[%s286 + $0xca8] sm:$0xff]
        %v761 = vld [vmem:[%s286 + $0xcb0] sm:$0xff]
        %v762 = vld [vmem:[%s286 + $0xcb8] sm:$0xff]
        %v763 = vld [vmem:[%s286 + $0xcc0] sm:$0xff]
        %v764 = vld [vmem:[%s286 + $0xcc8] sm:$0xff]
        %v765 = vld [vmem:[%s286 + $0xcd0] sm:$0xff]
        %v766 = vld [vmem:[%s286 + $0xcd8] sm:$0xff]
        %v767 = vld [vmem:[%s286 + $0xce0] sm:$0xff]
        %v768 = vld [vmem:[%s286 + $0xce8] sm:$0xff]
        %v769 = vld [vmem:[%s286 + $0xcf0] sm:$0xff]
        %v770 = vld [vmem:[%s286 + $0xcf8] sm:$0xff]
        %v771 = vld [vmem:[%s286 + $0xd00] sm:$0xff]
        %v772 = vld [vmem:[%s286 + $0xd08] sm:$0xff]
        %v773 = vld [vmem:[%s286 + $0xd10] sm:$0xff]
        %v774 = vld [vmem:[%s286 + $0xd18] sm:$0xff]
        %v775 = vld [vmem:[%s286 + $0xd20] sm:$0xff]
        %v776 = vld [vmem:[%s286 + $0xd28] sm:$0xff]
        %v777 = vld [vmem:[%s286 + $0xd30] sm:$0xff]
        %v778 = vld [vmem:[%s286 + $0xd38] sm:$0xff]
        %v779 = vld [vmem:[%s286 + $0xd40] sm:$0xff]
        %v780 = vld [vmem:[%s286 + $0xd48] sm:$0xff]
        %v781 = vld [vmem:[%s286 + $0xd50] sm:$0xff]
        %v782 = vld [vmem:[%s286 + $0xd58] sm:$0xff]
        %v783 = vld [vmem:[%s286 + $0xd60] sm:$0xff]
        %v784 = vld [vmem:[%s286 + $0xd68] sm:$0xff]
        %v785 = vld [vmem:[%s286 + $0xd70] sm:$0xff]
        %v786 = vld [vmem:[%s286 + $0xd78] sm:$0xff]
        %v787 = vld [vmem:[%s286 + $0xd80] sm:$0xff]
        %v788 = vld [vmem:[%s286 + $0xd88] sm:$0xff]
        %v789 = vld [vmem:[%s286 + $0xd90] sm:$0xff]
        %v790 = vld [vmem:[%s286 + $0xd98] sm:$0xff]
        %v791 = vld [vmem:[%s286 + $0xda0] sm:$0xff]
        %v792 = vld [vmem:[%s286 + $0xda8] sm:$0xff]
        %v793 = vld [vmem:[%s286 + $0xdb0] sm:$0xff]
        %v794 = vld [vmem:[%s286 + $0xdb8] sm:$0xff]
        %v795 = vld [vmem:[%s286 + $0xdc0] sm:$0xff]
        %v796 = vld [vmem:[%s286 + $0xdc8] sm:$0xff]
        %v797 = vld [vmem:[%s286 + $0xdd0] sm:$0xff]
        %v798 = vld [vmem:[%s286 + $0xdd8] sm:$0xff]
        %v799 = vld [vmem:[%s286 + $0xde0] sm:$0xff]
        %v800 = vld [vmem:[%s286 + $0xde8] sm:$0xff]
        %v801 = vld [vmem:[%s286 + $0xdf0] sm:$0xff]
        %v802 = vld [vmem:[%s286 + $0xdf8] sm:$0xff]
        %v803 = vld [vmem:[%s286 + $0xe00] sm:$0xff]
        %v804 = vld [vmem:[%s286 + $0xe08] sm:$0xff]
        %v805 = vld [vmem:[%s286 + $0xe10] sm:$0xff]
        %v806 = vld [vmem:[%s286 + $0xe18] sm:$0xff]
        %v807 = vld [vmem:[%s286 + $0xe20] sm:$0xff]
        %v808 = vld [vmem:[%s286 + $0xe28] sm:$0xff]
        %v809 = vld [vmem:[%s286 + $0xe30] sm:$0xff]
        %v810 = vld [vmem:[%s286 + $0xe38] sm:$0xff]
        %v811 = vld [vmem:[%s286 + $0xe40] sm:$0xff]
        %v812 = vld [vmem:[%s286 + $0xe48] sm:$0xff]
        %v813 = vld [vmem:[%s286 + $0xe50] sm:$0xff]
        %v814 = vld [vmem:[%s286 + $0xe58] sm:$0xff]
        %v815 = vld [vmem:[%s286 + $0xe60] sm:$0xff]
        %v816 = vld [vmem:[%s286 + $0xe68] sm:$0xff]
        %v817 = vld [vmem:[%s286 + $0xe70] sm:$0xff]
        %v818 = vld [vmem:[%s286 + $0xe78] sm:$0xff]
        %v819 = vld [vmem:[%s286 + $0xe80] sm:$0xff]
        %v820 = vld [vmem:[%s286 + $0xe88] sm:$0xff]
        %v821 = vld [vmem:[%s286 + $0xe90] sm:$0xff]
        %v822 = vld [vmem:[%s286 + $0xe98] sm:$0xff]
        %v823 = vld [vmem:[%s286 + $0xea0] sm:$0xff]
        %v824 = vld [vmem:[%s286 + $0xea8] sm:$0xff]
        %v825 = vld [vmem:[%s286 + $0xeb0] sm:$0xff]
        %v826 = vld [vmem:[%s286 + $0xeb8] sm:$0xff]
        %v827 = vld [vmem:[%s286 + $0xec0] sm:$0xff]
        %v828 = vld [vmem:[%s286 + $0xec8] sm:$0xff]
        %v829 = vld [vmem:[%s286 + $0xed0] sm:$0xff]
        %v830 = vld [vmem:[%s286 + $0xed8] sm:$0xff]
        %v831 = vld [vmem:[%s286 + $0xee0] sm:$0xff]
        %v832 = vld [vmem:[%s286 + $0xee8] sm:$0xff]
        %v833 = vld [vmem:[%s286 + $0xef0] sm:$0xff]
        %v834 = vld [vmem:[%s286 + $0xef8] sm:$0xff]
        %v835 = vld [vmem:[%s286 + $0xf00] sm:$0xff]
        %v836 = vld [vmem:[%s286 + $0xf08] sm:$0xff]
        %v837 = vld [vmem:[%s286 + $0xf10] sm:$0xff]
        %v838 = vld [vmem:[%s286 + $0xf18] sm:$0xff]
        %v839 = vld [vmem:[%s286 + $0xf20] sm:$0xff]
        %v840 = vld [vmem:[%s286 + $0xf28] sm:$0xff]
        %v841 = vld [vmem:[%s286 + $0xf30] sm:$0xff]
        %v842 = vld [vmem:[%s286 + $0xf38] sm:$0xff]
        %v843 = vld [vmem:[%s286 + $0xf40] sm:$0xff]
        %v844 = vld [vmem:[%s286 + $0xf48] sm:$0xff]
        %v845 = vld [vmem:[%s286 + $0xf50] sm:$0xff]
        %v846 = vld [vmem:[%s286 + $0xf58] sm:$0xff]
        %v847 = vld [vmem:[%s286 + $0xf60] sm:$0xff]
        %v848 = vld [vmem:[%s286 + $0xf68] sm:$0xff]
        %v849 = vld [vmem:[%s286 + $0xf70] sm:$0xff]
        %v850 = vld [vmem:[%s286 + $0xf78] sm:$0xff]
        %v851 = vld [vmem:[%s286 + $0xf80] sm:$0xff]
        %v852 = vld [vmem:[%s286 + $0xf88] sm:$0xff]
        %v853 = vld [vmem:[%s286 + $0xf90] sm:$0xff]
        %v854 = vld [vmem:[%s286 + $0xf98] sm:$0xff]
        %v855 = vld [vmem:[%s286 + $0xfa0] sm:$0xff]
        %v856 = vld [vmem:[%s286 + $0xfa8] sm:$0xff]
        %v857 = vld [vmem:[%s286 + $0xfb0] sm:$0xff]
        %v858 = vld [vmem:[%s286 + $0xfb8] sm:$0xff]
        %v859 = vld [vmem:[%s286 + $0xfc0] sm:$0xff]
        %v860 = vld [vmem:[%s286 + $0xfc8] sm:$0xff]
        %v861 = vld [vmem:[%s286 + $0xfd0] sm:$0xff]
        %v862 = vld [vmem:[%s286 + $0xfd8] sm:$0xff]
        %v863 = vld [vmem:[%s286 + $0xfe0] sm:$0xff]
        %v864 = vld [vmem:[%s286 + $0xfe8] sm:$0xff]
        %v865 = vld [vmem:[%s286 + $0xff0] sm:$0xff]
        %v866 = vld [vmem:[%s286 + $0xff8] sm:$0xff]
        %v867 = vld [vmem:[%s286 + $0x1000] sm:$0xff]
        %v868 = vld [vmem:[%s286 + $0x1008] sm:$0xff]
        %v869 = vld [vmem:[%s286 + $0x1010] sm:$0xff]
        %v870 = vld [vmem:[%s286 + $0x1018] sm:$0xff]
        %v871 = vld [vmem:[%s286 + $0x1020] sm:$0xff]
        %v872 = vld [vmem:[%s286 + $0x1028] sm:$0xff]
        %v873 = vld [vmem:[%s286 + $0x1030] sm:$0xff]
        %v874 = vld [vmem:[%s286 + $0x1038] sm:$0xff]
        %v875 = vld [vmem:[%s286 + $0x1040] sm:$0xff]
        %v876 = vld [vmem:[%s286 + $0x1048] sm:$0xff]
        %v877 = vld [vmem:[%s286 + $0x1050] sm:$0xff]
        %v878 = vld [vmem:[%s286 + $0x1058] sm:$0xff]
        %v879 = vld [vmem:[%s286 + $0x1060] sm:$0xff]
        %v880 = vld [vmem:[%s286 + $0x1068] sm:$0xff]
        %v881 = vld [vmem:[%s286 + $0x1070] sm:$0xff]
        %v882 = vld [vmem:[%s286 + $0x1078] sm:$0xff]
        %v883 = vld [vmem:[%s286 + $0x1080] sm:$0xff]
        %v884 = vld [vmem:[%s286 + $0x1088] sm:$0xff]
        %v885 = vld [vmem:[%s286 + $0x1090] sm:$0xff]
        %v886 = vld [vmem:[%s286 + $0x1098] sm:$0xff]
        %v887 = vld [vmem:[%s286 + $0x10a0] sm:$0xff]
        %v888 = vld [vmem:[%s286 + $0x10a8] sm:$0xff]
        %v889 = vld [vmem:[%s286 + $0x10b0] sm:$0xff]
        %v890 = vld [vmem:[%s286 + $0x10b8] sm:$0xff]
        %v891 = vld [vmem:[%s286 + $0x10c0] sm:$0xff]
        %v892 = vld [vmem:[%s286 + $0x10c8] sm:$0xff]
        %v893 = vld [vmem:[%s286 + $0x10d0] sm:$0xff]
        %v894 = vld [vmem:[%s286 + $0x10d8] sm:$0xff]
        %v895 = vld [vmem:[%s286 + $0x10e0] sm:$0xff]
        %v896 = vld [vmem:[%s286 + $0x10e8] sm:$0xff]
        %v897 = vld [vmem:[%s286 + $0x10f0] sm:$0xff]
        %v898 = vld [vmem:[%s286 + $0x10f8] sm:$0xff]
        %v899 = vld [vmem:[%s286 + $0x1100] sm:$0xff]
        %v900 = vld [vmem:[%s286 + $0x1108] sm:$0xff]
        %v901 = vld [vmem:[%s286 + $0x1110] sm:$0xff]
        %v902 = vld [vmem:[%s286 + $0x1118] sm:$0xff]
        %v903 = vld [vmem:[%s286 + $0x1120] sm:$0xff]
        %v904 = vld [vmem:[%s286 + $0x1128] sm:$0xff]
        %v905 = vld [vmem:[%s286 + $0x1130] sm:$0xff]
        %v906 = vld [vmem:[%s286 + $0x1138] sm:$0xff]
        %v907 = vld [vmem:[%s286 + $0x1140] sm:$0xff]
        %v908 = vld [vmem:[%s286 + $0x1148] sm:$0xff]
        %v909 = vld [vmem:[%s286 + $0x1150] sm:$0xff]
        %v910 = vld [vmem:[%s286 + $0x1158] sm:$0xff]
        %v911 = vld [vmem:[%s286 + $0x1160] sm:$0xff]
        %v912 = vld [vmem:[%s286 + $0x1168] sm:$0xff]
        %v913 = vld [vmem:[%s286 + $0x1170] sm:$0xff]
        %v914 = vld [vmem:[%s286 + $0x1178] sm:$0xff]
        %v915 = vld [vmem:[%s286 + $0x1180] sm:$0xff]
        %v916 = vld [vmem:[%s286 + $0x1188] sm:$0xff]
        %v917 = vld [vmem:[%s286 + $0x1190] sm:$0xff]
        %v918 = vld [vmem:[%s286 + $0x1198] sm:$0xff]
        %v919 = vld [vmem:[%s286 + $0x11a0] sm:$0xff]
        %v920 = vld [vmem:[%s286 + $0x11a8] sm:$0xff]
        %v921 = vld [vmem:[%s286 + $0x11b0] sm:$0xff]
        %v922 = vld [vmem:[%s286 + $0x11b8] sm:$0xff]
        %v923 = vld [vmem:[%s286 + $0x11c0] sm:$0xff]
        %v924 = vld [vmem:[%s286 + $0x11c8] sm:$0xff]
        %v925 = vld [vmem:[%s286 + $0x11d0] sm:$0xff]
        %v926 = vld [vmem:[%s286 + $0x11d8] sm:$0xff]
        %v927 = vld [vmem:[%s286 + $0x11e0] sm:$0xff]
        %v928 = vld [vmem:[%s286 + $0x11e8] sm:$0xff]
        %v929 = vld [vmem:[%s286 + $0x11f0] sm:$0xff]
        %v930 = vld [vmem:[%s286 + $0x11f8] sm:$0xff]
        %v931 = vld [vmem:[%s286 + $0x1200] sm:$0xff]
        %v932 = vld [vmem:[%s286 + $0x1208] sm:$0xff]
        %v933 = vld [vmem:[%s286 + $0x1210] sm:$0xff]
        %v934 = vld [vmem:[%s286 + $0x1218] sm:$0xff]
        %v935 = vld [vmem:[%s286 + $0x1220] sm:$0xff]
        %v936 = vld [vmem:[%s286 + $0x1228] sm:$0xff]
        %v937 = vld [vmem:[%s286 + $0x1230] sm:$0xff]
        %v938 = vld [vmem:[%s286 + $0x1238] sm:$0xff]
        %v939 = vld [vmem:[%s286 + $0x1240] sm:$0xff]
        %v940 = vld [vmem:[%s286 + $0x1248] sm:$0xff]
        %v941 = vld [vmem:[%s286 + $0x1250] sm:$0xff]
        %v942 = vld [vmem:[%s286 + $0x1258] sm:$0xff]
        %v943 = vld [vmem:[%s286 + $0x1260] sm:$0xff]
        %v944 = vld [vmem:[%s286 + $0x1268] sm:$0xff]
        %v945 = vld [vmem:[%s286 + $0x1270] sm:$0xff]
        %v946 = vld [vmem:[%s286 + $0x1278] sm:$0xff]
        %v947 = vld [vmem:[%s286 + $0x1280] sm:$0xff]
        %v948 = vld [vmem:[%s286 + $0x1288] sm:$0xff]
        %v949 = vld [vmem:[%s286 + $0x1290] sm:$0xff]
        %v950 = vld [vmem:[%s286 + $0x1298] sm:$0xff]
        %v951 = vld [vmem:[%s286 + $0x12a0] sm:$0xff]
        %v952 = vld [vmem:[%s286 + $0x12a8] sm:$0xff]
        %v953 = vld [vmem:[%s286 + $0x12b0] sm:$0xff]
        %v954 = vld [vmem:[%s286 + $0x12b8] sm:$0xff]
        %v955 = vld [vmem:[%s286 + $0x12c0] sm:$0xff]
        %v956 = vld [vmem:[%s286 + $0x12c8] sm:$0xff]
        %v957 = vld [vmem:[%s286 + $0x12d0] sm:$0xff]
        %v958 = vld [vmem:[%s286 + $0x12d8] sm:$0xff]
        %v959 = vld [vmem:[%s286 + $0x12e0] sm:$0xff]
        %v960 = vld [vmem:[%s286 + $0x12e8] sm:$0xff]
        %v961 = vld [vmem:[%s286 + $0x12f0] sm:$0xff]
        %v962 = vld [vmem:[%s286 + $0x12f8] sm:$0xff]
        %v963 = vld [vmem:[%s286 + $0x1300] sm:$0xff]
        %v964 = vld [vmem:[%s286 + $0x1308] sm:$0xff]
        %v965 = vld [vmem:[%s286 + $0x1310] sm:$0xff]
        %v966 = vld [vmem:[%s286 + $0x1318] sm:$0xff]
        %v967 = vld [vmem:[%s286 + $0x1320] sm:$0xff]
        %v968 = vld [vmem:[%s286 + $0x1328] sm:$0xff]
        %v969 = vld [vmem:[%s286 + $0x1330] sm:$0xff]
        %v970 = vld [vmem:[%s286 + $0x1338] sm:$0xff]
        %v971 = vld [vmem:[%s286 + $0x1340] sm:$0xff]
        %v972 = vld [vmem:[%s286 + $0x1348] sm:$0xff]
        %v973 = vld [vmem:[%s286 + $0x1350] sm:$0xff]
        %v974 = vld [vmem:[%s286 + $0x1358] sm:$0xff]
        %v975 = vld [vmem:[%s286 + $0x1360] sm:$0xff]
        %v976 = vld [vmem:[%s286 + $0x1368] sm:$0xff]
        %v977 = vld [vmem:[%s286 + $0x1370] sm:$0xff]
        %v978 = vld [vmem:[%s286 + $0x1378] sm:$0xff]
        %v979 = vld [vmem:[%s286 + $0x1380] sm:$0xff]
        %v980 = vld [vmem:[%s286 + $0x1388] sm:$0xff]
        %v981 = vld [vmem:[%s286 + $0x1390] sm:$0xff]
        %v982 = vld [vmem:[%s286 + $0x1398] sm:$0xff]
        %v983 = vld [vmem:[%s286 + $0x13a0] sm:$0xff]
        %v984 = vld [vmem:[%s286 + $0x13a8] sm:$0xff]
        %v985 = vld [vmem:[%s286 + $0x13b0] sm:$0xff]
        %v986 = vld [vmem:[%s286 + $0x13b8] sm:$0xff]
        %v987 = vld [vmem:[%s286 + $0x13c0] sm:$0xff]
        %v988 = vld [vmem:[%s286 + $0x13c8] sm:$0xff]
        %v989 = vld [vmem:[%s286 + $0x13d0] sm:$0xff]
        %v990 = vld [vmem:[%s286 + $0x13d8] sm:$0xff]
        %v991 = vld [vmem:[%s286 + $0x13e0] sm:$0xff]
        %v992 = vld [vmem:[%s286 + $0x13e8] sm:$0xff]
        %v993 = vld [vmem:[%s286 + $0x13f0] sm:$0xff]
        %v994 = vld [vmem:[%s286 + $0x13f8] sm:$0xff]
        %v995 = vld [vmem:[%s286 + $0x1400] sm:$0xff]
        %v996 = vld [vmem:[%s286 + $0x1408] sm:$0xff]
        %v997 = vld [vmem:[%s286 + $0x1410] sm:$0xff]
        %v998 = vld [vmem:[%s286 + $0x1418] sm:$0xff]
        %v999 = vld [vmem:[%s286 + $0x1420] sm:$0xff]
        %v1000 = vld [vmem:[%s286 + $0x1428] sm:$0xff]
        %v1001 = vld [vmem:[%s286 + $0x1430] sm:$0xff]
        %v1002 = vld [vmem:[%s286 + $0x1438] sm:$0xff]
        %v1003 = vld [vmem:[%s286 + $0x1440] sm:$0xff]
        %v1004 = vld [vmem:[%s286 + $0x1448] sm:$0xff]
        %v1005 = vld [vmem:[%s286 + $0x1450] sm:$0xff]
        %v1006 = vld [vmem:[%s286 + $0x1458] sm:$0xff]
        %v1007 = vld [vmem:[%s286 + $0x1460] sm:$0xff]
        %v1008 = vld [vmem:[%s286 + $0x1468] sm:$0xff]
        %v1009 = vld [vmem:[%s286 + $0x1470] sm:$0xff]
        %v1010 = vld [vmem:[%s286 + $0x1478] sm:$0xff]
        %v1011 = vld [vmem:[%s286 + $0x1480] sm:$0xff]
        %v1012 = vld [vmem:[%s286 + $0x1488] sm:$0xff]
        %v1013 = vld [vmem:[%s286 + $0x1490] sm:$0xff]
        %v1014 = vld [vmem:[%s286 + $0x1498] sm:$0xff]
        %v1015 = vld [vmem:[%s286 + $0x14a0] sm:$0xff]
        %v1016 = vld [vmem:[%s286 + $0x14a8] sm:$0xff]
        %v1017 = vld [vmem:[%s286 + $0x14b0] sm:$0xff]
        %v1018 = vld [vmem:[%s286 + $0x14b8] sm:$0xff]
        %v1019 = vld [vmem:[%s286 + $0x14c0] sm:$0xff]
        %v1020 = vld [vmem:[%s286 + $0x14c8] sm:$0xff]
        %v1021 = vld [vmem:[%s286 + $0x14d0] sm:$0xff]
        %v1022 = vld [vmem:[%s286 + $0x14d8] sm:$0xff]
        %v1023 = vld [vmem:[%s286 + $0x14e0] sm:$0xff]
        %v1024 = vld [vmem:[%s286 + $0x14e8] sm:$0xff]
        %v1025 = vld [vmem:[%s286 + $0x14f0] sm:$0xff]
        %v1026 = vld [vmem:[%s286 + $0x14f8] sm:$0xff]
        %v1027 = vld [vmem:[%s286 + $0x1500] sm:$0xff]
        %v1028 = vld [vmem:[%s286 + $0x1508] sm:$0xff]
        %v1029 = vld [vmem:[%s286 + $0x1510] sm:$0xff]
        %v1030 = vld [vmem:[%s286 + $0x1518] sm:$0xff]
        %v1031 = vld [vmem:[%s286 + $0x1520] sm:$0xff]
        %v1032 = vld [vmem:[%s286 + $0x1528] sm:$0xff]
        %v1033 = vld [vmem:[%s286 + $0x1530] sm:$0xff]
        %v1034 = vld [vmem:[%s286 + $0x1538] sm:$0xff]
        %v1035 = vld [vmem:[%s286 + $0x1540] sm:$0xff]
        %v1036 = vld [vmem:[%s286 + $0x1548] sm:$0xff]
        %v1037 = vld [vmem:[%s286 + $0x1550] sm:$0xff]
        %v1038 = vld [vmem:[%s286 + $0x1558] sm:$0xff]
        %v1039 = vld [vmem:[%s286 + $0x1560] sm:$0xff]
        %v1040 = vld [vmem:[%s286 + $0x1568] sm:$0xff]
        %v1041 = vld [vmem:[%s286 + $0x1570] sm:$0xff]
        %v1042 = vld [vmem:[%s286 + $0x1578] sm:$0xff]
        %v1043 = vld [vmem:[%s286 + $0x1580] sm:$0xff]
        %v1044 = vld [vmem:[%s286 + $0x1588] sm:$0xff]
        %v1045 = vld [vmem:[%s286 + $0x1590] sm:$0xff]
        %v1046 = vld [vmem:[%s286 + $0x1598] sm:$0xff]
        %v1047 = vld [vmem:[%s286 + $0x15a0] sm:$0xff]
        %v1048 = vld [vmem:[%s286 + $0x15a8] sm:$0xff]
        %v1049 = vld [vmem:[%s286 + $0x15b0] sm:$0xff]
        %v1050 = vld [vmem:[%s286 + $0x15b8] sm:$0xff]
        %v1051 = vld [vmem:[%s286 + $0x15c0] sm:$0xff]
        %v1052 = vld [vmem:[%s286 + $0x15c8] sm:$0xff]
        %v1053 = vld [vmem:[%s286 + $0x15d0] sm:$0xff]
        %v1054 = vld [vmem:[%s286 + $0x15d8] sm:$0xff]
        %v1055 = vld [vmem:[%s286 + $0x15e0] sm:$0xff]
        %v1056 = vld [vmem:[%s286 + $0x15e8] sm:$0xff]
        %v1057 = vld [vmem:[%s286 + $0x15f0] sm:$0xff]
        %v1058 = vld [vmem:[%s286 + $0x15f8] sm:$0xff]
        %v1059 = vld [vmem:[%s286 + $0x1600] sm:$0xff]
        %v1060 = vld [vmem:[%s286 + $0x1608] sm:$0xff]
        %v1061 = vld [vmem:[%s286 + $0x1610] sm:$0xff]
        %v1062 = vld [vmem:[%s286 + $0x1618] sm:$0xff]
        %v1063 = vld [vmem:[%s286 + $0x1620] sm:$0xff]
        %v1064 = vld [vmem:[%s286 + $0x1628] sm:$0xff]
        %v1065 = vld [vmem:[%s286 + $0x1630] sm:$0xff]
        %v1066 = vld [vmem:[%s286 + $0x1638] sm:$0xff]
        %v1067 = vld [vmem:[%s286 + $0x1640] sm:$0xff]
        %v1068 = vld [vmem:[%s286 + $0x1648] sm:$0xff]
        %v1069 = vld [vmem:[%s286 + $0x1650] sm:$0xff]
        %v1070 = vld [vmem:[%s286 + $0x1658] sm:$0xff]
        %v1071 = vld [vmem:[%s286 + $0x1660] sm:$0xff]
        %v1072 = vld [vmem:[%s286 + $0x1668] sm:$0xff]
        %v1073 = vld [vmem:[%s286 + $0x1670] sm:$0xff]
        %v1074 = vld [vmem:[%s286 + $0x1678] sm:$0xff]
        %v1075 = vld [vmem:[%s286 + $0x1680] sm:$0xff]
        %v1076 = vld [vmem:[%s286 + $0x1688] sm:$0xff]
        %v1077 = vld [vmem:[%s286 + $0x1690] sm:$0xff]
        %v1078 = vld [vmem:[%s286 + $0x1698] sm:$0xff]
        %v1079 = vld [vmem:[%s286 + $0x16a0] sm:$0xff]
        %v1080 = vld [vmem:[%s286 + $0x16a8] sm:$0xff]
        %v1081 = vld [vmem:[%s286 + $0x16b0] sm:$0xff]
        %v1082 = vld [vmem:[%s286 + $0x16b8] sm:$0xff]
        %v1083 = vld [vmem:[%s286 + $0x16c0] sm:$0xff]
        %v1084 = vld [vmem:[%s286 + $0x16c8] sm:$0xff]
        %v1085 = vld [vmem:[%s286 + $0x16d0] sm:$0xff]
        %v1086 = vld [vmem:[%s286 + $0x16d8] sm:$0xff]
        %v1087 = vld [vmem:[%s286 + $0x16e0] sm:$0xff]
        %v1088 = vld [vmem:[%s286 + $0x16e8] sm:$0xff]
        %v1089 = vld [vmem:[%s286 + $0x16f0] sm:$0xff]
        %v1090 = vld [vmem:[%s286 + $0x16f8] sm:$0xff]
        %v1091 = vld [vmem:[%s286 + $0x1700] sm:$0xff]
        %v1092 = vld [vmem:[%s286 + $0x1708] sm:$0xff]
        %v1093 = vld [vmem:[%s286 + $0x1710] sm:$0xff]
        %v1094 = vld [vmem:[%s286 + $0x1718] sm:$0xff]
        %v1095 = vld [vmem:[%s286 + $0x1720] sm:$0xff]
        %v1096 = vld [vmem:[%s286 + $0x1728] sm:$0xff]
        %v1097 = vld [vmem:[%s286 + $0x1730] sm:$0xff]
        %v1098 = vld [vmem:[%s286 + $0x1738] sm:$0xff]
        %v1099 = vld [vmem:[%s286 + $0x1740] sm:$0xff]
        %v1100 = vld [vmem:[%s286 + $0x1748] sm:$0xff]
        %v1101 = vld [vmem:[%s286 + $0x1750] sm:$0xff]
        %v1102 = vld [vmem:[%s286 + $0x1758] sm:$0xff]
        %v1103 = vld [vmem:[%s286 + $0x1760] sm:$0xff]
        %v1104 = vld [vmem:[%s286 + $0x1768] sm:$0xff]
        %v1105 = vld [vmem:[%s286 + $0x1770] sm:$0xff]
        %v1106 = vld [vmem:[%s286 + $0x1778] sm:$0xff]
        %v1107 = vld [vmem:[%s286 + $0x1780] sm:$0xff]
        %v1108 = vld [vmem:[%s286 + $0x1788] sm:$0xff]
        %v1109 = vld [vmem:[%s286 + $0x1790] sm:$0xff]
        %v1110 = vld [vmem:[%s286 + $0x1798] sm:$0xff]
        %v1111 = vld [vmem:[%s286 + $0x17a0] sm:$0xff]
        %v1112 = vld [vmem:[%s286 + $0x17a8] sm:$0xff]
        %v1113 = vld [vmem:[%s286 + $0x17b0] sm:$0xff]
        %v1114 = vld [vmem:[%s286 + $0x17b8] sm:$0xff]
        %v1115 = vld [vmem:[%s286 + $0x17c0] sm:$0xff]
        %v1116 = vld [vmem:[%s286 + $0x17c8] sm:$0xff]
        %v1117 = vld [vmem:[%s286 + $0x17d0] sm:$0xff]
        %v1118 = vld [vmem:[%s286 + $0x17d8] sm:$0xff]
        %v1119 = vld [vmem:[%s286 + $0x17e0] sm:$0xff]
        %v1120 = vld [vmem:[%s286 + $0x17e8] sm:$0xff]
        %v1121 = vld [vmem:[%s286 + $0x17f0] sm:$0xff]
        %v1122 = vld [vmem:[%s286 + $0x17f8] sm:$0xff]
        %v1123 = vld [vmem:[%s286 + $0x1800] sm:$0xff]
        %v1124 = vld [vmem:[%s286 + $0x1808] sm:$0xff]
        %v1125 = vld [vmem:[%s286 + $0x1810] sm:$0xff]
        %v1126 = vld [vmem:[%s286 + $0x1818] sm:$0xff]
        %v1127 = vld [vmem:[%s286 + $0x1820] sm:$0xff]
        %v1128 = vld [vmem:[%s286 + $0x1828] sm:$0xff]
        %v1129 = vld [vmem:[%s286 + $0x1830] sm:$0xff]
        %v1130 = vld [vmem:[%s286 + $0x1838] sm:$0xff]
        %v1131 = vld [vmem:[%s286 + $0x1840] sm:$0xff]
        %v1132 = vld [vmem:[%s286 + $0x1848] sm:$0xff]
        %v1133 = vld [vmem:[%s286 + $0x1850] sm:$0xff]
        %v1134 = vld [vmem:[%s286 + $0x1858] sm:$0xff]
        %v1135 = vld [vmem:[%s286 + $0x1860] sm:$0xff]
        %v1136 = vld [vmem:[%s286 + $0x1868] sm:$0xff]
        %v1137 = vld [vmem:[%s286 + $0x1870] sm:$0xff]
        %v1138 = vld [vmem:[%s286 + $0x1878] sm:$0xff]
        %v1139 = vunpack.c.l.s8.bf16 %v355
        %v1140 = vunpack.c.l.s8.bf16 %v356
        %v1141 = vunpack.c.l.s8.bf16 %v357
        %v1142 = vunpack.c.l.s8.bf16 %v358
        %v1143 = vunpack.c.h.s8.bf16 %v355
        %v1144 = vunpack.c.h.s8.bf16 %v356
        %v1145 = vunpack.c.h.s8.bf16 %v357
        %v1146 = vunpack.c.h.s8.bf16 %v358
        %v1147 = vunpack.c.l.s8.bf16 %v359
        %v1148 = vunpack.c.l.s8.bf16 %v360
        %v1149 = vunpack.c.l.s8.bf16 %v361
        %v1150 = vunpack.c.l.s8.bf16 %v362
        %v1151 = vunpack.c.h.s8.bf16 %v359
        %v1152 = vunpack.c.h.s8.bf16 %v360
        %v1153 = vunpack.c.h.s8.bf16 %v361
        %v1154 = vunpack.c.h.s8.bf16 %v362
        %v1155 = vunpack.c.l.s8.bf16 %v363
        %v1156 = vunpack.c.l.s8.bf16 %v364
        %v1157 = vunpack.c.l.s8.bf16 %v365
        %v1158 = vunpack.c.l.s8.bf16 %v366
        %v1159 = vunpack.c.h.s8.bf16 %v363
        %v1160 = vunpack.c.h.s8.bf16 %v364
        %v1161 = vunpack.c.h.s8.bf16 %v365
        %v1162 = vunpack.c.h.s8.bf16 %v366
        %v1163 = vunpack.c.l.s8.bf16 %v367
        %v1164 = vunpack.c.l.s8.bf16 %v368
        %v1165 = vunpack.c.l.s8.bf16 %v369
        %v1166 = vunpack.c.l.s8.bf16 %v370
        %v1167 = vunpack.c.h.s8.bf16 %v367
        %v1168 = vunpack.c.h.s8.bf16 %v368
        %v1169 = vunpack.c.h.s8.bf16 %v369
        %v1170 = vunpack.c.h.s8.bf16 %v370
        %v1171 = vunpack.c.l.s8.bf16 %v371
        %v1172 = vunpack.c.l.s8.bf16 %v372
        %v1173 = vunpack.c.l.s8.bf16 %v373
        %v1174 = vunpack.c.l.s8.bf16 %v374
        %v1175 = vunpack.c.h.s8.bf16 %v371
        %v1176 = vunpack.c.h.s8.bf16 %v372
        %v1177 = vunpack.c.h.s8.bf16 %v373
        %v1178 = vunpack.c.h.s8.bf16 %v374
        %v1179 = vunpack.c.l.s8.bf16 %v375
        %v1180 = vunpack.c.l.s8.bf16 %v376
        %v1181 = vunpack.c.l.s8.bf16 %v377
        %v1182 = vunpack.c.l.s8.bf16 %v378
        %v1183 = vunpack.c.h.s8.bf16 %v375
        %v1184 = vunpack.c.h.s8.bf16 %v376
        %v1185 = vunpack.c.h.s8.bf16 %v377
        %v1186 = vunpack.c.h.s8.bf16 %v378
        %v1187 = vunpack.c.l.s8.bf16 %v379
        %v1188 = vunpack.c.l.s8.bf16 %v380
        %v1189 = vunpack.c.l.s8.bf16 %v381
        %v1190 = vunpack.c.l.s8.bf16 %v382
        %v1191 = vunpack.c.h.s8.bf16 %v379
        %v1192 = vunpack.c.h.s8.bf16 %v380
        %v1193 = vunpack.c.h.s8.bf16 %v381
        %v1194 = vunpack.c.h.s8.bf16 %v382
        %v1195 = vunpack.c.l.s8.bf16 %v383
        %v1196 = vunpack.c.l.s8.bf16 %v384
        %v1197 = vunpack.c.l.s8.bf16 %v385
        %v1198 = vunpack.c.l.s8.bf16 %v386
        %v1199 = vunpack.c.h.s8.bf16 %v383
        %v1200 = vunpack.c.h.s8.bf16 %v384
        %v1201 = vunpack.c.h.s8.bf16 %v385
        %v1202 = vunpack.c.h.s8.bf16 %v386
        %v1203 = vunpack.c.l.s8.bf16 %v387
        %v1204 = vunpack.c.l.s8.bf16 %v388
        %v1205 = vunpack.c.l.s8.bf16 %v389
        %v1206 = vunpack.c.l.s8.bf16 %v390
        %v1207 = vunpack.c.h.s8.bf16 %v387
        %v1208 = vunpack.c.h.s8.bf16 %v388
        %v1209 = vunpack.c.h.s8.bf16 %v389
        %v1210 = vunpack.c.h.s8.bf16 %v390
        %v1211 = vunpack.c.l.s8.bf16 %v391
        %v1212 = vunpack.c.l.s8.bf16 %v392
        %v1213 = vunpack.c.l.s8.bf16 %v393
        %v1214 = vunpack.c.l.s8.bf16 %v394
        %v1215 = vunpack.c.h.s8.bf16 %v391
        %v1216 = vunpack.c.h.s8.bf16 %v392
        %v1217 = vunpack.c.h.s8.bf16 %v393
        %v1218 = vunpack.c.h.s8.bf16 %v394
        %v1219 = vunpack.c.l.s8.bf16 %v395
        %v1220 = vunpack.c.l.s8.bf16 %v396
        %v1221 = vunpack.c.l.s8.bf16 %v397
        %v1222 = vunpack.c.l.s8.bf16 %v398
        %v1223 = vunpack.c.h.s8.bf16 %v395
        %v1224 = vunpack.c.h.s8.bf16 %v396
        %v1225 = vunpack.c.h.s8.bf16 %v397
        %v1226 = vunpack.c.h.s8.bf16 %v398
        %v1227 = vunpack.c.l.s8.bf16 %v399
        %v1228 = vunpack.c.l.s8.bf16 %v400
        %v1229 = vunpack.c.l.s8.bf16 %v401
        %v1230 = vunpack.c.l.s8.bf16 %v402
        %v1231 = vunpack.c.h.s8.bf16 %v399
        %v1232 = vunpack.c.h.s8.bf16 %v400
        %v1233 = vunpack.c.h.s8.bf16 %v401
        %v1234 = vunpack.c.h.s8.bf16 %v402
        %v1235 = vunpack.c.l.s8.bf16 %v403
        %v1236 = vunpack.c.l.s8.bf16 %v404
        %v1237 = vunpack.c.l.s8.bf16 %v405
        %v1238 = vunpack.c.l.s8.bf16 %v406
        %v1239 = vunpack.c.h.s8.bf16 %v403
        %v1240 = vunpack.c.h.s8.bf16 %v404
        %v1241 = vunpack.c.h.s8.bf16 %v405
        %v1242 = vunpack.c.h.s8.bf16 %v406
        %v1243 = vunpack.c.l.s8.bf16 %v407
        %v1244 = vunpack.c.l.s8.bf16 %v408
        %v1245 = vunpack.c.l.s8.bf16 %v409
        %v1246 = vunpack.c.l.s8.bf16 %v410
        %v1247 = vunpack.c.h.s8.bf16 %v407
        %v1248 = vunpack.c.h.s8.bf16 %v408
        %v1249 = vunpack.c.h.s8.bf16 %v409
        %v1250 = vunpack.c.h.s8.bf16 %v410
        %v1251 = vunpack.c.l.s8.bf16 %v411
        %v1252 = vunpack.c.l.s8.bf16 %v412
        %v1253 = vunpack.c.l.s8.bf16 %v413
        %v1254 = vunpack.c.l.s8.bf16 %v414
        %v1255 = vunpack.c.h.s8.bf16 %v411
        %v1256 = vunpack.c.h.s8.bf16 %v412
        %v1257 = vunpack.c.h.s8.bf16 %v413
        %v1258 = vunpack.c.h.s8.bf16 %v414
        %v1259 = vunpack.c.l.s8.bf16 %v415
        %v1260 = vunpack.c.l.s8.bf16 %v416
        %v1261 = vunpack.c.l.s8.bf16 %v417
        %v1262 = vunpack.c.l.s8.bf16 %v418
        %v1263 = vunpack.c.h.s8.bf16 %v415
        %v1264 = vunpack.c.h.s8.bf16 %v416
        %v1265 = vunpack.c.h.s8.bf16 %v417
        %v1266 = vunpack.c.h.s8.bf16 %v418
        %v1267 = vunpack.c.l.s8.bf16 %v419
        %v1268 = vunpack.c.l.s8.bf16 %v420
        %v1269 = vunpack.c.l.s8.bf16 %v421
        %v1270 = vunpack.c.l.s8.bf16 %v422
        %v1271 = vunpack.c.h.s8.bf16 %v419
        %v1272 = vunpack.c.h.s8.bf16 %v420
        %v1273 = vunpack.c.h.s8.bf16 %v421
        %v1274 = vunpack.c.h.s8.bf16 %v422
        %v1275 = vunpack.c.l.s8.bf16 %v423
        %v1276 = vunpack.c.l.s8.bf16 %v424
        %v1277 = vunpack.c.l.s8.bf16 %v425
        %v1278 = vunpack.c.l.s8.bf16 %v426
        %v1279 = vunpack.c.h.s8.bf16 %v423
        %v1280 = vunpack.c.h.s8.bf16 %v424
        %v1281 = vunpack.c.h.s8.bf16 %v425
        %v1282 = vunpack.c.h.s8.bf16 %v426
        %v1283 = vunpack.c.l.s8.bf16 %v427
        %v1284 = vunpack.c.l.s8.bf16 %v428
        %v1285 = vunpack.c.l.s8.bf16 %v429
        %v1286 = vunpack.c.l.s8.bf16 %v430
        %v1287 = vunpack.c.h.s8.bf16 %v427
        %v1288 = vunpack.c.h.s8.bf16 %v428
        %v1289 = vunpack.c.h.s8.bf16 %v429
        %v1290 = vunpack.c.h.s8.bf16 %v430
        %v1291 = vunpack.c.l.s8.bf16 %v431
        %v1292 = vunpack.c.l.s8.bf16 %v432
        %v1293 = vunpack.c.l.s8.bf16 %v433
        %v1294 = vunpack.c.l.s8.bf16 %v434
        %v1295 = vunpack.c.h.s8.bf16 %v431
        %v1296 = vunpack.c.h.s8.bf16 %v432
        %v1297 = vunpack.c.h.s8.bf16 %v433
        %v1298 = vunpack.c.h.s8.bf16 %v434
        %v1299 = vunpack.c.l.s8.bf16 %v435
        %v1300 = vunpack.c.l.s8.bf16 %v436
        %v1301 = vunpack.c.l.s8.bf16 %v437
        %v1302 = vunpack.c.l.s8.bf16 %v438
        %v1303 = vunpack.c.h.s8.bf16 %v435
        %v1304 = vunpack.c.h.s8.bf16 %v436
        %v1305 = vunpack.c.h.s8.bf16 %v437
        %v1306 = vunpack.c.h.s8.bf16 %v438
        %v1307 = vunpack.c.l.s8.bf16 %v439
        %v1308 = vunpack.c.l.s8.bf16 %v440
        %v1309 = vunpack.c.l.s8.bf16 %v441
        %v1310 = vunpack.c.l.s8.bf16 %v442
        %v1311 = vunpack.c.h.s8.bf16 %v439
        %v1312 = vunpack.c.h.s8.bf16 %v440
        %v1313 = vunpack.c.h.s8.bf16 %v441
        %v1314 = vunpack.c.h.s8.bf16 %v442
        %v1315 = vunpack.c.l.s8.bf16 %v443
        %v1316 = vunpack.c.l.s8.bf16 %v444
        %v1317 = vunpack.c.l.s8.bf16 %v445
        %v1318 = vunpack.c.l.s8.bf16 %v446
        %v1319 = vunpack.c.h.s8.bf16 %v443
        %v1320 = vunpack.c.h.s8.bf16 %v444
        %v1321 = vunpack.c.h.s8.bf16 %v445
        %v1322 = vunpack.c.h.s8.bf16 %v446
        %v1323 = vunpack.c.l.s8.bf16 %v447
        %v1324 = vunpack.c.l.s8.bf16 %v448
        %v1325 = vunpack.c.l.s8.bf16 %v449
        %v1326 = vunpack.c.l.s8.bf16 %v450
        %v1327 = vunpack.c.h.s8.bf16 %v447
        %v1328 = vunpack.c.h.s8.bf16 %v448
        %v1329 = vunpack.c.h.s8.bf16 %v449
        %v1330 = vunpack.c.h.s8.bf16 %v450
        %v1331 = vunpack.c.l.s8.bf16 %v451
        %v1332 = vunpack.c.l.s8.bf16 %v452
        %v1333 = vunpack.c.l.s8.bf16 %v453
        %v1334 = vunpack.c.l.s8.bf16 %v454
        %v1335 = vunpack.c.h.s8.bf16 %v451
        %v1336 = vunpack.c.h.s8.bf16 %v452
        %v1337 = vunpack.c.h.s8.bf16 %v453
        %v1338 = vunpack.c.h.s8.bf16 %v454
        %v1339 = vunpack.c.l.s8.bf16 %v455
        %v1340 = vunpack.c.l.s8.bf16 %v456
        %v1341 = vunpack.c.l.s8.bf16 %v457
        %v1342 = vunpack.c.l.s8.bf16 %v458
        %v1343 = vunpack.c.h.s8.bf16 %v455
        %v1344 = vunpack.c.h.s8.bf16 %v456
        %v1345 = vunpack.c.h.s8.bf16 %v457
        %v1346 = vunpack.c.h.s8.bf16 %v458
        %v1347 = vunpack.c.l.s8.bf16 %v459
        %v1348 = vunpack.c.l.s8.bf16 %v460
        %v1349 = vunpack.c.l.s8.bf16 %v461
        %v1350 = vunpack.c.l.s8.bf16 %v462
        %v1351 = vunpack.c.h.s8.bf16 %v459
        %v1352 = vunpack.c.h.s8.bf16 %v460
        %v1353 = vunpack.c.h.s8.bf16 %v461
        %v1354 = vunpack.c.h.s8.bf16 %v462
        %v1355 = vunpack.c.l.s8.bf16 %v463
        %v1356 = vunpack.c.l.s8.bf16 %v464
        %v1357 = vunpack.c.l.s8.bf16 %v465
        %v1358 = vunpack.c.l.s8.bf16 %v466
        %v1359 = vunpack.c.h.s8.bf16 %v463
        %v1360 = vunpack.c.h.s8.bf16 %v464
        %v1361 = vunpack.c.h.s8.bf16 %v465
        %v1362 = vunpack.c.h.s8.bf16 %v466
        %v1363 = vunpack.c.l.s8.bf16 %v467
        %v1364 = vunpack.c.l.s8.bf16 %v468
        %v1365 = vunpack.c.l.s8.bf16 %v469
        %v1366 = vunpack.c.l.s8.bf16 %v470
        %v1367 = vunpack.c.h.s8.bf16 %v467
        %v1368 = vunpack.c.h.s8.bf16 %v468
        %v1369 = vunpack.c.h.s8.bf16 %v469
        %v1370 = vunpack.c.h.s8.bf16 %v470
        %v1371 = vunpack.c.l.s8.bf16 %v471
        %v1372 = vunpack.c.l.s8.bf16 %v472
        %v1373 = vunpack.c.l.s8.bf16 %v473
        %v1374 = vunpack.c.l.s8.bf16 %v474
        %v1375 = vunpack.c.h.s8.bf16 %v471
        %v1376 = vunpack.c.h.s8.bf16 %v472
        %v1377 = vunpack.c.h.s8.bf16 %v473
        %v1378 = vunpack.c.h.s8.bf16 %v474
        %v1379 = vunpack.c.l.s8.bf16 %v475
        %v1380 = vunpack.c.l.s8.bf16 %v476
        %v1381 = vunpack.c.l.s8.bf16 %v477
        %v1382 = vunpack.c.l.s8.bf16 %v478
        %v1383 = vunpack.c.h.s8.bf16 %v475
        %v1384 = vunpack.c.h.s8.bf16 %v476
        %v1385 = vunpack.c.h.s8.bf16 %v477
        %v1386 = vunpack.c.h.s8.bf16 %v478
        %v1387 = vunpack.c.l.s8.bf16 %v479
        %v1388 = vunpack.c.l.s8.bf16 %v480
        %v1389 = vunpack.c.l.s8.bf16 %v481
        %v1390 = vunpack.c.l.s8.bf16 %v482
        %v1391 = vunpack.c.h.s8.bf16 %v479
        %v1392 = vunpack.c.h.s8.bf16 %v480
        %v1393 = vunpack.c.h.s8.bf16 %v481
        %v1394 = vunpack.c.h.s8.bf16 %v482
        %v1395 = vunpack.c.l.s8.bf16 %v483
        %v1396 = vunpack.c.l.s8.bf16 %v484
        %v1397 = vunpack.c.l.s8.bf16 %v485
        %v1398 = vunpack.c.l.s8.bf16 %v486
        %v1399 = vunpack.c.h.s8.bf16 %v483
        %v1400 = vunpack.c.h.s8.bf16 %v484
        %v1401 = vunpack.c.h.s8.bf16 %v485
        %v1402 = vunpack.c.h.s8.bf16 %v486
        %v1403 = vunpack.c.l.s8.bf16 %v487
        %v1404 = vunpack.c.l.s8.bf16 %v488
        %v1405 = vunpack.c.l.s8.bf16 %v489
        %v1406 = vunpack.c.l.s8.bf16 %v490
        %v1407 = vunpack.c.h.s8.bf16 %v487
        %v1408 = vunpack.c.h.s8.bf16 %v488
        %v1409 = vunpack.c.h.s8.bf16 %v489
        %v1410 = vunpack.c.h.s8.bf16 %v490
        %v1411 = vunpack.c.l.s8.bf16 %v491
        %v1412 = vunpack.c.l.s8.bf16 %v492
        %v1413 = vunpack.c.l.s8.bf16 %v493
        %v1414 = vunpack.c.l.s8.bf16 %v494
        %v1415 = vunpack.c.h.s8.bf16 %v491
        %v1416 = vunpack.c.h.s8.bf16 %v492
        %v1417 = vunpack.c.h.s8.bf16 %v493
        %v1418 = vunpack.c.h.s8.bf16 %v494
        %v1419 = vunpack.c.l.s8.bf16 %v495
        %v1420 = vunpack.c.l.s8.bf16 %v496
        %v1421 = vunpack.c.l.s8.bf16 %v497
        %v1422 = vunpack.c.l.s8.bf16 %v498
        %v1423 = vunpack.c.h.s8.bf16 %v495
        %v1424 = vunpack.c.h.s8.bf16 %v496
        %v1425 = vunpack.c.h.s8.bf16 %v497
        %v1426 = vunpack.c.h.s8.bf16 %v498
        %v1427 = vunpack.c.l.s8.bf16 %v499
        %v1428 = vunpack.c.l.s8.bf16 %v500
        %v1429 = vunpack.c.l.s8.bf16 %v501
        %v1430 = vunpack.c.l.s8.bf16 %v502
        %v1431 = vunpack.c.h.s8.bf16 %v499
        %v1432 = vunpack.c.h.s8.bf16 %v500
        %v1433 = vunpack.c.h.s8.bf16 %v501
        %v1434 = vunpack.c.h.s8.bf16 %v502
        %v1435 = vunpack.c.l.s8.bf16 %v503
        %v1436 = vunpack.c.l.s8.bf16 %v504
        %v1437 = vunpack.c.l.s8.bf16 %v505
        %v1438 = vunpack.c.l.s8.bf16 %v506
        %v1439 = vunpack.c.h.s8.bf16 %v503
        %v1440 = vunpack.c.h.s8.bf16 %v504
        %v1441 = vunpack.c.h.s8.bf16 %v505
        %v1442 = vunpack.c.h.s8.bf16 %v506
        %v1443 = vunpack.c.l.s8.bf16 %v507
        %v1444 = vunpack.c.l.s8.bf16 %v508
        %v1445 = vunpack.c.l.s8.bf16 %v509
        %v1446 = vunpack.c.l.s8.bf16 %v510
        %v1447 = vunpack.c.h.s8.bf16 %v507
        %v1448 = vunpack.c.h.s8.bf16 %v508
        %v1449 = vunpack.c.h.s8.bf16 %v509
        %v1450 = vunpack.c.h.s8.bf16 %v510
        %v1451 = vunpack.c.l.s8.bf16 %v511
        %v1452 = vunpack.c.l.s8.bf16 %v512
        %v1453 = vunpack.c.l.s8.bf16 %v513
        %v1454 = vunpack.c.l.s8.bf16 %v514
        %v1455 = vunpack.c.h.s8.bf16 %v511
        %v1456 = vunpack.c.h.s8.bf16 %v512
        %v1457 = vunpack.c.h.s8.bf16 %v513
        %v1458 = vunpack.c.h.s8.bf16 %v514
        %v1459 = vunpack.c.l.s8.bf16 %v515
        %v1460 = vunpack.c.l.s8.bf16 %v516
        %v1461 = vunpack.c.l.s8.bf16 %v517
        %v1462 = vunpack.c.l.s8.bf16 %v518
        %v1463 = vunpack.c.h.s8.bf16 %v515
        %v1464 = vunpack.c.h.s8.bf16 %v516
        %v1465 = vunpack.c.h.s8.bf16 %v517
        %v1466 = vunpack.c.h.s8.bf16 %v518
        %v1467 = vunpack.c.l.s8.bf16 %v519
        %v1468 = vunpack.c.l.s8.bf16 %v520
        %v1469 = vunpack.c.l.s8.bf16 %v521
        %v1470 = vunpack.c.l.s8.bf16 %v522
        %v1471 = vunpack.c.h.s8.bf16 %v519
        %v1472 = vunpack.c.h.s8.bf16 %v520
        %v1473 = vunpack.c.h.s8.bf16 %v521
        %v1474 = vunpack.c.h.s8.bf16 %v522
        %v1475 = vunpack.c.l.s8.bf16 %v523
        %v1476 = vunpack.c.l.s8.bf16 %v524
        %v1477 = vunpack.c.l.s8.bf16 %v525
        %v1478 = vunpack.c.l.s8.bf16 %v526
        %v1479 = vunpack.c.h.s8.bf16 %v523
        %v1480 = vunpack.c.h.s8.bf16 %v524
        %v1481 = vunpack.c.h.s8.bf16 %v525
        %v1482 = vunpack.c.h.s8.bf16 %v526
        %v1483 = vunpack.c.l.s8.bf16 %v527
        %v1484 = vunpack.c.l.s8.bf16 %v528
        %v1485 = vunpack.c.l.s8.bf16 %v529
        %v1486 = vunpack.c.l.s8.bf16 %v530
        %v1487 = vunpack.c.h.s8.bf16 %v527
        %v1488 = vunpack.c.h.s8.bf16 %v528
        %v1489 = vunpack.c.h.s8.bf16 %v529
        %v1490 = vunpack.c.h.s8.bf16 %v530
        %v1491 = vunpack.c.l.s8.bf16 %v531
        %v1492 = vunpack.c.l.s8.bf16 %v532
        %v1493 = vunpack.c.l.s8.bf16 %v533
        %v1494 = vunpack.c.l.s8.bf16 %v534
        %v1495 = vunpack.c.h.s8.bf16 %v531
        %v1496 = vunpack.c.h.s8.bf16 %v532
        %v1497 = vunpack.c.h.s8.bf16 %v533
        %v1498 = vunpack.c.h.s8.bf16 %v534
        %v1499 = vunpack.c.l.s8.bf16 %v535
        %v1500 = vunpack.c.l.s8.bf16 %v536
        %v1501 = vunpack.c.l.s8.bf16 %v537
        %v1502 = vunpack.c.l.s8.bf16 %v538
        %v1503 = vunpack.c.h.s8.bf16 %v535
        %v1504 = vunpack.c.h.s8.bf16 %v536
        %v1505 = vunpack.c.h.s8.bf16 %v537
        %v1506 = vunpack.c.h.s8.bf16 %v538
        %v1507 = vunpack.c.l.s8.bf16 %v539
        %v1508 = vunpack.c.l.s8.bf16 %v540
        %v1509 = vunpack.c.l.s8.bf16 %v541
        %v1510 = vunpack.c.l.s8.bf16 %v542
        %v1511 = vunpack.c.h.s8.bf16 %v539
        %v1512 = vunpack.c.h.s8.bf16 %v540
        %v1513 = vunpack.c.h.s8.bf16 %v541
        %v1514 = vunpack.c.h.s8.bf16 %v542
        %v1515 = vunpack.c.l.s8.bf16 %v543
        %v1516 = vunpack.c.l.s8.bf16 %v544
        %v1517 = vunpack.c.l.s8.bf16 %v545
        %v1518 = vunpack.c.l.s8.bf16 %v546
        %v1519 = vunpack.c.h.s8.bf16 %v543
        %v1520 = vunpack.c.h.s8.bf16 %v544
        %v1521 = vunpack.c.h.s8.bf16 %v545
        %v1522 = vunpack.c.h.s8.bf16 %v546
        %v1523 = vunpack.c.l.s8.bf16 %v547
        %v1524 = vunpack.c.l.s8.bf16 %v548
        %v1525 = vunpack.c.l.s8.bf16 %v549
        %v1526 = vunpack.c.l.s8.bf16 %v550
        %v1527 = vunpack.c.h.s8.bf16 %v547
        %v1528 = vunpack.c.h.s8.bf16 %v548
        %v1529 = vunpack.c.h.s8.bf16 %v549
        %v1530 = vunpack.c.h.s8.bf16 %v550
        %v1531 = vunpack.c.l.s8.bf16 %v551
        %v1532 = vunpack.c.l.s8.bf16 %v552
        %v1533 = vunpack.c.l.s8.bf16 %v553
        %v1534 = vunpack.c.l.s8.bf16 %v554
        %v1535 = vunpack.c.h.s8.bf16 %v551
        %v1536 = vunpack.c.h.s8.bf16 %v552
        %v1537 = vunpack.c.h.s8.bf16 %v553
        %v1538 = vunpack.c.h.s8.bf16 %v554
        %v1539 = vunpack.c.l.s8.bf16 %v555
        %v1540 = vunpack.c.l.s8.bf16 %v556
        %v1541 = vunpack.c.l.s8.bf16 %v557
        %v1542 = vunpack.c.l.s8.bf16 %v558
        %v1543 = vunpack.c.h.s8.bf16 %v555
        %v1544 = vunpack.c.h.s8.bf16 %v556
        %v1545 = vunpack.c.h.s8.bf16 %v557
        %v1546 = vunpack.c.h.s8.bf16 %v558
        %v1547 = vunpack.c.l.s8.bf16 %v559
        %v1548 = vunpack.c.l.s8.bf16 %v560
        %v1549 = vunpack.c.l.s8.bf16 %v561
        %v1550 = vunpack.c.l.s8.bf16 %v562
        %v1551 = vunpack.c.h.s8.bf16 %v559
        %v1552 = vunpack.c.h.s8.bf16 %v560
        %v1553 = vunpack.c.h.s8.bf16 %v561
        %v1554 = vunpack.c.h.s8.bf16 %v562
        %v1555 = vunpack.c.l.s8.bf16 %v563
        %v1556 = vunpack.c.l.s8.bf16 %v564
        %v1557 = vunpack.c.l.s8.bf16 %v565
        %v1558 = vunpack.c.l.s8.bf16 %v566
        %v1559 = vunpack.c.h.s8.bf16 %v563
        %v1560 = vunpack.c.h.s8.bf16 %v564
        %v1561 = vunpack.c.h.s8.bf16 %v565
        %v1562 = vunpack.c.h.s8.bf16 %v566
        %v1563 = vunpack.c.l.s8.bf16 %v567
        %v1564 = vunpack.c.l.s8.bf16 %v568
        %v1565 = vunpack.c.l.s8.bf16 %v569
        %v1566 = vunpack.c.l.s8.bf16 %v570
        %v1567 = vunpack.c.h.s8.bf16 %v567
        %v1568 = vunpack.c.h.s8.bf16 %v568
        %v1569 = vunpack.c.h.s8.bf16 %v569
        %v1570 = vunpack.c.h.s8.bf16 %v570
        %v1571 = vunpack.c.l.s8.bf16 %v571
        %v1572 = vunpack.c.l.s8.bf16 %v572
        %v1573 = vunpack.c.l.s8.bf16 %v573
        %v1574 = vunpack.c.l.s8.bf16 %v574
        %v1575 = vunpack.c.h.s8.bf16 %v571
        %v1576 = vunpack.c.h.s8.bf16 %v572
        %v1577 = vunpack.c.h.s8.bf16 %v573
        %v1578 = vunpack.c.h.s8.bf16 %v574
        %v1579 = vunpack.c.l.s8.bf16 %v575
        %v1580 = vunpack.c.l.s8.bf16 %v576
        %v1581 = vunpack.c.l.s8.bf16 %v577
        %v1582 = vunpack.c.l.s8.bf16 %v578
        %v1583 = vunpack.c.h.s8.bf16 %v575
        %v1584 = vunpack.c.h.s8.bf16 %v576
        %v1585 = vunpack.c.h.s8.bf16 %v577
        %v1586 = vunpack.c.h.s8.bf16 %v578
        %v1587 = vunpack.c.l.s8.bf16 %v579
        %v1588 = vunpack.c.l.s8.bf16 %v580
        %v1589 = vunpack.c.l.s8.bf16 %v581
        %v1590 = vunpack.c.l.s8.bf16 %v582
        %v1591 = vunpack.c.h.s8.bf16 %v579
        %v1592 = vunpack.c.h.s8.bf16 %v580
        %v1593 = vunpack.c.h.s8.bf16 %v581
        %v1594 = vunpack.c.h.s8.bf16 %v582
        %v1595 = vunpack.c.l.s8.bf16 %v583
        %v1596 = vunpack.c.l.s8.bf16 %v584
        %v1597 = vunpack.c.l.s8.bf16 %v585
        %v1598 = vunpack.c.l.s8.bf16 %v586
        %v1599 = vunpack.c.h.s8.bf16 %v583
        %v1600 = vunpack.c.h.s8.bf16 %v584
        %v1601 = vunpack.c.h.s8.bf16 %v585
        %v1602 = vunpack.c.h.s8.bf16 %v586
        %v1603 = vunpack.c.l.s8.bf16 %v587
        %v1604 = vunpack.c.l.s8.bf16 %v588
        %v1605 = vunpack.c.l.s8.bf16 %v589
        %v1606 = vunpack.c.l.s8.bf16 %v590
        %v1607 = vunpack.c.h.s8.bf16 %v587
        %v1608 = vunpack.c.h.s8.bf16 %v588
        %v1609 = vunpack.c.h.s8.bf16 %v589
        %v1610 = vunpack.c.h.s8.bf16 %v590
        %v1611 = vunpack.c.l.s8.bf16 %v591
        %v1612 = vunpack.c.l.s8.bf16 %v592
        %v1613 = vunpack.c.l.s8.bf16 %v593
        %v1614 = vunpack.c.l.s8.bf16 %v594
        %v1615 = vunpack.c.h.s8.bf16 %v591
        %v1616 = vunpack.c.h.s8.bf16 %v592
        %v1617 = vunpack.c.h.s8.bf16 %v593
        %v1618 = vunpack.c.h.s8.bf16 %v594
        %v1619 = vunpack.c.l.s8.bf16 %v595
        %v1620 = vunpack.c.l.s8.bf16 %v596
        %v1621 = vunpack.c.l.s8.bf16 %v597
        %v1622 = vunpack.c.l.s8.bf16 %v598
        %v1623 = vunpack.c.h.s8.bf16 %v595
        %v1624 = vunpack.c.h.s8.bf16 %v596
        %v1625 = vunpack.c.h.s8.bf16 %v597
        %v1626 = vunpack.c.h.s8.bf16 %v598
        %v1627 = vunpack.c.l.s8.bf16 %v599
        %v1628 = vunpack.c.l.s8.bf16 %v600
        %v1629 = vunpack.c.l.s8.bf16 %v601
        %v1630 = vunpack.c.l.s8.bf16 %v602
        %v1631 = vunpack.c.h.s8.bf16 %v599
        %v1632 = vunpack.c.h.s8.bf16 %v600
        %v1633 = vunpack.c.h.s8.bf16 %v601
        %v1634 = vunpack.c.h.s8.bf16 %v602
        %v1635 = vunpack.c.l.s8.bf16 %v603
        %v1636 = vunpack.c.l.s8.bf16 %v604
        %v1637 = vunpack.c.l.s8.bf16 %v605
        %v1638 = vunpack.c.l.s8.bf16 %v606
        %v1639 = vunpack.c.h.s8.bf16 %v603
        %v1640 = vunpack.c.h.s8.bf16 %v604
        %v1641 = vunpack.c.h.s8.bf16 %v605
        %v1642 = vunpack.c.h.s8.bf16 %v606
        %v1643 = vunpack.c.l.s8.bf16 %v607
        %v1644 = vunpack.c.l.s8.bf16 %v608
        %v1645 = vunpack.c.l.s8.bf16 %v609
        %v1646 = vunpack.c.l.s8.bf16 %v610
        %v1647 = vunpack.c.h.s8.bf16 %v607
        %v1648 = vunpack.c.h.s8.bf16 %v608
        %v1649 = vunpack.c.h.s8.bf16 %v609
        %v1650 = vunpack.c.h.s8.bf16 %v610
        %v1651 = vunpack.c.l.s8.bf16 %v611
        %v1652 = vunpack.c.l.s8.bf16 %v612
        %v1653 = vunpack.c.l.s8.bf16 %v613
        %v1654 = vunpack.c.l.s8.bf16 %v614
        %v1655 = vunpack.c.h.s8.bf16 %v611
        %v1656 = vunpack.c.h.s8.bf16 %v612
        %v1657 = vunpack.c.h.s8.bf16 %v613
        %v1658 = vunpack.c.h.s8.bf16 %v614
        %v1659 = vunpack.c.l.s8.bf16 %v615
        %v1660 = vunpack.c.l.s8.bf16 %v616
        %v1661 = vunpack.c.l.s8.bf16 %v617
        %v1662 = vunpack.c.l.s8.bf16 %v618
        %v1663 = vunpack.c.h.s8.bf16 %v615
        %v1664 = vunpack.c.h.s8.bf16 %v616
        %v1665 = vunpack.c.h.s8.bf16 %v617
        %v1666 = vunpack.c.h.s8.bf16 %v618
        %v1667 = vunpack.c.l.s8.bf16 %v619
        %v1668 = vunpack.c.l.s8.bf16 %v620
        %v1669 = vunpack.c.l.s8.bf16 %v621
        %v1670 = vunpack.c.l.s8.bf16 %v622
        %v1671 = vunpack.c.h.s8.bf16 %v619
        %v1672 = vunpack.c.h.s8.bf16 %v620
        %v1673 = vunpack.c.h.s8.bf16 %v621
        %v1674 = vunpack.c.h.s8.bf16 %v622
        %v1675 = vunpack.c.l.s8.bf16 %v623
        %v1676 = vunpack.c.l.s8.bf16 %v624
        %v1677 = vunpack.c.l.s8.bf16 %v625
        %v1678 = vunpack.c.l.s8.bf16 %v626
        %v1679 = vunpack.c.h.s8.bf16 %v623
        %v1680 = vunpack.c.h.s8.bf16 %v624
        %v1681 = vunpack.c.h.s8.bf16 %v625
        %v1682 = vunpack.c.h.s8.bf16 %v626
        %v1683 = vunpack.c.l.s8.bf16 %v627
        %v1684 = vunpack.c.l.s8.bf16 %v628
        %v1685 = vunpack.c.l.s8.bf16 %v629
        %v1686 = vunpack.c.l.s8.bf16 %v630
        %v1687 = vunpack.c.h.s8.bf16 %v627
        %v1688 = vunpack.c.h.s8.bf16 %v628
        %v1689 = vunpack.c.h.s8.bf16 %v629
        %v1690 = vunpack.c.h.s8.bf16 %v630
        %v1691 = vunpack.c.l.s8.bf16 %v631
        %v1692 = vunpack.c.l.s8.bf16 %v632
        %v1693 = vunpack.c.l.s8.bf16 %v633
        %v1694 = vunpack.c.l.s8.bf16 %v634
        %v1695 = vunpack.c.h.s8.bf16 %v631
        %v1696 = vunpack.c.h.s8.bf16 %v632
        %v1697 = vunpack.c.h.s8.bf16 %v633
        %v1698 = vunpack.c.h.s8.bf16 %v634
        %v1699 = vunpack.c.l.s8.bf16 %v635
        %v1700 = vunpack.c.l.s8.bf16 %v636
        %v1701 = vunpack.c.l.s8.bf16 %v637
        %v1702 = vunpack.c.l.s8.bf16 %v638
        %v1703 = vunpack.c.h.s8.bf16 %v635
        %v1704 = vunpack.c.h.s8.bf16 %v636
        %v1705 = vunpack.c.h.s8.bf16 %v637
        %v1706 = vunpack.c.h.s8.bf16 %v638
        %v1707 = vunpack.c.l.s8.bf16 %v639
        %v1708 = vunpack.c.l.s8.bf16 %v640
        %v1709 = vunpack.c.l.s8.bf16 %v641
        %v1710 = vunpack.c.l.s8.bf16 %v642
        %v1711 = vunpack.c.h.s8.bf16 %v639
        %v1712 = vunpack.c.h.s8.bf16 %v640
        %v1713 = vunpack.c.h.s8.bf16 %v641
        %v1714 = vunpack.c.h.s8.bf16 %v642
        %v1715 = vunpack.c.l.s8.bf16 %v643
        %v1716 = vunpack.c.l.s8.bf16 %v644
        %v1717 = vunpack.c.l.s8.bf16 %v645
        %v1718 = vunpack.c.l.s8.bf16 %v646
        %v1719 = vunpack.c.h.s8.bf16 %v643
        %v1720 = vunpack.c.h.s8.bf16 %v644
        %v1721 = vunpack.c.h.s8.bf16 %v645
        %v1722 = vunpack.c.h.s8.bf16 %v646
        %v1723 = vunpack.c.l.s8.bf16 %v647
        %v1724 = vunpack.c.l.s8.bf16 %v648
        %v1725 = vunpack.c.l.s8.bf16 %v649
        %v1726 = vunpack.c.l.s8.bf16 %v650
        %v1727 = vunpack.c.h.s8.bf16 %v647
        %v1728 = vunpack.c.h.s8.bf16 %v648
        %v1729 = vunpack.c.h.s8.bf16 %v649
        %v1730 = vunpack.c.h.s8.bf16 %v650
        %v1731 = vunpack.c.l.s8.bf16 %v651
        %v1732 = vunpack.c.l.s8.bf16 %v652
        %v1733 = vunpack.c.l.s8.bf16 %v653
        %v1734 = vunpack.c.l.s8.bf16 %v654
        %v1735 = vunpack.c.h.s8.bf16 %v651
        %v1736 = vunpack.c.h.s8.bf16 %v652
        %v1737 = vunpack.c.h.s8.bf16 %v653
        %v1738 = vunpack.c.h.s8.bf16 %v654
        %v1739 = vunpack.c.l.s8.bf16 %v655
        %v1740 = vunpack.c.l.s8.bf16 %v656
        %v1741 = vunpack.c.l.s8.bf16 %v657
        %v1742 = vunpack.c.l.s8.bf16 %v658
        %v1743 = vunpack.c.h.s8.bf16 %v655
        %v1744 = vunpack.c.h.s8.bf16 %v656
        %v1745 = vunpack.c.h.s8.bf16 %v657
        %v1746 = vunpack.c.h.s8.bf16 %v658
        %v1747 = vunpack.c.l.s8.bf16 %v659
        %v1748 = vunpack.c.l.s8.bf16 %v660
        %v1749 = vunpack.c.l.s8.bf16 %v661
        %v1750 = vunpack.c.l.s8.bf16 %v662
        %v1751 = vunpack.c.h.s8.bf16 %v659
        %v1752 = vunpack.c.h.s8.bf16 %v660
        %v1753 = vunpack.c.h.s8.bf16 %v661
        %v1754 = vunpack.c.h.s8.bf16 %v662
        %v1755 = vunpack.c.l.s8.bf16 %v663
        %v1756 = vunpack.c.l.s8.bf16 %v664
        %v1757 = vunpack.c.l.s8.bf16 %v665
        %v1758 = vunpack.c.l.s8.bf16 %v666
        %v1759 = vunpack.c.h.s8.bf16 %v663
        %v1760 = vunpack.c.h.s8.bf16 %v664
        %v1761 = vunpack.c.h.s8.bf16 %v665
        %v1762 = vunpack.c.h.s8.bf16 %v666
        %v1763 = vunpack.c.l.s8.bf16 %v667
        %v1764 = vunpack.c.l.s8.bf16 %v668
        %v1765 = vunpack.c.l.s8.bf16 %v669
        %v1766 = vunpack.c.l.s8.bf16 %v670
        %v1767 = vunpack.c.h.s8.bf16 %v667
        %v1768 = vunpack.c.h.s8.bf16 %v668
        %v1769 = vunpack.c.h.s8.bf16 %v669
        %v1770 = vunpack.c.h.s8.bf16 %v670
        %v1771 = vunpack.c.l.s8.bf16 %v671
        %v1772 = vunpack.c.l.s8.bf16 %v672
        %v1773 = vunpack.c.l.s8.bf16 %v673
        %v1774 = vunpack.c.l.s8.bf16 %v674
        %v1775 = vunpack.c.h.s8.bf16 %v671
        %v1776 = vunpack.c.h.s8.bf16 %v672
        %v1777 = vunpack.c.h.s8.bf16 %v673
        %v1778 = vunpack.c.h.s8.bf16 %v674
        %v1779 = vunpack.c.l.s8.bf16 %v675
        %v1780 = vunpack.c.l.s8.bf16 %v676
        %v1781 = vunpack.c.l.s8.bf16 %v677
        %v1782 = vunpack.c.l.s8.bf16 %v678
        %v1783 = vunpack.c.h.s8.bf16 %v675
        %v1784 = vunpack.c.h.s8.bf16 %v676
        %v1785 = vunpack.c.h.s8.bf16 %v677
        %v1786 = vunpack.c.h.s8.bf16 %v678
        %v1787 = vunpack.c.l.s8.bf16 %v679
        %v1788 = vunpack.c.l.s8.bf16 %v680
        %v1789 = vunpack.c.l.s8.bf16 %v681
        %v1790 = vunpack.c.l.s8.bf16 %v682
        %v1791 = vunpack.c.h.s8.bf16 %v679
        %v1792 = vunpack.c.h.s8.bf16 %v680
        %v1793 = vunpack.c.h.s8.bf16 %v681
        %v1794 = vunpack.c.h.s8.bf16 %v682
        %v1795 = vunpack.c.l.s8.bf16 %v683
        %v1796 = vunpack.c.l.s8.bf16 %v684
        %v1797 = vunpack.c.l.s8.bf16 %v685
        %v1798 = vunpack.c.l.s8.bf16 %v686
        %v1799 = vunpack.c.h.s8.bf16 %v683
        %v1800 = vunpack.c.h.s8.bf16 %v684
        %v1801 = vunpack.c.h.s8.bf16 %v685
        %v1802 = vunpack.c.h.s8.bf16 %v686
        %v1803 = vunpack.c.l.s8.bf16 %v687
        %v1804 = vunpack.c.l.s8.bf16 %v688
        %v1805 = vunpack.c.l.s8.bf16 %v689
        %v1806 = vunpack.c.l.s8.bf16 %v690
        %v1807 = vunpack.c.h.s8.bf16 %v687
        %v1808 = vunpack.c.h.s8.bf16 %v688
        %v1809 = vunpack.c.h.s8.bf16 %v689
        %v1810 = vunpack.c.h.s8.bf16 %v690
        %v1811 = vunpack.c.l.s8.bf16 %v691
        %v1812 = vunpack.c.l.s8.bf16 %v692
        %v1813 = vunpack.c.l.s8.bf16 %v693
        %v1814 = vunpack.c.l.s8.bf16 %v694
        %v1815 = vunpack.c.h.s8.bf16 %v691
        %v1816 = vunpack.c.h.s8.bf16 %v692
        %v1817 = vunpack.c.h.s8.bf16 %v693
        %v1818 = vunpack.c.h.s8.bf16 %v694
        %v1819 = vunpack.c.l.s8.bf16 %v695
        %v1820 = vunpack.c.l.s8.bf16 %v696
        %v1821 = vunpack.c.l.s8.bf16 %v697
        %v1822 = vunpack.c.l.s8.bf16 %v698
        %v1823 = vunpack.c.h.s8.bf16 %v695
        %v1824 = vunpack.c.h.s8.bf16 %v696
        %v1825 = vunpack.c.h.s8.bf16 %v697
        %v1826 = vunpack.c.h.s8.bf16 %v698
        %v1827 = vunpack.c.l.s8.bf16 %v699
        %v1828 = vunpack.c.l.s8.bf16 %v700
        %v1829 = vunpack.c.l.s8.bf16 %v701
        %v1830 = vunpack.c.l.s8.bf16 %v702
        %v1831 = vunpack.c.h.s8.bf16 %v699
        %v1832 = vunpack.c.h.s8.bf16 %v700
        %v1833 = vunpack.c.h.s8.bf16 %v701
        %v1834 = vunpack.c.h.s8.bf16 %v702
        %v1835 = vunpack.c.l.s8.bf16 %v703
        %v1836 = vunpack.c.l.s8.bf16 %v704
        %v1837 = vunpack.c.l.s8.bf16 %v705
        %v1838 = vunpack.c.l.s8.bf16 %v706
        %v1839 = vunpack.c.h.s8.bf16 %v703
        %v1840 = vunpack.c.h.s8.bf16 %v704
        %v1841 = vunpack.c.h.s8.bf16 %v705
        %v1842 = vunpack.c.h.s8.bf16 %v706
        %v1843 = vunpack.c.l.s8.bf16 %v707
        %v1844 = vunpack.c.l.s8.bf16 %v708
        %v1845 = vunpack.c.l.s8.bf16 %v709
        %v1846 = vunpack.c.l.s8.bf16 %v710
        %v1847 = vunpack.c.h.s8.bf16 %v707
        %v1848 = vunpack.c.h.s8.bf16 %v708
        %v1849 = vunpack.c.h.s8.bf16 %v709
        %v1850 = vunpack.c.h.s8.bf16 %v710
        %v1851 = vunpack.c.l.s8.bf16 %v711
        %v1852 = vunpack.c.l.s8.bf16 %v712
        %v1853 = vunpack.c.l.s8.bf16 %v713
        %v1854 = vunpack.c.l.s8.bf16 %v714
        %v1855 = vunpack.c.h.s8.bf16 %v711
        %v1856 = vunpack.c.h.s8.bf16 %v712
        %v1857 = vunpack.c.h.s8.bf16 %v713
        %v1858 = vunpack.c.h.s8.bf16 %v714
        %v1859 = vunpack.c.l.s8.bf16 %v715
        %v1860 = vunpack.c.l.s8.bf16 %v716
        %v1861 = vunpack.c.l.s8.bf16 %v717
        %v1862 = vunpack.c.l.s8.bf16 %v718
        %v1863 = vunpack.c.h.s8.bf16 %v715
        %v1864 = vunpack.c.h.s8.bf16 %v716
        %v1865 = vunpack.c.h.s8.bf16 %v717
        %v1866 = vunpack.c.h.s8.bf16 %v718
        %v1867 = vunpack.c.l.s8.bf16 %v719
        %v1868 = vunpack.c.l.s8.bf16 %v720
        %v1869 = vunpack.c.l.s8.bf16 %v721
        %v1870 = vunpack.c.l.s8.bf16 %v722
        %v1871 = vunpack.c.h.s8.bf16 %v719
        %v1872 = vunpack.c.h.s8.bf16 %v720
        %v1873 = vunpack.c.h.s8.bf16 %v721
        %v1874 = vunpack.c.h.s8.bf16 %v722
        %v1875 = vunpack.c.l.s8.bf16 %v723
        %v1876 = vunpack.c.l.s8.bf16 %v724
        %v1877 = vunpack.c.l.s8.bf16 %v725
        %v1878 = vunpack.c.l.s8.bf16 %v726
        %v1879 = vunpack.c.h.s8.bf16 %v723
        %v1880 = vunpack.c.h.s8.bf16 %v724
        %v1881 = vunpack.c.h.s8.bf16 %v725
        %v1882 = vunpack.c.h.s8.bf16 %v726
        %v1883 = vunpack.c.l.s8.bf16 %v727
        %v1884 = vunpack.c.l.s8.bf16 %v728
        %v1885 = vunpack.c.l.s8.bf16 %v729
        %v1886 = vunpack.c.l.s8.bf16 %v730
        %v1887 = vunpack.c.h.s8.bf16 %v727
        %v1888 = vunpack.c.h.s8.bf16 %v728
        %v1889 = vunpack.c.h.s8.bf16 %v729
        %v1890 = vunpack.c.h.s8.bf16 %v730
        %v1891 = vunpack.c.l.s8.bf16 %v731
        %v1892 = vunpack.c.l.s8.bf16 %v732
        %v1893 = vunpack.c.l.s8.bf16 %v733
        %v1894 = vunpack.c.l.s8.bf16 %v734
        %v1895 = vunpack.c.h.s8.bf16 %v731
        %v1896 = vunpack.c.h.s8.bf16 %v732
        %v1897 = vunpack.c.h.s8.bf16 %v733
        %v1898 = vunpack.c.h.s8.bf16 %v734
        %v1899 = vunpack.c.l.s8.bf16 %v735
        %v1900 = vunpack.c.l.s8.bf16 %v736
        %v1901 = vunpack.c.l.s8.bf16 %v737
        %v1902 = vunpack.c.l.s8.bf16 %v738
        %v1903 = vunpack.c.h.s8.bf16 %v735
        %v1904 = vunpack.c.h.s8.bf16 %v736
        %v1905 = vunpack.c.h.s8.bf16 %v737
        %v1906 = vunpack.c.h.s8.bf16 %v738
        %v1907 = vunpack.c.l.s8.bf16 %v739
        %v1908 = vunpack.c.l.s8.bf16 %v740
        %v1909 = vunpack.c.l.s8.bf16 %v741
        %v1910 = vunpack.c.l.s8.bf16 %v742
        %v1911 = vunpack.c.h.s8.bf16 %v739
        %v1912 = vunpack.c.h.s8.bf16 %v740
        %v1913 = vunpack.c.h.s8.bf16 %v741
        %v1914 = vunpack.c.h.s8.bf16 %v742
        %v1915 = vunpack.c.l.s8.bf16 %v743
        %v1916 = vunpack.c.l.s8.bf16 %v744
        %v1917 = vunpack.c.l.s8.bf16 %v745
        %v1918 = vunpack.c.l.s8.bf16 %v746
        %v1919 = vunpack.c.h.s8.bf16 %v743
        %v1920 = vunpack.c.h.s8.bf16 %v744
        %v1921 = vunpack.c.h.s8.bf16 %v745
        %v1922 = vunpack.c.h.s8.bf16 %v746
        %v1923 = vunpack.c.l.s8.bf16 %v747
        %v1924 = vunpack.c.l.s8.bf16 %v748
        %v1925 = vunpack.c.l.s8.bf16 %v749
        %v1926 = vunpack.c.l.s8.bf16 %v750
        %v1927 = vunpack.c.h.s8.bf16 %v747
        %v1928 = vunpack.c.h.s8.bf16 %v748
        %v1929 = vunpack.c.h.s8.bf16 %v749
        %v1930 = vunpack.c.h.s8.bf16 %v750
        %v1931 = vunpack.c.l.s8.bf16 %v751
        %v1932 = vunpack.c.l.s8.bf16 %v752
        %v1933 = vunpack.c.l.s8.bf16 %v753
        %v1934 = vunpack.c.l.s8.bf16 %v754
        %v1935 = vunpack.c.h.s8.bf16 %v751
        %v1936 = vunpack.c.h.s8.bf16 %v752
        %v1937 = vunpack.c.h.s8.bf16 %v753
        %v1938 = vunpack.c.h.s8.bf16 %v754
        %v1939 = vunpack.c.l.s8.bf16 %v755
        %v1940 = vunpack.c.l.s8.bf16 %v756
        %v1941 = vunpack.c.l.s8.bf16 %v757
        %v1942 = vunpack.c.l.s8.bf16 %v758
        %v1943 = vunpack.c.h.s8.bf16 %v755
        %v1944 = vunpack.c.h.s8.bf16 %v756
        %v1945 = vunpack.c.h.s8.bf16 %v757
        %v1946 = vunpack.c.h.s8.bf16 %v758
        %v1947 = vunpack.c.l.s8.bf16 %v759
        %v1948 = vunpack.c.l.s8.bf16 %v760
        %v1949 = vunpack.c.l.s8.bf16 %v761
        %v1950 = vunpack.c.l.s8.bf16 %v762
        %v1951 = vunpack.c.h.s8.bf16 %v759
        %v1952 = vunpack.c.h.s8.bf16 %v760
        %v1953 = vunpack.c.h.s8.bf16 %v761
        %v1954 = vunpack.c.h.s8.bf16 %v762
        %v1955 = vunpack.c.l.s8.bf16 %v763
        %v1956 = vunpack.c.l.s8.bf16 %v764
        %v1957 = vunpack.c.l.s8.bf16 %v765
        %v1958 = vunpack.c.l.s8.bf16 %v766
        %v1959 = vunpack.c.h.s8.bf16 %v763
        %v1960 = vunpack.c.h.s8.bf16 %v764
        %v1961 = vunpack.c.h.s8.bf16 %v765
        %v1962 = vunpack.c.h.s8.bf16 %v766
        %v1963 = vunpack.c.l.s8.bf16 %v767
        %v1964 = vunpack.c.l.s8.bf16 %v768
        %v1965 = vunpack.c.l.s8.bf16 %v769
        %v1966 = vunpack.c.l.s8.bf16 %v770
        %v1967 = vunpack.c.h.s8.bf16 %v767
        %v1968 = vunpack.c.h.s8.bf16 %v768
        %v1969 = vunpack.c.h.s8.bf16 %v769
        %v1970 = vunpack.c.h.s8.bf16 %v770
        %v1971 = vunpack.c.l.s8.bf16 %v771
        %v1972 = vunpack.c.l.s8.bf16 %v772
        %v1973 = vunpack.c.l.s8.bf16 %v773
        %v1974 = vunpack.c.l.s8.bf16 %v774
        %v1975 = vunpack.c.h.s8.bf16 %v771
        %v1976 = vunpack.c.h.s8.bf16 %v772
        %v1977 = vunpack.c.h.s8.bf16 %v773
        %v1978 = vunpack.c.h.s8.bf16 %v774
        %v1979 = vunpack.c.l.s8.bf16 %v775
        %v1980 = vunpack.c.l.s8.bf16 %v776
        %v1981 = vunpack.c.l.s8.bf16 %v777
        %v1982 = vunpack.c.l.s8.bf16 %v778
        %v1983 = vunpack.c.h.s8.bf16 %v775
        %v1984 = vunpack.c.h.s8.bf16 %v776
        %v1985 = vunpack.c.h.s8.bf16 %v777
        %v1986 = vunpack.c.h.s8.bf16 %v778
        %v1987 = vunpack.c.l.s8.bf16 %v779
        %v1988 = vunpack.c.l.s8.bf16 %v780
        %v1989 = vunpack.c.l.s8.bf16 %v781
        %v1990 = vunpack.c.l.s8.bf16 %v782
        %v1991 = vunpack.c.h.s8.bf16 %v779
        %v1992 = vunpack.c.h.s8.bf16 %v780
        %v1993 = vunpack.c.h.s8.bf16 %v781
        %v1994 = vunpack.c.h.s8.bf16 %v782
        %v1995 = vunpack.c.l.s8.bf16 %v783
        %v1996 = vunpack.c.l.s8.bf16 %v784
        %v1997 = vunpack.c.l.s8.bf16 %v785
        %v1998 = vunpack.c.l.s8.bf16 %v786
        %v1999 = vunpack.c.h.s8.bf16 %v783
        %v2000 = vunpack.c.h.s8.bf16 %v784
        %v2001 = vunpack.c.h.s8.bf16 %v785
        %v2002 = vunpack.c.h.s8.bf16 %v786
        %v2003 = vunpack.c.l.s8.bf16 %v787
        %v2004 = vunpack.c.l.s8.bf16 %v788
        %v2005 = vunpack.c.l.s8.bf16 %v789
        %v2006 = vunpack.c.l.s8.bf16 %v790
        %v2007 = vunpack.c.h.s8.bf16 %v787
        %v2008 = vunpack.c.h.s8.bf16 %v788
        %v2009 = vunpack.c.h.s8.bf16 %v789
        %v2010 = vunpack.c.h.s8.bf16 %v790
        %v2011 = vunpack.c.l.s8.bf16 %v791
        %v2012 = vunpack.c.l.s8.bf16 %v792
        %v2013 = vunpack.c.l.s8.bf16 %v793
        %v2014 = vunpack.c.l.s8.bf16 %v794
        %v2015 = vunpack.c.h.s8.bf16 %v791
        %v2016 = vunpack.c.h.s8.bf16 %v792
        %v2017 = vunpack.c.h.s8.bf16 %v793
        %v2018 = vunpack.c.h.s8.bf16 %v794
        %v2019 = vunpack.c.l.s8.bf16 %v795
        %v2020 = vunpack.c.l.s8.bf16 %v796
        %v2021 = vunpack.c.l.s8.bf16 %v797
        %v2022 = vunpack.c.l.s8.bf16 %v798
        %v2023 = vunpack.c.h.s8.bf16 %v795
        %v2024 = vunpack.c.h.s8.bf16 %v796
        %v2025 = vunpack.c.h.s8.bf16 %v797
        %v2026 = vunpack.c.h.s8.bf16 %v798
        %v2027 = vunpack.c.l.s8.bf16 %v799
        %v2028 = vunpack.c.l.s8.bf16 %v800
        %v2029 = vunpack.c.l.s8.bf16 %v801
        %v2030 = vunpack.c.l.s8.bf16 %v802
        %v2031 = vunpack.c.h.s8.bf16 %v799
        %v2032 = vunpack.c.h.s8.bf16 %v800
        %v2033 = vunpack.c.h.s8.bf16 %v801
        %v2034 = vunpack.c.h.s8.bf16 %v802
        %v2035 = vunpack.c.l.s8.bf16 %v803
        %v2036 = vunpack.c.l.s8.bf16 %v804
        %v2037 = vunpack.c.l.s8.bf16 %v805
        %v2038 = vunpack.c.l.s8.bf16 %v806
        %v2039 = vunpack.c.h.s8.bf16 %v803
        %v2040 = vunpack.c.h.s8.bf16 %v804
        %v2041 = vunpack.c.h.s8.bf16 %v805
        %v2042 = vunpack.c.h.s8.bf16 %v806
        %v2043 = vunpack.c.l.s8.bf16 %v807
        %v2044 = vunpack.c.l.s8.bf16 %v808
        %v2045 = vunpack.c.l.s8.bf16 %v809
        %v2046 = vunpack.c.l.s8.bf16 %v810
        %v2047 = vunpack.c.h.s8.bf16 %v807
        %v2048 = vunpack.c.h.s8.bf16 %v808
        %v2049 = vunpack.c.h.s8.bf16 %v809
        %v2050 = vunpack.c.h.s8.bf16 %v810
        %v2051 = vunpack.c.l.s8.bf16 %v811
        %v2052 = vunpack.c.l.s8.bf16 %v812
        %v2053 = vunpack.c.l.s8.bf16 %v813
        %v2054 = vunpack.c.l.s8.bf16 %v814
        %v2055 = vunpack.c.h.s8.bf16 %v811
        %v2056 = vunpack.c.h.s8.bf16 %v812
        %v2057 = vunpack.c.h.s8.bf16 %v813
        %v2058 = vunpack.c.h.s8.bf16 %v814
        %v2059 = vunpack.c.l.s8.bf16 %v815
        %v2060 = vunpack.c.l.s8.bf16 %v816
        %v2061 = vunpack.c.l.s8.bf16 %v817
        %v2062 = vunpack.c.l.s8.bf16 %v818
        %v2063 = vunpack.c.h.s8.bf16 %v815
        %v2064 = vunpack.c.h.s8.bf16 %v816
        %v2065 = vunpack.c.h.s8.bf16 %v817
        %v2066 = vunpack.c.h.s8.bf16 %v818
        %v2067 = vunpack.c.l.s8.bf16 %v819
        %v2068 = vunpack.c.l.s8.bf16 %v820
        %v2069 = vunpack.c.l.s8.bf16 %v821
        %v2070 = vunpack.c.l.s8.bf16 %v822
        %v2071 = vunpack.c.h.s8.bf16 %v819
        %v2072 = vunpack.c.h.s8.bf16 %v820
        %v2073 = vunpack.c.h.s8.bf16 %v821
        %v2074 = vunpack.c.h.s8.bf16 %v822
        %v2075 = vunpack.c.l.s8.bf16 %v823
        %v2076 = vunpack.c.l.s8.bf16 %v824
        %v2077 = vunpack.c.l.s8.bf16 %v825
        %v2078 = vunpack.c.l.s8.bf16 %v826
        %v2079 = vunpack.c.h.s8.bf16 %v823
        %v2080 = vunpack.c.h.s8.bf16 %v824
        %v2081 = vunpack.c.h.s8.bf16 %v825
        %v2082 = vunpack.c.h.s8.bf16 %v826
        %v2083 = vunpack.c.l.s8.bf16 %v827
        %v2084 = vunpack.c.l.s8.bf16 %v828
        %v2085 = vunpack.c.l.s8.bf16 %v829
        %v2086 = vunpack.c.l.s8.bf16 %v830
        %v2087 = vunpack.c.h.s8.bf16 %v827
        %v2088 = vunpack.c.h.s8.bf16 %v828
        %v2089 = vunpack.c.h.s8.bf16 %v829
        %v2090 = vunpack.c.h.s8.bf16 %v830
        %v2091 = vunpack.c.l.s8.bf16 %v831
        %v2092 = vunpack.c.l.s8.bf16 %v832
        %v2093 = vunpack.c.l.s8.bf16 %v833
        %v2094 = vunpack.c.l.s8.bf16 %v834
        %v2095 = vunpack.c.h.s8.bf16 %v831
        %v2096 = vunpack.c.h.s8.bf16 %v832
        %v2097 = vunpack.c.h.s8.bf16 %v833
        %v2098 = vunpack.c.h.s8.bf16 %v834
        %v2099 = vunpack.c.l.s8.bf16 %v835
        %v2100 = vunpack.c.l.s8.bf16 %v836
        %v2101 = vunpack.c.l.s8.bf16 %v837
        %v2102 = vunpack.c.l.s8.bf16 %v838
        %v2103 = vunpack.c.h.s8.bf16 %v835
        %v2104 = vunpack.c.h.s8.bf16 %v836
        %v2105 = vunpack.c.h.s8.bf16 %v837
        %v2106 = vunpack.c.h.s8.bf16 %v838
        %v2107 = vunpack.c.l.s8.bf16 %v839
        %v2108 = vunpack.c.l.s8.bf16 %v840
        %v2109 = vunpack.c.l.s8.bf16 %v841
        %v2110 = vunpack.c.l.s8.bf16 %v842
        %v2111 = vunpack.c.h.s8.bf16 %v839
        %v2112 = vunpack.c.h.s8.bf16 %v840
        %v2113 = vunpack.c.h.s8.bf16 %v841
        %v2114 = vunpack.c.h.s8.bf16 %v842
        %v2115 = vunpack.c.l.s8.bf16 %v843
        %v2116 = vunpack.c.l.s8.bf16 %v844
        %v2117 = vunpack.c.l.s8.bf16 %v845
        %v2118 = vunpack.c.l.s8.bf16 %v846
        %v2119 = vunpack.c.h.s8.bf16 %v843
        %v2120 = vunpack.c.h.s8.bf16 %v844
        %v2121 = vunpack.c.h.s8.bf16 %v845
        %v2122 = vunpack.c.h.s8.bf16 %v846
        %v2123 = vunpack.c.l.s8.bf16 %v847
        %v2124 = vunpack.c.l.s8.bf16 %v848
        %v2125 = vunpack.c.l.s8.bf16 %v849
        %v2126 = vunpack.c.l.s8.bf16 %v850
        %v2127 = vunpack.c.h.s8.bf16 %v847
        %v2128 = vunpack.c.h.s8.bf16 %v848
        %v2129 = vunpack.c.h.s8.bf16 %v849
        %v2130 = vunpack.c.h.s8.bf16 %v850
        %v2131 = vunpack.c.l.s8.bf16 %v851
        %v2132 = vunpack.c.l.s8.bf16 %v852
        %v2133 = vunpack.c.l.s8.bf16 %v853
        %v2134 = vunpack.c.l.s8.bf16 %v854
        %v2135 = vunpack.c.h.s8.bf16 %v851
        %v2136 = vunpack.c.h.s8.bf16 %v852
        %v2137 = vunpack.c.h.s8.bf16 %v853
        %v2138 = vunpack.c.h.s8.bf16 %v854
        %v2139 = vunpack.c.l.s8.bf16 %v855
        %v2140 = vunpack.c.l.s8.bf16 %v856
        %v2141 = vunpack.c.l.s8.bf16 %v857
        %v2142 = vunpack.c.l.s8.bf16 %v858
        %v2143 = vunpack.c.h.s8.bf16 %v855
        %v2144 = vunpack.c.h.s8.bf16 %v856
        %v2145 = vunpack.c.h.s8.bf16 %v857
        %v2146 = vunpack.c.h.s8.bf16 %v858
        %v2147 = vunpack.c.l.s8.bf16 %v859
        %v2148 = vunpack.c.l.s8.bf16 %v860
        %v2149 = vunpack.c.l.s8.bf16 %v861
        %v2150 = vunpack.c.l.s8.bf16 %v862
        %v2151 = vunpack.c.h.s8.bf16 %v859
        %v2152 = vunpack.c.h.s8.bf16 %v860
        %v2153 = vunpack.c.h.s8.bf16 %v861
        %v2154 = vunpack.c.h.s8.bf16 %v862
        %v2155 = vunpack.c.l.s8.bf16 %v863
        %v2156 = vunpack.c.l.s8.bf16 %v864
        %v2157 = vunpack.c.l.s8.bf16 %v865
        %v2158 = vunpack.c.l.s8.bf16 %v866
        %v2159 = vunpack.c.h.s8.bf16 %v863
        %v2160 = vunpack.c.h.s8.bf16 %v864
        %v2161 = vunpack.c.h.s8.bf16 %v865
        %v2162 = vunpack.c.h.s8.bf16 %v866
        %v2163 = vunpack.c.l.s8.bf16 %v867
        %v2164 = vunpack.c.l.s8.bf16 %v868
        %v2165 = vunpack.c.l.s8.bf16 %v869
        %v2166 = vunpack.c.l.s8.bf16 %v870
        %v2167 = vunpack.c.h.s8.bf16 %v867
        %v2168 = vunpack.c.h.s8.bf16 %v868
        %v2169 = vunpack.c.h.s8.bf16 %v869
        %v2170 = vunpack.c.h.s8.bf16 %v870
        %v2171 = vunpack.c.l.s8.bf16 %v871
        %v2172 = vunpack.c.l.s8.bf16 %v872
        %v2173 = vunpack.c.l.s8.bf16 %v873
        %v2174 = vunpack.c.l.s8.bf16 %v874
        %v2175 = vunpack.c.h.s8.bf16 %v871
        %v2176 = vunpack.c.h.s8.bf16 %v872
        %v2177 = vunpack.c.h.s8.bf16 %v873
        %v2178 = vunpack.c.h.s8.bf16 %v874
        %v2179 = vunpack.c.l.s8.bf16 %v875
        %v2180 = vunpack.c.l.s8.bf16 %v876
        %v2181 = vunpack.c.l.s8.bf16 %v877
        %v2182 = vunpack.c.l.s8.bf16 %v878
        %v2183 = vunpack.c.h.s8.bf16 %v875
        %v2184 = vunpack.c.h.s8.bf16 %v876
        %v2185 = vunpack.c.h.s8.bf16 %v877
        %v2186 = vunpack.c.h.s8.bf16 %v878
        %v2187 = vunpack.c.l.s8.bf16 %v879
        %v2188 = vunpack.c.l.s8.bf16 %v880
        %v2189 = vunpack.c.l.s8.bf16 %v881
        %v2190 = vunpack.c.l.s8.bf16 %v882
        %v2191 = vunpack.c.h.s8.bf16 %v879
        %v2192 = vunpack.c.h.s8.bf16 %v880
        %v2193 = vunpack.c.h.s8.bf16 %v881
        %v2194 = vunpack.c.h.s8.bf16 %v882
        %v2195 = vunpack.c.l.s8.bf16 %v883
        %v2196 = vunpack.c.l.s8.bf16 %v884
        %v2197 = vunpack.c.l.s8.bf16 %v885
        %v2198 = vunpack.c.l.s8.bf16 %v886
        %v2199 = vunpack.c.h.s8.bf16 %v883
        %v2200 = vunpack.c.h.s8.bf16 %v884
        %v2201 = vunpack.c.h.s8.bf16 %v885
        %v2202 = vunpack.c.h.s8.bf16 %v886
        %v2203 = vunpack.c.l.s8.bf16 %v887
        %v2204 = vunpack.c.l.s8.bf16 %v888
        %v2205 = vunpack.c.l.s8.bf16 %v889
        %v2206 = vunpack.c.l.s8.bf16 %v890
        %v2207 = vunpack.c.h.s8.bf16 %v887
        %v2208 = vunpack.c.h.s8.bf16 %v888
        %v2209 = vunpack.c.h.s8.bf16 %v889
        %v2210 = vunpack.c.h.s8.bf16 %v890
        %v2211 = vunpack.c.l.s8.bf16 %v891
        %v2212 = vunpack.c.l.s8.bf16 %v892
        %v2213 = vunpack.c.l.s8.bf16 %v893
        %v2214 = vunpack.c.l.s8.bf16 %v894
        %v2215 = vunpack.c.h.s8.bf16 %v891
        %v2216 = vunpack.c.h.s8.bf16 %v892
        %v2217 = vunpack.c.h.s8.bf16 %v893
        %v2218 = vunpack.c.h.s8.bf16 %v894
        %v2219 = vunpack.c.l.s8.bf16 %v895
        %v2220 = vunpack.c.l.s8.bf16 %v896
        %v2221 = vunpack.c.l.s8.bf16 %v897
        %v2222 = vunpack.c.l.s8.bf16 %v898
        %v2223 = vunpack.c.h.s8.bf16 %v895
        %v2224 = vunpack.c.h.s8.bf16 %v896
        %v2225 = vunpack.c.h.s8.bf16 %v897
        %v2226 = vunpack.c.h.s8.bf16 %v898
        %v2227 = vunpack.c.l.s8.bf16 %v899
        %v2228 = vunpack.c.l.s8.bf16 %v900
        %v2229 = vunpack.c.l.s8.bf16 %v901
        %v2230 = vunpack.c.l.s8.bf16 %v902
        %v2231 = vunpack.c.h.s8.bf16 %v899
        %v2232 = vunpack.c.h.s8.bf16 %v900
        %v2233 = vunpack.c.h.s8.bf16 %v901
        %v2234 = vunpack.c.h.s8.bf16 %v902
        %v2235 = vunpack.c.l.s8.bf16 %v903
        %v2236 = vunpack.c.l.s8.bf16 %v904
        %v2237 = vunpack.c.l.s8.bf16 %v905
        %v2238 = vunpack.c.l.s8.bf16 %v906
        %v2239 = vunpack.c.h.s8.bf16 %v903
        %v2240 = vunpack.c.h.s8.bf16 %v904
        %v2241 = vunpack.c.h.s8.bf16 %v905
        %v2242 = vunpack.c.h.s8.bf16 %v906
        %v2243 = vunpack.c.l.s8.bf16 %v907
        %v2244 = vunpack.c.l.s8.bf16 %v908
        %v2245 = vunpack.c.l.s8.bf16 %v909
        %v2246 = vunpack.c.l.s8.bf16 %v910
        %v2247 = vunpack.c.h.s8.bf16 %v907
        %v2248 = vunpack.c.h.s8.bf16 %v908
        %v2249 = vunpack.c.h.s8.bf16 %v909
        %v2250 = vunpack.c.h.s8.bf16 %v910
        %v2251 = vunpack.c.l.s8.bf16 %v911
        %v2252 = vunpack.c.l.s8.bf16 %v912
        %v2253 = vunpack.c.l.s8.bf16 %v913
        %v2254 = vunpack.c.l.s8.bf16 %v914
        %v2255 = vunpack.c.h.s8.bf16 %v911
        %v2256 = vunpack.c.h.s8.bf16 %v912
        %v2257 = vunpack.c.h.s8.bf16 %v913
        %v2258 = vunpack.c.h.s8.bf16 %v914
        %v2259 = vunpack.c.l.s8.bf16 %v915
        %v2260 = vunpack.c.l.s8.bf16 %v916
        %v2261 = vunpack.c.l.s8.bf16 %v917
        %v2262 = vunpack.c.l.s8.bf16 %v918
        %v2263 = vunpack.c.h.s8.bf16 %v915
        %v2264 = vunpack.c.h.s8.bf16 %v916
        %v2265 = vunpack.c.h.s8.bf16 %v917
        %v2266 = vunpack.c.h.s8.bf16 %v918
        %v2267 = vunpack.c.l.s8.bf16 %v919
        %v2268 = vunpack.c.l.s8.bf16 %v920
        %v2269 = vunpack.c.l.s8.bf16 %v921
        %v2270 = vunpack.c.l.s8.bf16 %v922
        %v2271 = vunpack.c.h.s8.bf16 %v919
        %v2272 = vunpack.c.h.s8.bf16 %v920
        %v2273 = vunpack.c.h.s8.bf16 %v921
        %v2274 = vunpack.c.h.s8.bf16 %v922
        %v2275 = vunpack.c.l.s8.bf16 %v923
        %v2276 = vunpack.c.l.s8.bf16 %v924
        %v2277 = vunpack.c.l.s8.bf16 %v925
        %v2278 = vunpack.c.l.s8.bf16 %v926
        %v2279 = vunpack.c.h.s8.bf16 %v923
        %v2280 = vunpack.c.h.s8.bf16 %v924
        %v2281 = vunpack.c.h.s8.bf16 %v925
        %v2282 = vunpack.c.h.s8.bf16 %v926
        %v2283 = vunpack.c.l.s8.bf16 %v927
        %v2284 = vunpack.c.l.s8.bf16 %v928
        %v2285 = vunpack.c.l.s8.bf16 %v929
        %v2286 = vunpack.c.l.s8.bf16 %v930
        %v2287 = vunpack.c.h.s8.bf16 %v927
        %v2288 = vunpack.c.h.s8.bf16 %v928
        %v2289 = vunpack.c.h.s8.bf16 %v929
        %v2290 = vunpack.c.h.s8.bf16 %v930
        %v2291 = vunpack.c.l.s8.bf16 %v931
        %v2292 = vunpack.c.l.s8.bf16 %v932
        %v2293 = vunpack.c.l.s8.bf16 %v933
        %v2294 = vunpack.c.l.s8.bf16 %v934
        %v2295 = vunpack.c.h.s8.bf16 %v931
        %v2296 = vunpack.c.h.s8.bf16 %v932
        %v2297 = vunpack.c.h.s8.bf16 %v933
        %v2298 = vunpack.c.h.s8.bf16 %v934
        %v2299 = vunpack.c.l.s8.bf16 %v935
        %v2300 = vunpack.c.l.s8.bf16 %v936
        %v2301 = vunpack.c.l.s8.bf16 %v937
        %v2302 = vunpack.c.l.s8.bf16 %v938
        %v2303 = vunpack.c.h.s8.bf16 %v935
        %v2304 = vunpack.c.h.s8.bf16 %v936
        %v2305 = vunpack.c.h.s8.bf16 %v937
        %v2306 = vunpack.c.h.s8.bf16 %v938
        %v2307 = vunpack.c.l.s8.bf16 %v939
        %v2308 = vunpack.c.l.s8.bf16 %v940
        %v2309 = vunpack.c.l.s8.bf16 %v941
        %v2310 = vunpack.c.l.s8.bf16 %v942
        %v2311 = vunpack.c.h.s8.bf16 %v939
        %v2312 = vunpack.c.h.s8.bf16 %v940
        %v2313 = vunpack.c.h.s8.bf16 %v941
        %v2314 = vunpack.c.h.s8.bf16 %v942
        %v2315 = vunpack.c.l.s8.bf16 %v943
        %v2316 = vunpack.c.l.s8.bf16 %v944
        %v2317 = vunpack.c.l.s8.bf16 %v945
        %v2318 = vunpack.c.l.s8.bf16 %v946
        %v2319 = vunpack.c.h.s8.bf16 %v943
        %v2320 = vunpack.c.h.s8.bf16 %v944
        %v2321 = vunpack.c.h.s8.bf16 %v945
        %v2322 = vunpack.c.h.s8.bf16 %v946
        %v2323 = vunpack.c.l.s8.bf16 %v947
        %v2324 = vunpack.c.l.s8.bf16 %v948
        %v2325 = vunpack.c.l.s8.bf16 %v949
        %v2326 = vunpack.c.l.s8.bf16 %v950
        %v2327 = vunpack.c.h.s8.bf16 %v947
        %v2328 = vunpack.c.h.s8.bf16 %v948
        %v2329 = vunpack.c.h.s8.bf16 %v949
        %v2330 = vunpack.c.h.s8.bf16 %v950
        %v2331 = vunpack.c.l.s8.bf16 %v951
        %v2332 = vunpack.c.l.s8.bf16 %v952
        %v2333 = vunpack.c.l.s8.bf16 %v953
        %v2334 = vunpack.c.l.s8.bf16 %v954
        %v2335 = vunpack.c.h.s8.bf16 %v951
        %v2336 = vunpack.c.h.s8.bf16 %v952
        %v2337 = vunpack.c.h.s8.bf16 %v953
        %v2338 = vunpack.c.h.s8.bf16 %v954
        %v2339 = vunpack.c.l.s8.bf16 %v955
        %v2340 = vunpack.c.l.s8.bf16 %v956
        %v2341 = vunpack.c.l.s8.bf16 %v957
        %v2342 = vunpack.c.l.s8.bf16 %v958
        %v2343 = vunpack.c.h.s8.bf16 %v955
        %v2344 = vunpack.c.h.s8.bf16 %v956
        %v2345 = vunpack.c.h.s8.bf16 %v957
        %v2346 = vunpack.c.h.s8.bf16 %v958
        %v2347 = vunpack.c.l.s8.bf16 %v959
        %v2348 = vunpack.c.l.s8.bf16 %v960
        %v2349 = vunpack.c.l.s8.bf16 %v961
        %v2350 = vunpack.c.l.s8.bf16 %v962
        %v2351 = vunpack.c.h.s8.bf16 %v959
        %v2352 = vunpack.c.h.s8.bf16 %v960
        %v2353 = vunpack.c.h.s8.bf16 %v961
        %v2354 = vunpack.c.h.s8.bf16 %v962
        %v2355 = vunpack.c.l.s8.bf16 %v963
        %v2356 = vunpack.c.l.s8.bf16 %v964
        %v2357 = vunpack.c.l.s8.bf16 %v965
        %v2358 = vunpack.c.l.s8.bf16 %v966
        %v2359 = vunpack.c.h.s8.bf16 %v963
        %v2360 = vunpack.c.h.s8.bf16 %v964
        %v2361 = vunpack.c.h.s8.bf16 %v965
        %v2362 = vunpack.c.h.s8.bf16 %v966
        %v2363 = vunpack.c.l.s8.bf16 %v967
        %v2364 = vunpack.c.l.s8.bf16 %v968
        %v2365 = vunpack.c.l.s8.bf16 %v969
        %v2366 = vunpack.c.l.s8.bf16 %v970
        %v2367 = vunpack.c.h.s8.bf16 %v967
        %v2368 = vunpack.c.h.s8.bf16 %v968
        %v2369 = vunpack.c.h.s8.bf16 %v969
        %v2370 = vunpack.c.h.s8.bf16 %v970
        %v2371 = vunpack.c.l.s8.bf16 %v971
        %v2372 = vunpack.c.l.s8.bf16 %v972
        %v2373 = vunpack.c.l.s8.bf16 %v973
        %v2374 = vunpack.c.l.s8.bf16 %v974
        %v2375 = vunpack.c.h.s8.bf16 %v971
        %v2376 = vunpack.c.h.s8.bf16 %v972
        %v2377 = vunpack.c.h.s8.bf16 %v973
        %v2378 = vunpack.c.h.s8.bf16 %v974
        %v2379 = vunpack.c.l.s8.bf16 %v975
        %v2380 = vunpack.c.l.s8.bf16 %v976
        %v2381 = vunpack.c.l.s8.bf16 %v977
        %v2382 = vunpack.c.l.s8.bf16 %v978
        %v2383 = vunpack.c.h.s8.bf16 %v975
        %v2384 = vunpack.c.h.s8.bf16 %v976
        %v2385 = vunpack.c.h.s8.bf16 %v977
        %v2386 = vunpack.c.h.s8.bf16 %v978
        %v2387 = vunpack.c.l.s8.bf16 %v979
        %v2388 = vunpack.c.l.s8.bf16 %v980
        %v2389 = vunpack.c.l.s8.bf16 %v981
        %v2390 = vunpack.c.l.s8.bf16 %v982
        %v2391 = vunpack.c.h.s8.bf16 %v979
        %v2392 = vunpack.c.h.s8.bf16 %v980
        %v2393 = vunpack.c.h.s8.bf16 %v981
        %v2394 = vunpack.c.h.s8.bf16 %v982
        %v2395 = vunpack.c.l.s8.bf16 %v983
        %v2396 = vunpack.c.l.s8.bf16 %v984
        %v2397 = vunpack.c.l.s8.bf16 %v985
        %v2398 = vunpack.c.l.s8.bf16 %v986
        %v2399 = vunpack.c.h.s8.bf16 %v983
        %v2400 = vunpack.c.h.s8.bf16 %v984
        %v2401 = vunpack.c.h.s8.bf16 %v985
        %v2402 = vunpack.c.h.s8.bf16 %v986
        %v2403 = vunpack.c.l.s8.bf16 %v987
        %v2404 = vunpack.c.l.s8.bf16 %v988
        %v2405 = vunpack.c.l.s8.bf16 %v989
        %v2406 = vunpack.c.l.s8.bf16 %v990
        %v2407 = vunpack.c.h.s8.bf16 %v987
        %v2408 = vunpack.c.h.s8.bf16 %v988
        %v2409 = vunpack.c.h.s8.bf16 %v989
        %v2410 = vunpack.c.h.s8.bf16 %v990
        %v2411 = vunpack.c.l.s8.bf16 %v991
        %v2412 = vunpack.c.l.s8.bf16 %v992
        %v2413 = vunpack.c.l.s8.bf16 %v993
        %v2414 = vunpack.c.l.s8.bf16 %v994
        %v2415 = vunpack.c.h.s8.bf16 %v991
        %v2416 = vunpack.c.h.s8.bf16 %v992
        %v2417 = vunpack.c.h.s8.bf16 %v993
        %v2418 = vunpack.c.h.s8.bf16 %v994
        %v2419 = vunpack.c.l.s8.bf16 %v995
        %v2420 = vunpack.c.l.s8.bf16 %v996
        %v2421 = vunpack.c.l.s8.bf16 %v997
        %v2422 = vunpack.c.l.s8.bf16 %v998
        %v2423 = vunpack.c.h.s8.bf16 %v995
        %v2424 = vunpack.c.h.s8.bf16 %v996
        %v2425 = vunpack.c.h.s8.bf16 %v997
        %v2426 = vunpack.c.h.s8.bf16 %v998
        %v2427 = vunpack.c.l.s8.bf16 %v999
        %v2428 = vunpack.c.l.s8.bf16 %v1000
        %v2429 = vunpack.c.l.s8.bf16 %v1001
        %v2430 = vunpack.c.l.s8.bf16 %v1002
        %v2431 = vunpack.c.h.s8.bf16 %v999
        %v2432 = vunpack.c.h.s8.bf16 %v1000
        %v2433 = vunpack.c.h.s8.bf16 %v1001
        %v2434 = vunpack.c.h.s8.bf16 %v1002
        %v2435 = vunpack.c.l.s8.bf16 %v1003
        %v2436 = vunpack.c.l.s8.bf16 %v1004
        %v2437 = vunpack.c.l.s8.bf16 %v1005
        %v2438 = vunpack.c.l.s8.bf16 %v1006
        %v2439 = vunpack.c.h.s8.bf16 %v1003
        %v2440 = vunpack.c.h.s8.bf16 %v1004
        %v2441 = vunpack.c.h.s8.bf16 %v1005
        %v2442 = vunpack.c.h.s8.bf16 %v1006
        %v2443 = vunpack.c.l.s8.bf16 %v1007
        %v2444 = vunpack.c.l.s8.bf16 %v1008
        %v2445 = vunpack.c.l.s8.bf16 %v1009
        %v2446 = vunpack.c.l.s8.bf16 %v1010
        %v2447 = vunpack.c.h.s8.bf16 %v1007
        %v2448 = vunpack.c.h.s8.bf16 %v1008
        %v2449 = vunpack.c.h.s8.bf16 %v1009
        %v2450 = vunpack.c.h.s8.bf16 %v1010
        %v2451 = vunpack.c.l.s8.bf16 %v1011
        %v2452 = vunpack.c.l.s8.bf16 %v1012
        %v2453 = vunpack.c.l.s8.bf16 %v1013
        %v2454 = vunpack.c.l.s8.bf16 %v1014
        %v2455 = vunpack.c.h.s8.bf16 %v1011
        %v2456 = vunpack.c.h.s8.bf16 %v1012
        %v2457 = vunpack.c.h.s8.bf16 %v1013
        %v2458 = vunpack.c.h.s8.bf16 %v1014
        %v2459 = vunpack.c.l.s8.bf16 %v1015
        %v2460 = vunpack.c.l.s8.bf16 %v1016
        %v2461 = vunpack.c.l.s8.bf16 %v1017
        %v2462 = vunpack.c.l.s8.bf16 %v1018
        %v2463 = vunpack.c.h.s8.bf16 %v1015
        %v2464 = vunpack.c.h.s8.bf16 %v1016
        %v2465 = vunpack.c.h.s8.bf16 %v1017
        %v2466 = vunpack.c.h.s8.bf16 %v1018
        %v2467 = vunpack.c.l.s8.bf16 %v1019
        %v2468 = vunpack.c.l.s8.bf16 %v1020
        %v2469 = vunpack.c.l.s8.bf16 %v1021
        %v2470 = vunpack.c.l.s8.bf16 %v1022
        %v2471 = vunpack.c.h.s8.bf16 %v1019
        %v2472 = vunpack.c.h.s8.bf16 %v1020
        %v2473 = vunpack.c.h.s8.bf16 %v1021
        %v2474 = vunpack.c.h.s8.bf16 %v1022
        %v2475 = vunpack.c.l.s8.bf16 %v1023
        %v2476 = vunpack.c.l.s8.bf16 %v1024
        %v2477 = vunpack.c.l.s8.bf16 %v1025
        %v2478 = vunpack.c.l.s8.bf16 %v1026
        %v2479 = vunpack.c.h.s8.bf16 %v1023
        %v2480 = vunpack.c.h.s8.bf16 %v1024
        %v2481 = vunpack.c.h.s8.bf16 %v1025
        %v2482 = vunpack.c.h.s8.bf16 %v1026
        %v2483 = vunpack.c.l.s8.bf16 %v1027
        %v2484 = vunpack.c.l.s8.bf16 %v1028
        %v2485 = vunpack.c.l.s8.bf16 %v1029
        %v2486 = vunpack.c.l.s8.bf16 %v1030
        %v2487 = vunpack.c.h.s8.bf16 %v1027
        %v2488 = vunpack.c.h.s8.bf16 %v1028
        %v2489 = vunpack.c.h.s8.bf16 %v1029
        %v2490 = vunpack.c.h.s8.bf16 %v1030
        %v2491 = vunpack.c.l.s8.bf16 %v1031
        %v2492 = vunpack.c.l.s8.bf16 %v1032
        %v2493 = vunpack.c.l.s8.bf16 %v1033
        %v2494 = vunpack.c.l.s8.bf16 %v1034
        %v2495 = vunpack.c.h.s8.bf16 %v1031
        %v2496 = vunpack.c.h.s8.bf16 %v1032
        %v2497 = vunpack.c.h.s8.bf16 %v1033
        %v2498 = vunpack.c.h.s8.bf16 %v1034
        %v2499 = vunpack.c.l.s8.bf16 %v1035
        %v2500 = vunpack.c.l.s8.bf16 %v1036
        %v2501 = vunpack.c.l.s8.bf16 %v1037
        %v2502 = vunpack.c.l.s8.bf16 %v1038
        %v2503 = vunpack.c.h.s8.bf16 %v1035
        %v2504 = vunpack.c.h.s8.bf16 %v1036
        %v2505 = vunpack.c.h.s8.bf16 %v1037
        %v2506 = vunpack.c.h.s8.bf16 %v1038
        %v2507 = vunpack.c.l.s8.bf16 %v1039
        %v2508 = vunpack.c.l.s8.bf16 %v1040
        %v2509 = vunpack.c.l.s8.bf16 %v1041
        %v2510 = vunpack.c.l.s8.bf16 %v1042
        %v2511 = vunpack.c.h.s8.bf16 %v1039
        %v2512 = vunpack.c.h.s8.bf16 %v1040
        %v2513 = vunpack.c.h.s8.bf16 %v1041
        %v2514 = vunpack.c.h.s8.bf16 %v1042
        %v2515 = vunpack.c.l.s8.bf16 %v1043
        %v2516 = vunpack.c.l.s8.bf16 %v1044
        %v2517 = vunpack.c.l.s8.bf16 %v1045
        %v2518 = vunpack.c.l.s8.bf16 %v1046
        %v2519 = vunpack.c.h.s8.bf16 %v1043
        %v2520 = vunpack.c.h.s8.bf16 %v1044
        %v2521 = vunpack.c.h.s8.bf16 %v1045
        %v2522 = vunpack.c.h.s8.bf16 %v1046
        %v2523 = vunpack.c.l.s8.bf16 %v1047
        %v2524 = vunpack.c.l.s8.bf16 %v1048
        %v2525 = vunpack.c.l.s8.bf16 %v1049
        %v2526 = vunpack.c.l.s8.bf16 %v1050
        %v2527 = vunpack.c.h.s8.bf16 %v1047
        %v2528 = vunpack.c.h.s8.bf16 %v1048
        %v2529 = vunpack.c.h.s8.bf16 %v1049
        %v2530 = vunpack.c.h.s8.bf16 %v1050
        %v2531 = vunpack.c.l.s8.bf16 %v1051
        %v2532 = vunpack.c.l.s8.bf16 %v1052
        %v2533 = vunpack.c.l.s8.bf16 %v1053
        %v2534 = vunpack.c.l.s8.bf16 %v1054
        %v2535 = vunpack.c.h.s8.bf16 %v1051
        %v2536 = vunpack.c.h.s8.bf16 %v1052
        %v2537 = vunpack.c.h.s8.bf16 %v1053
        %v2538 = vunpack.c.h.s8.bf16 %v1054
        %v2539 = vunpack.c.l.s8.bf16 %v1055
        %v2540 = vunpack.c.l.s8.bf16 %v1056
        %v2541 = vunpack.c.l.s8.bf16 %v1057
        %v2542 = vunpack.c.l.s8.bf16 %v1058
        %v2543 = vunpack.c.h.s8.bf16 %v1055
        %v2544 = vunpack.c.h.s8.bf16 %v1056
        %v2545 = vunpack.c.h.s8.bf16 %v1057
        %v2546 = vunpack.c.h.s8.bf16 %v1058
        %v2547 = vunpack.c.l.s8.bf16 %v1059
        %v2548 = vunpack.c.l.s8.bf16 %v1060
        %v2549 = vunpack.c.l.s8.bf16 %v1061
        %v2550 = vunpack.c.l.s8.bf16 %v1062
        %v2551 = vunpack.c.h.s8.bf16 %v1059
        %v2552 = vunpack.c.h.s8.bf16 %v1060
        %v2553 = vunpack.c.h.s8.bf16 %v1061
        %v2554 = vunpack.c.h.s8.bf16 %v1062
        %v2555 = vunpack.c.l.s8.bf16 %v1063
        %v2556 = vunpack.c.l.s8.bf16 %v1064
        %v2557 = vunpack.c.l.s8.bf16 %v1065
        %v2558 = vunpack.c.l.s8.bf16 %v1066
        %v2559 = vunpack.c.h.s8.bf16 %v1063
        %v2560 = vunpack.c.h.s8.bf16 %v1064
        %v2561 = vunpack.c.h.s8.bf16 %v1065
        %v2562 = vunpack.c.h.s8.bf16 %v1066
        %v2563 = vunpack.c.l.s8.bf16 %v1067
        %v2564 = vunpack.c.l.s8.bf16 %v1068
        %v2565 = vunpack.c.l.s8.bf16 %v1069
        %v2566 = vunpack.c.l.s8.bf16 %v1070
        %v2567 = vunpack.c.h.s8.bf16 %v1067
        %v2568 = vunpack.c.h.s8.bf16 %v1068
        %v2569 = vunpack.c.h.s8.bf16 %v1069
        %v2570 = vunpack.c.h.s8.bf16 %v1070
        %v2571 = vunpack.c.l.s8.bf16 %v1071
        %v2572 = vunpack.c.l.s8.bf16 %v1072
        %v2573 = vunpack.c.l.s8.bf16 %v1073
        %v2574 = vunpack.c.l.s8.bf16 %v1074
        %v2575 = vunpack.c.h.s8.bf16 %v1071
        %v2576 = vunpack.c.h.s8.bf16 %v1072
        %v2577 = vunpack.c.h.s8.bf16 %v1073
        %v2578 = vunpack.c.h.s8.bf16 %v1074
        %v2579 = vunpack.c.l.s8.bf16 %v1075
        %v2580 = vunpack.c.l.s8.bf16 %v1076
        %v2581 = vunpack.c.l.s8.bf16 %v1077
        %v2582 = vunpack.c.l.s8.bf16 %v1078
        %v2583 = vunpack.c.h.s8.bf16 %v1075
        %v2584 = vunpack.c.h.s8.bf16 %v1076
        %v2585 = vunpack.c.h.s8.bf16 %v1077
        %v2586 = vunpack.c.h.s8.bf16 %v1078
        %v2587 = vunpack.c.l.s8.bf16 %v1079
        %v2588 = vunpack.c.l.s8.bf16 %v1080
        %v2589 = vunpack.c.l.s8.bf16 %v1081
        %v2590 = vunpack.c.l.s8.bf16 %v1082
        %v2591 = vunpack.c.h.s8.bf16 %v1079
        %v2592 = vunpack.c.h.s8.bf16 %v1080
        %v2593 = vunpack.c.h.s8.bf16 %v1081
        %v2594 = vunpack.c.h.s8.bf16 %v1082
        %v2595 = vunpack.c.l.s8.bf16 %v1083
        %v2596 = vunpack.c.l.s8.bf16 %v1084
        %v2597 = vunpack.c.l.s8.bf16 %v1085
        %v2598 = vunpack.c.l.s8.bf16 %v1086
        %v2599 = vunpack.c.h.s8.bf16 %v1083
        %v2600 = vunpack.c.h.s8.bf16 %v1084
        %v2601 = vunpack.c.h.s8.bf16 %v1085
        %v2602 = vunpack.c.h.s8.bf16 %v1086
        %v2603 = vunpack.c.l.s8.bf16 %v1087
        %v2604 = vunpack.c.l.s8.bf16 %v1088
        %v2605 = vunpack.c.l.s8.bf16 %v1089
        %v2606 = vunpack.c.l.s8.bf16 %v1090
        %v2607 = vunpack.c.h.s8.bf16 %v1087
        %v2608 = vunpack.c.h.s8.bf16 %v1088
        %v2609 = vunpack.c.h.s8.bf16 %v1089
        %v2610 = vunpack.c.h.s8.bf16 %v1090
        %v2611 = vunpack.c.l.s8.bf16 %v1091
        %v2612 = vunpack.c.l.s8.bf16 %v1092
        %v2613 = vunpack.c.l.s8.bf16 %v1093
        %v2614 = vunpack.c.l.s8.bf16 %v1094
        %v2615 = vunpack.c.h.s8.bf16 %v1091
        %v2616 = vunpack.c.h.s8.bf16 %v1092
        %v2617 = vunpack.c.h.s8.bf16 %v1093
        %v2618 = vunpack.c.h.s8.bf16 %v1094
        %v2619 = vunpack.c.l.s8.bf16 %v1095
        %v2620 = vunpack.c.l.s8.bf16 %v1096
        %v2621 = vunpack.c.l.s8.bf16 %v1097
        %v2622 = vunpack.c.l.s8.bf16 %v1098
        %v2623 = vunpack.c.h.s8.bf16 %v1095
        %v2624 = vunpack.c.h.s8.bf16 %v1096
        %v2625 = vunpack.c.h.s8.bf16 %v1097
        %v2626 = vunpack.c.h.s8.bf16 %v1098
        %v2627 = vunpack.c.l.s8.bf16 %v1099
        %v2628 = vunpack.c.l.s8.bf16 %v1100
        %v2629 = vunpack.c.l.s8.bf16 %v1101
        %v2630 = vunpack.c.l.s8.bf16 %v1102
        %v2631 = vunpack.c.h.s8.bf16 %v1099
        %v2632 = vunpack.c.h.s8.bf16 %v1100
        %v2633 = vunpack.c.h.s8.bf16 %v1101
        %v2634 = vunpack.c.h.s8.bf16 %v1102
        %v2635 = vunpack.c.l.s8.bf16 %v1103
        %v2636 = vunpack.c.l.s8.bf16 %v1104
        %v2637 = vunpack.c.l.s8.bf16 %v1105
        %v2638 = vunpack.c.l.s8.bf16 %v1106
        %v2639 = vunpack.c.h.s8.bf16 %v1103
        %v2640 = vunpack.c.h.s8.bf16 %v1104
        %v2641 = vunpack.c.h.s8.bf16 %v1105
        %v2642 = vunpack.c.h.s8.bf16 %v1106
        %v2643 = vunpack.c.l.s8.bf16 %v1107
        %v2644 = vunpack.c.l.s8.bf16 %v1108
        %v2645 = vunpack.c.l.s8.bf16 %v1109
        %v2646 = vunpack.c.l.s8.bf16 %v1110
        %v2647 = vunpack.c.h.s8.bf16 %v1107
        %v2648 = vunpack.c.h.s8.bf16 %v1108
        %v2649 = vunpack.c.h.s8.bf16 %v1109
        %v2650 = vunpack.c.h.s8.bf16 %v1110
        %v2651 = vunpack.c.l.s8.bf16 %v1111
        %v2652 = vunpack.c.l.s8.bf16 %v1112
        %v2653 = vunpack.c.l.s8.bf16 %v1113
        %v2654 = vunpack.c.l.s8.bf16 %v1114
        %v2655 = vunpack.c.h.s8.bf16 %v1111
        %v2656 = vunpack.c.h.s8.bf16 %v1112
        %v2657 = vunpack.c.h.s8.bf16 %v1113
        %v2658 = vunpack.c.h.s8.bf16 %v1114
        %v2659 = vunpack.c.l.s8.bf16 %v1115
        %v2660 = vunpack.c.l.s8.bf16 %v1116
        %v2661 = vunpack.c.l.s8.bf16 %v1117
        %v2662 = vunpack.c.l.s8.bf16 %v1118
        %v2663 = vunpack.c.h.s8.bf16 %v1115
        %v2664 = vunpack.c.h.s8.bf16 %v1116
        %v2665 = vunpack.c.h.s8.bf16 %v1117
        %v2666 = vunpack.c.h.s8.bf16 %v1118
        %v2667 = vunpack.c.l.s8.bf16 %v1119
        %v2668 = vunpack.c.l.s8.bf16 %v1120
        %v2669 = vunpack.c.l.s8.bf16 %v1121
        %v2670 = vunpack.c.l.s8.bf16 %v1122
        %v2671 = vunpack.c.h.s8.bf16 %v1119
        %v2672 = vunpack.c.h.s8.bf16 %v1120
        %v2673 = vunpack.c.h.s8.bf16 %v1121
        %v2674 = vunpack.c.h.s8.bf16 %v1122
        %v2675 = vunpack.c.l.s8.bf16 %v1123
        %v2676 = vunpack.c.l.s8.bf16 %v1124
        %v2677 = vunpack.c.l.s8.bf16 %v1125
        %v2678 = vunpack.c.l.s8.bf16 %v1126
        %v2679 = vunpack.c.h.s8.bf16 %v1123
        %v2680 = vunpack.c.h.s8.bf16 %v1124
        %v2681 = vunpack.c.h.s8.bf16 %v1125
        %v2682 = vunpack.c.h.s8.bf16 %v1126
        %v2683 = vunpack.c.l.s8.bf16 %v1127
        %v2684 = vunpack.c.l.s8.bf16 %v1128
        %v2685 = vunpack.c.l.s8.bf16 %v1129
        %v2686 = vunpack.c.l.s8.bf16 %v1130
        %v2687 = vunpack.c.h.s8.bf16 %v1127
        %v2688 = vunpack.c.h.s8.bf16 %v1128
        %v2689 = vunpack.c.h.s8.bf16 %v1129
        %v2690 = vunpack.c.h.s8.bf16 %v1130
        %v2691 = vunpack.c.l.s8.bf16 %v1131
        %v2692 = vunpack.c.l.s8.bf16 %v1132
        %v2693 = vunpack.c.l.s8.bf16 %v1133
        %v2694 = vunpack.c.l.s8.bf16 %v1134
        %v2695 = vunpack.c.h.s8.bf16 %v1131
        %v2696 = vunpack.c.h.s8.bf16 %v1132
        %v2697 = vunpack.c.h.s8.bf16 %v1133
        %v2698 = vunpack.c.h.s8.bf16 %v1134
        %v2699 = vunpack.c.l.s8.bf16 %v1135
        %v2700 = vunpack.c.l.s8.bf16 %v1136
        %v2701 = vunpack.c.l.s8.bf16 %v1137
        %v2702 = vunpack.c.l.s8.bf16 %v1138
        %v2703 = vunpack.c.h.s8.bf16 %v1135
        %v2704 = vunpack.c.h.s8.bf16 %v1136
        %v2705 = vunpack.c.h.s8.bf16 %v1137
        %v2706 = vunpack.c.h.s8.bf16 %v1138
        %v2707 = vld [vmem:[%s343] sm:$0xff]
        %v2708 = vld [vmem:[%s277] sm:$0xff]
        %v2709 = vld [vmem:[%s277 + $0x8] sm:$0xff]
        %v2710 = vld [vmem:[%s277 + $0x10] sm:$0xff]
        %v2711 = vld [vmem:[%s277 + $0x18] sm:$0xff]
        %v2712 = vld [vmem:[%s277 + $0x20] sm:$0xff]
        %v2713 = vld [vmem:[%s277 + $0x28] sm:$0xff]
        %v2714 = vld [vmem:[%s277 + $0x30] sm:$0x1]
        %v2722 = vcombine.high %v2708, %v2708
        %v2724 = vunpack.c.l.s4 1966171168
        %v2725 = vunpack.c.0.s8 %v2724
        %v2726 = vlaneseq
        %v2727 = vshrl.u32 %v2726, 7
        %v2728 = vsub.s32 %v2725, %v2727
        %v2729 = vrot.slane %v2708, %v2728
        %v2731 = vunpack.c.l.s4 1966171168
        %v2732 = vunpack.c.0.s8 %v2731
        %v2733 = vlaneseq
        %v2734 = vshrl.u32 %v2733, 7
        %v2735 = vsub.s32 %v2732, %v2734
        %v2736 = vrot.slane %v2722, %v2735
        %v2737 = vcombine.high %v2729, %v2729
        %v2738 = vcombine.high %v2736, %v2736
        %v2740 = vunpack.c.l.s4 1966171168
        %v2741 = vunpack.c.0.s8 %v2740
        %v2742 = vlaneseq
        %v2743 = vshrl.u32 %v2742, 7
        %v2744 = vsub.s32 %v2741, %v2743
        %v2745 = vrot.slane %v2729, %v2744
        %v2747 = vunpack.c.l.s4 1966171168
        %v2748 = vunpack.c.0.s8 %v2747
        %v2749 = vlaneseq
        %v2750 = vshrl.u32 %v2749, 7
        %v2751 = vsub.s32 %v2748, %v2750
        %v2752 = vrot.slane %v2736, %v2751
        %v2754 = vunpack.c.l.s4 1966171168
        %v2755 = vunpack.c.0.s8 %v2754
        %v2756 = vlaneseq
        %v2757 = vshrl.u32 %v2756, 7
        %v2758 = vsub.s32 %v2755, %v2757
        %v2759 = vrot.slane %v2737, %v2758
        %v2761 = vunpack.c.l.s4 1966171168
        %v2762 = vunpack.c.0.s8 %v2761
        %v2763 = vlaneseq
        %v2764 = vshrl.u32 %v2763, 7
        %v2765 = vsub.s32 %v2762, %v2764
        %v2766 = vrot.slane %v2738, %v2765
        %v2767 = vcombine.high %v2745, %v2745
        %v2768 = vcombine.high %v2752, %v2752
        %v2769 = vcombine.high %v2759, %v2759
        %v2770 = vcombine.high %v2766, %v2766
        %v2771 = vcombine.high %v2709, %v2709
        %v2773 = vunpack.c.l.s4 1966171168
        %v2774 = vunpack.c.0.s8 %v2773
        %v2775 = vlaneseq
        %v2776 = vshrl.u32 %v2775, 7
        %v2777 = vsub.s32 %v2774, %v2776
        %v2778 = vrot.slane %v2709, %v2777
        %v2780 = vunpack.c.l.s4 1966171168
        %v2781 = vunpack.c.0.s8 %v2780
        %v2782 = vlaneseq
        %v2783 = vshrl.u32 %v2782, 7
        %v2784 = vsub.s32 %v2781, %v2783
        %v2785 = vrot.slane %v2771, %v2784
        %v2786 = vcombine.high %v2778, %v2778
        %v2787 = vcombine.high %v2785, %v2785
        %v2789 = vunpack.c.l.s4 1966171168
        %v2790 = vunpack.c.0.s8 %v2789
        %v2791 = vlaneseq
        %v2792 = vshrl.u32 %v2791, 7
        %v2793 = vsub.s32 %v2790, %v2792
        %v2794 = vrot.slane %v2778, %v2793
        %v2796 = vunpack.c.l.s4 1966171168
        %v2797 = vunpack.c.0.s8 %v2796
        %v2798 = vlaneseq
        %v2799 = vshrl.u32 %v2798, 7
        %v2800 = vsub.s32 %v2797, %v2799
        %v2801 = vrot.slane %v2785, %v2800
        %v2803 = vunpack.c.l.s4 1966171168
        %v2804 = vunpack.c.0.s8 %v2803
        %v2805 = vlaneseq
        %v2806 = vshrl.u32 %v2805, 7
        %v2807 = vsub.s32 %v2804, %v2806
        %v2808 = vrot.slane %v2786, %v2807
        %v2810 = vunpack.c.l.s4 1966171168
        %v2811 = vunpack.c.0.s8 %v2810
        %v2812 = vlaneseq
        %v2813 = vshrl.u32 %v2812, 7
        %v2814 = vsub.s32 %v2811, %v2813
        %v2815 = vrot.slane %v2787, %v2814
        %v2816 = vcombine.high %v2794, %v2794
        %v2817 = vcombine.high %v2801, %v2801
        %v2818 = vcombine.high %v2808, %v2808
        %v2819 = vcombine.high %v2815, %v2815
        %v2820 = vcombine.high %v2710, %v2710
        %v2822 = vunpack.c.l.s4 1966171168
        %v2823 = vunpack.c.0.s8 %v2822
        %v2824 = vlaneseq
        %v2825 = vshrl.u32 %v2824, 7
        %v2826 = vsub.s32 %v2823, %v2825
        %v2827 = vrot.slane %v2710, %v2826
        %v2829 = vunpack.c.l.s4 1966171168
        %v2830 = vunpack.c.0.s8 %v2829
        %v2831 = vlaneseq
        %v2832 = vshrl.u32 %v2831, 7
        %v2833 = vsub.s32 %v2830, %v2832
        %v2834 = vrot.slane %v2820, %v2833
        %v2835 = vcombine.high %v2827, %v2827
        %v2836 = vcombine.high %v2834, %v2834
        %v2838 = vunpack.c.l.s4 1966171168
        %v2839 = vunpack.c.0.s8 %v2838
        %v2840 = vlaneseq
        %v2841 = vshrl.u32 %v2840, 7
        %v2842 = vsub.s32 %v2839, %v2841
        %v2843 = vrot.slane %v2827, %v2842
        %v2845 = vunpack.c.l.s4 1966171168
        %v2846 = vunpack.c.0.s8 %v2845
        %v2847 = vlaneseq
        %v2848 = vshrl.u32 %v2847, 7
        %v2849 = vsub.s32 %v2846, %v2848
        %v2850 = vrot.slane %v2834, %v2849
        %v2852 = vunpack.c.l.s4 1966171168
        %v2853 = vunpack.c.0.s8 %v2852
        %v2854 = vlaneseq
        %v2855 = vshrl.u32 %v2854, 7
        %v2856 = vsub.s32 %v2853, %v2855
        %v2857 = vrot.slane %v2835, %v2856
        %v2859 = vunpack.c.l.s4 1966171168
        %v2860 = vunpack.c.0.s8 %v2859
        %v2861 = vlaneseq
        %v2862 = vshrl.u32 %v2861, 7
        %v2863 = vsub.s32 %v2860, %v2862
        %v2864 = vrot.slane %v2836, %v2863
        %v2865 = vcombine.high %v2843, %v2843
        %v2866 = vcombine.high %v2850, %v2850
        %v2867 = vcombine.high %v2857, %v2857
        %v2868 = vcombine.high %v2864, %v2864
        %v2869 = vcombine.high %v2711, %v2711
        %v2871 = vunpack.c.l.s4 1966171168
        %v2872 = vunpack.c.0.s8 %v2871
        %v2873 = vlaneseq
        %v2874 = vshrl.u32 %v2873, 7
        %v2875 = vsub.s32 %v2872, %v2874
        %v2876 = vrot.slane %v2711, %v2875
        %v2878 = vunpack.c.l.s4 1966171168
        %v2879 = vunpack.c.0.s8 %v2878
        %v2880 = vlaneseq
        %v2881 = vshrl.u32 %v2880, 7
        %v2882 = vsub.s32 %v2879, %v2881
        %v2883 = vrot.slane %v2869, %v2882
        %v2884 = vcombine.high %v2876, %v2876
        %v2885 = vcombine.high %v2883, %v2883
        %v2887 = vunpack.c.l.s4 1966171168
        %v2888 = vunpack.c.0.s8 %v2887
        %v2889 = vlaneseq
        %v2890 = vshrl.u32 %v2889, 7
        %v2891 = vsub.s32 %v2888, %v2890
        %v2892 = vrot.slane %v2876, %v2891
        %v2894 = vunpack.c.l.s4 1966171168
        %v2895 = vunpack.c.0.s8 %v2894
        %v2896 = vlaneseq
        %v2897 = vshrl.u32 %v2896, 7
        %v2898 = vsub.s32 %v2895, %v2897
        %v2899 = vrot.slane %v2883, %v2898
        %v2901 = vunpack.c.l.s4 1966171168
        %v2902 = vunpack.c.0.s8 %v2901
        %v2903 = vlaneseq
        %v2904 = vshrl.u32 %v2903, 7
        %v2905 = vsub.s32 %v2902, %v2904
        %v2906 = vrot.slane %v2884, %v2905
        %v2908 = vunpack.c.l.s4 1966171168
        %v2909 = vunpack.c.0.s8 %v2908
        %v2910 = vlaneseq
        %v2911 = vshrl.u32 %v2910, 7
        %v2912 = vsub.s32 %v2909, %v2911
        %v2913 = vrot.slane %v2885, %v2912
        %v2914 = vcombine.high %v2892, %v2892
        %v2915 = vcombine.high %v2899, %v2899
        %v2916 = vcombine.high %v2906, %v2906
        %v2917 = vcombine.high %v2913, %v2913
        %v2918 = vcombine.high %v2712, %v2712
        %v2920 = vunpack.c.l.s4 1966171168
        %v2921 = vunpack.c.0.s8 %v2920
        %v2922 = vlaneseq
        %v2923 = vshrl.u32 %v2922, 7
        %v2924 = vsub.s32 %v2921, %v2923
        %v2925 = vrot.slane %v2712, %v2924
        %v2927 = vunpack.c.l.s4 1966171168
        %v2928 = vunpack.c.0.s8 %v2927
        %v2929 = vlaneseq
        %v2930 = vshrl.u32 %v2929, 7
        %v2931 = vsub.s32 %v2928, %v2930
        %v2932 = vrot.slane %v2918, %v2931
        %v2933 = vcombine.high %v2925, %v2925
        %v2934 = vcombine.high %v2932, %v2932
        %v2936 = vunpack.c.l.s4 1966171168
        %v2937 = vunpack.c.0.s8 %v2936
        %v2938 = vlaneseq
        %v2939 = vshrl.u32 %v2938, 7
        %v2940 = vsub.s32 %v2937, %v2939
        %v2941 = vrot.slane %v2925, %v2940
        %v2943 = vunpack.c.l.s4 1966171168
        %v2944 = vunpack.c.0.s8 %v2943
        %v2945 = vlaneseq
        %v2946 = vshrl.u32 %v2945, 7
        %v2947 = vsub.s32 %v2944, %v2946
        %v2948 = vrot.slane %v2932, %v2947
        %v2950 = vunpack.c.l.s4 1966171168
        %v2951 = vunpack.c.0.s8 %v2950
        %v2952 = vlaneseq
        %v2953 = vshrl.u32 %v2952, 7
        %v2954 = vsub.s32 %v2951, %v2953
        %v2955 = vrot.slane %v2933, %v2954
        %v2957 = vunpack.c.l.s4 1966171168
        %v2958 = vunpack.c.0.s8 %v2957
        %v2959 = vlaneseq
        %v2960 = vshrl.u32 %v2959, 7
        %v2961 = vsub.s32 %v2958, %v2960
        %v2962 = vrot.slane %v2934, %v2961
        %v2963 = vcombine.high %v2941, %v2941
        %v2964 = vcombine.high %v2948, %v2948
        %v2965 = vcombine.high %v2955, %v2955
        %v2966 = vcombine.high %v2962, %v2962
        %v2967 = vcombine.high %v2713, %v2713
        %v2969 = vunpack.c.l.s4 1966171168
        %v2970 = vunpack.c.0.s8 %v2969
        %v2971 = vlaneseq
        %v2972 = vshrl.u32 %v2971, 7
        %v2973 = vsub.s32 %v2970, %v2972
        %v2974 = vrot.slane %v2713, %v2973
        %v2976 = vunpack.c.l.s4 1966171168
        %v2977 = vunpack.c.0.s8 %v2976
        %v2978 = vlaneseq
        %v2979 = vshrl.u32 %v2978, 7
        %v2980 = vsub.s32 %v2977, %v2979
        %v2981 = vrot.slane %v2967, %v2980
        %v2982 = vcombine.high %v2974, %v2974
        %v2983 = vcombine.high %v2981, %v2981
        %v2985 = vunpack.c.l.s4 1966171168
        %v2986 = vunpack.c.0.s8 %v2985
        %v2987 = vlaneseq
        %v2988 = vshrl.u32 %v2987, 7
        %v2989 = vsub.s32 %v2986, %v2988
        %v2990 = vrot.slane %v2974, %v2989
        %v2992 = vunpack.c.l.s4 1966171168
        %v2993 = vunpack.c.0.s8 %v2992
        %v2994 = vlaneseq
        %v2995 = vshrl.u32 %v2994, 7
        %v2996 = vsub.s32 %v2993, %v2995
        %v2997 = vrot.slane %v2981, %v2996
        %v2999 = vunpack.c.l.s4 1966171168
        %v3000 = vunpack.c.0.s8 %v2999
        %v3001 = vlaneseq
        %v3002 = vshrl.u32 %v3001, 7
        %v3003 = vsub.s32 %v3000, %v3002
        %v3004 = vrot.slane %v2982, %v3003
        %v3006 = vunpack.c.l.s4 1966171168
        %v3007 = vunpack.c.0.s8 %v3006
        %v3008 = vlaneseq
        %v3009 = vshrl.u32 %v3008, 7
        %v3010 = vsub.s32 %v3007, %v3009
        %v3011 = vrot.slane %v2983, %v3010
        %v3012 = vcombine.high %v2990, %v2990
        %v3013 = vcombine.high %v2997, %v2997
        %v3014 = vcombine.high %v3004, %v3004
        %v3015 = vcombine.high %v3011, %v3011
        %v3017 = vunpack.c.l.s4 1966171168
        %v3018 = vunpack.c.0.s8 %v3017
        %v3019 = vlaneseq
        %v3020 = vshrl.u32 %v3019, 7
        %v3021 = vsub.s32 %v3018, %v3020
        %v3022 = vrot.slane %v2714, %v3021
        %v3024 = vunpack.c.l.s4 1966171168
        %v3025 = vunpack.c.0.s8 %v3024
        %v3026 = vlaneseq
        %v3027 = vshrl.u32 %v3026, 7
        %v3028 = vsub.s32 %v3025, %v3027
        %v3029 = vrot.slane %v3022, %v3028
        %3079 = vmatprep.subr.bf16.mxu0 %v1140
        %3080 = vmatpush1.bf16.msra.mxu0 %v1139
        %3081 = vmatprep.subr.bf16.mxu0 %v1144
        %3082 = vmatpush1.bf16.msra.mxu0 %v1143
        %3083 = vmatprep.subr.bf16.mxu0 %v1148
        %3084 = vmatpush1.bf16.msra.mxu0 %v1147
        %3085 = vmatprep.subr.bf16.mxu0 %v1152
        %3086 = vmatpush1.bf16.msra.mxu0 %v1151
        %3087 = vmatprep.subr.bf16.mxu0 %v1156
        %3088 = vmatpush1.bf16.msra.mxu0 %v1155
        %3089 = vmatprep.subr.bf16.mxu0 %v1160
        %3090 = vmatpush1.bf16.msra.mxu0 %v1159
        %3091 = vmatprep.subr.bf16.mxu0 %v1164
        %3092 = vmatpush1.bf16.msra.mxu0 %v1163
        %3093 = vmatprep.subr.bf16.mxu0 %v1168
        %3094 = vmatpush1.bf16.msra.mxu0 %v1167
        %3095 = vmatprep.subr.bf16.mxu0 %v1172
        %3096 = vmatpush1.bf16.msra.mxu0 %v1171
        %3097 = vmatprep.subr.bf16.mxu0 %v1176
        %3098 = vmatpush1.bf16.msra.mxu0 %v1175
        %3099 = vmatprep.subr.bf16.mxu0 %v1180
        %3100 = vmatpush1.bf16.msra.mxu0 %v1179
        %3101 = vmatprep.subr.bf16.mxu0 %v1184
        %3102 = vmatpush1.bf16.msra.mxu0 %v1183
        %3103 = vmatprep.subr.bf16.mxu0 %v1188
        %3104 = vmatpush1.bf16.msra.mxu0 %v1187
        %3105 = vmatprep.subr.bf16.mxu0 %v1192
        %3106 = vmatpush1.bf16.msra.mxu0 %v1191
        %3107 = vmatprep.subr.bf16.mxu0 %v1196
        %3108 = vmatpush1.bf16.msra.mxu0 %v1195
        %3109 = vmatprep.subr.bf16.mxu0 %v1200
        %3110 = vmatpush1.bf16.msra.mxu0 %v1199
        %3111 = vmatprep.mubr.bf16.mxu0 %v2759
        %3112 = vmatmul.mubr.bf16.gmra.mrb[0].mxu0 %v2745
        %v3113 = vpop.f32.mrb[0].mxu0
        %v3114 = vadd.f32 0.0, %v3113
        %v3115 = vpop.f32.mrb[0].mxu0
        %v3116 = vadd.f32 0.0, %v3115
        %v3117 = vpop.f32.mrb[0].mxu0
        %v3118 = vpop.f32.mrb[0].mxu0
        %3119 = vdwg.mxu0
        %3120 = vmatprep.subr.bf16.mxu0 %v1204
        %3121 = vmatpush1.bf16.msra.mxu0 %v1203
        %3122 = vmatprep.subr.bf16.mxu0 %v1208
        %3123 = vmatpush1.bf16.msra.mxu0 %v1207
        %3124 = vmatprep.subr.bf16.mxu0 %v1212
        %3125 = vmatpush1.bf16.msra.mxu0 %v1211
        %3126 = vmatprep.subr.bf16.mxu0 %v1216
        %3127 = vmatpush1.bf16.msra.mxu0 %v1215
        %3128 = vmatprep.subr.bf16.mxu0 %v1220
        %3129 = vmatpush1.bf16.msra.mxu0 %v1219
        %3130 = vmatprep.subr.bf16.mxu0 %v1224
        %3131 = vmatpush1.bf16.msra.mxu0 %v1223
        %3132 = vmatprep.subr.bf16.mxu0 %v1228
        %3133 = vmatpush1.bf16.msra.mxu0 %v1227
        %3134 = vmatprep.subr.bf16.mxu0 %v1232
        %3135 = vmatpush1.bf16.msra.mxu0 %v1231
        %3136 = vmatprep.subr.bf16.mxu0 %v1236
        %3137 = vmatpush1.bf16.msra.mxu0 %v1235
        %3138 = vmatprep.subr.bf16.mxu0 %v1240
        %3139 = vmatpush1.bf16.msra.mxu0 %v1239
        %3140 = vmatprep.subr.bf16.mxu0 %v1244
        %3141 = vmatpush1.bf16.msra.mxu0 %v1243
        %3142 = vmatprep.subr.bf16.mxu0 %v1248
        %3143 = vmatpush1.bf16.msra.mxu0 %v1247
        %3144 = vmatprep.subr.bf16.mxu0 %v1252
        %3145 = vmatpush1.bf16.msra.mxu0 %v1251
        %3146 = vmatprep.subr.bf16.mxu0 %v1256
        %3147 = vmatpush1.bf16.msra.mxu0 %v1255
        %3148 = vmatprep.subr.bf16.mxu0 %v1260
        %3149 = vmatpush1.bf16.msra.mxu0 %v1259
        %3150 = vmatprep.subr.bf16.mxu0 %v1264
        %3151 = vmatpush1.bf16.msra.mxu0 %v1263
        %3152 = vmatprep.mubr.bf16.mxu0 %v2769
        %3153 = vmatmul.mubr.bf16.gmra.mrb[0].mxu0 %v2767
        %v3154 = vpop.f32.mrb[0].mxu0
        %v3155 = vadd.f32 %v3114, %v3154
        %v3156 = vpop.f32.mrb[0].mxu0
        %v3157 = vadd.f32 %v3116, %v3156
        %v3158 = vpop.f32.mrb[0].mxu0
        %v3159 = vpop.f32.mrb[0].mxu0
        %3160 = vdwg.mxu0
        %3161 = vmatprep.subr.bf16.mxu0 %v1268
        %3162 = vmatpush1.bf16.msra.mxu0 %v1267
        %3163 = vmatprep.subr.bf16.mxu0 %v1272
        %3164 = vmatpush1.bf16.msra.mxu0 %v1271
        %3165 = vmatprep.subr.bf16.mxu0 %v1276
        %3166 = vmatpush1.bf16.msra.mxu0 %v1275
        %3167 = vmatprep.subr.bf16.mxu0 %v1280
        %3168 = vmatpush1.bf16.msra.mxu0 %v1279
        %3169 = vmatprep.subr.bf16.mxu0 %v1284
        %3170 = vmatpush1.bf16.msra.mxu0 %v1283
        %3171 = vmatprep.subr.bf16.mxu0 %v1288
        %3172 = vmatpush1.bf16.msra.mxu0 %v1287
        %3173 = vmatprep.subr.bf16.mxu0 %v1292
        %3174 = vmatpush1.bf16.msra.mxu0 %v1291
        %3175 = vmatprep.subr.bf16.mxu0 %v1296
        %3176 = vmatpush1.bf16.msra.mxu0 %v1295
        %3177 = vmatprep.subr.bf16.mxu0 %v1300
        %3178 = vmatpush1.bf16.msra.mxu0 %v1299
        %3179 = vmatprep.subr.bf16.mxu0 %v1304
        %3180 = vmatpush1.bf16.msra.mxu0 %v1303
        %3181 = vmatprep.subr.bf16.mxu0 %v1308
        %3182 = vmatpush1.bf16.msra.mxu0 %v1307
        %3183 = vmatprep.subr.bf16.mxu0 %v1312
        %3184 = vmatpush1.bf16.msra.mxu0 %v1311
        %3185 = vmatprep.subr.bf16.mxu0 %v1316
        %3186 = vmatpush1.bf16.msra.mxu0 %v1315
        %3187 = vmatprep.subr.bf16.mxu0 %v1320
        %3188 = vmatpush1.bf16.msra.mxu0 %v1319
        %3189 = vmatprep.subr.bf16.mxu0 %v1324
        %3190 = vmatpush1.bf16.msra.mxu0 %v1323
        %3191 = vmatprep.subr.bf16.mxu0 %v1328
        %3192 = vmatpush1.bf16.msra.mxu0 %v1327
        %3193 = vmatprep.mubr.bf16.mxu0 %v2766
        %3194 = vmatmul.mubr.bf16.gmra.mrb[0].mxu0 %v2752
        %v3195 = vpop.f32.mrb[0].mxu0
        %v3196 = vadd.f32 %v3155, %v3195
        %v3197 = vpop.f32.mrb[0].mxu0
        %v3198 = vadd.f32 %v3157, %v3197
        %v3199 = vpop.f32.mrb[0].mxu0
        %v3200 = vpop.f32.mrb[0].mxu0
        %3201 = vdwg.mxu0
        %3202 = vmatprep.subr.bf16.mxu0 %v1332
        %3203 = vmatpush1.bf16.msra.mxu0 %v1331
        %3204 = vmatprep.subr.bf16.mxu0 %v1336
        %3205 = vmatpush1.bf16.msra.mxu0 %v1335
        %3206 = vmatprep.subr.bf16.mxu0 %v1340
        %3207 = vmatpush1.bf16.msra.mxu0 %v1339
        %3208 = vmatprep.subr.bf16.mxu0 %v1344
        %3209 = vmatpush1.bf16.msra.mxu0 %v1343
        %3210 = vmatprep.subr.bf16.mxu0 %v1348
        %3211 = vmatpush1.bf16.msra.mxu0 %v1347
        %3212 = vmatprep.subr.bf16.mxu0 %v1352
        %3213 = vmatpush1.bf16.msra.mxu0 %v1351
        %3214 = vmatprep.subr.bf16.mxu0 %v1356
        %3215 = vmatpush1.bf16.msra.mxu0 %v1355
        %3216 = vmatprep.subr.bf16.mxu0 %v1360
        %3217 = vmatpush1.bf16.msra.mxu0 %v1359
        %3218 = vmatprep.subr.bf16.mxu0 %v1364
        %3219 = vmatpush1.bf16.msra.mxu0 %v1363
        %3220 = vmatprep.subr.bf16.mxu0 %v1368
        %3221 = vmatpush1.bf16.msra.mxu0 %v1367
        %3222 = vmatprep.subr.bf16.mxu0 %v1372
        %3223 = vmatpush1.bf16.msra.mxu0 %v1371
        %3224 = vmatprep.subr.bf16.mxu0 %v1376
        %3225 = vmatpush1.bf16.msra.mxu0 %v1375
        %3226 = vmatprep.subr.bf16.mxu0 %v1380
        %3227 = vmatpush1.bf16.msra.mxu0 %v1379
        %3228 = vmatprep.subr.bf16.mxu0 %v1384
        %3229 = vmatpush1.bf16.msra.mxu0 %v1383
        %3230 = vmatprep.subr.bf16.mxu0 %v1388
        %3231 = vmatpush1.bf16.msra.mxu0 %v1387
        %3232 = vmatprep.subr.bf16.mxu0 %v1392
        %3233 = vmatpush1.bf16.msra.mxu0 %v1391
        %3234 = vmatprep.mubr.bf16.mxu0 %v2770
        %3235 = vmatmul.mubr.bf16.gmra.mrb[0].mxu0 %v2768
        %v3236 = vpop.f32.mrb[0].mxu0
        %v3237 = vadd.f32 %v3196, %v3236
        %v3238 = vpop.f32.mrb[0].mxu0
        %v3239 = vadd.f32 %v3198, %v3238
        %v3240 = vpop.f32.mrb[0].mxu0
        %v3241 = vpop.f32.mrb[0].mxu0
        %3242 = vdwg.mxu0
        %3243 = vmatprep.subr.bf16.mxu0 %v1396
        %3244 = vmatpush1.bf16.msra.mxu0 %v1395
        %3245 = vmatprep.subr.bf16.mxu0 %v1400
        %3246 = vmatpush1.bf16.msra.mxu0 %v1399
        %3247 = vmatprep.subr.bf16.mxu0 %v1404
        %3248 = vmatpush1.bf16.msra.mxu0 %v1403
        %3249 = vmatprep.subr.bf16.mxu0 %v1408
        %3250 = vmatpush1.bf16.msra.mxu0 %v1407
        %3251 = vmatprep.subr.bf16.mxu0 %v1412
        %3252 = vmatpush1.bf16.msra.mxu0 %v1411
        %3253 = vmatprep.subr.bf16.mxu0 %v1416
        %3254 = vmatpush1.bf16.msra.mxu0 %v1415
        %3255 = vmatprep.subr.bf16.mxu0 %v1420
        %3256 = vmatpush1.bf16.msra.mxu0 %v1419
        %3257 = vmatprep.subr.bf16.mxu0 %v1424
        %3258 = vmatpush1.bf16.msra.mxu0 %v1423
        %3259 = vmatprep.subr.bf16.mxu0 %v1428
        %3260 = vmatpush1.bf16.msra.mxu0 %v1427
        %3261 = vmatprep.subr.bf16.mxu0 %v1432
        %3262 = vmatpush1.bf16.msra.mxu0 %v1431
        %3263 = vmatprep.subr.bf16.mxu0 %v1436
        %3264 = vmatpush1.bf16.msra.mxu0 %v1435
        %3265 = vmatprep.subr.bf16.mxu0 %v1440
        %3266 = vmatpush1.bf16.msra.mxu0 %v1439
        %3267 = vmatprep.subr.bf16.mxu0 %v1444
        %3268 = vmatpush1.bf16.msra.mxu0 %v1443
        %3269 = vmatprep.subr.bf16.mxu0 %v1448
        %3270 = vmatpush1.bf16.msra.mxu0 %v1447
        %3271 = vmatprep.subr.bf16.mxu0 %v1452
        %3272 = vmatpush1.bf16.msra.mxu0 %v1451
        %3273 = vmatprep.subr.bf16.mxu0 %v1456
        %3274 = vmatpush1.bf16.msra.mxu0 %v1455
        %3275 = vmatprep.mubr.bf16.mxu0 %v2808
        %3276 = vmatmul.mubr.bf16.gmra.mrb[0].mxu0 %v2794
        %v3277 = vpop.f32.mrb[0].mxu0
        %v3278 = vadd.f32 %v3237, %v3277
        %v3279 = vpop.f32.mrb[0].mxu0
        %v3280 = vadd.f32 %v3239, %v3279
        %v3281 = vpop.f32.mrb[0].mxu0
        %v3282 = vpop.f32.mrb[0].mxu0
        %3283 = vdwg.mxu0
        %3284 = vmatprep.subr.bf16.mxu0 %v1460
        %3285 = vmatpush1.bf16.msra.mxu0 %v1459
        %3286 = vmatprep.subr.bf16.mxu0 %v1464
        %3287 = vmatpush1.bf16.msra.mxu0 %v1463
        %3288 = vmatprep.subr.bf16.mxu0 %v1468
        %3289 = vmatpush1.bf16.msra.mxu0 %v1467
        %3290 = vmatprep.subr.bf16.mxu0 %v1472
        %3291 = vmatpush1.bf16.msra.mxu0 %v1471
        %3292 = vmatprep.subr.bf16.mxu0 %v1476
        %3293 = vmatpush1.bf16.msra.mxu0 %v1475
        %3294 = vmatprep.subr.bf16.mxu0 %v1480
        %3295 = vmatpush1.bf16.msra.mxu0 %v1479
        %3296 = vmatprep.subr.bf16.mxu0 %v1484
        %3297 = vmatpush1.bf16.msra.mxu0 %v1483
        %3298 = vmatprep.subr.bf16.mxu0 %v1488
        %3299 = vmatpush1.bf16.msra.mxu0 %v1487
        %3300 = vmatprep.subr.bf16.mxu0 %v1492
        %3301 = vmatpush1.bf16.msra.mxu0 %v1491
        %3302 = vmatprep.subr.bf16.mxu0 %v1496
        %3303 = vmatpush1.bf16.msra.mxu0 %v1495
        %3304 = vmatprep.subr.bf16.mxu0 %v1500
        %3305 = vmatpush1.bf16.msra.mxu0 %v1499
        %3306 = vmatprep.subr.bf16.mxu0 %v1504
        %3307 = vmatpush1.bf16.msra.mxu0 %v1503
        %3308 = vmatprep.subr.bf16.mxu0 %v1508
        %3309 = vmatpush1.bf16.msra.mxu0 %v1507
        %3310 = vmatprep.subr.bf16.mxu0 %v1512
        %3311 = vmatpush1.bf16.msra.mxu0 %v1511
        %3312 = vmatprep.subr.bf16.mxu0 %v1516
        %3313 = vmatpush1.bf16.msra.mxu0 %v1515
        %3314 = vmatprep.subr.bf16.mxu0 %v1520
        %3315 = vmatpush1.bf16.msra.mxu0 %v1519
        %3316 = vmatprep.mubr.bf16.mxu0 %v2818
        %3317 = vmatmul.mubr.bf16.gmra.mrb[0].mxu0 %v2816
        %v3318 = vpop.f32.mrb[0].mxu0
        %v3319 = vadd.f32 %v3278, %v3318
        %v3320 = vpop.f32.mrb[0].mxu0
        %v3321 = vadd.f32 %v3280, %v3320
        %v3322 = vpop.f32.mrb[0].mxu0
        %v3323 = vpop.f32.mrb[0].mxu0
        %3324 = vdwg.mxu0
        %3325 = vmatprep.subr.bf16.mxu0 %v1524
        %3326 = vmatpush1.bf16.msra.mxu0 %v1523
        %3327 = vmatprep.subr.bf16.mxu0 %v1528
        %3328 = vmatpush1.bf16.msra.mxu0 %v1527
        %3329 = vmatprep.subr.bf16.mxu0 %v1532
        %3330 = vmatpush1.bf16.msra.mxu0 %v1531
        %3331 = vmatprep.subr.bf16.mxu0 %v1536
        %3332 = vmatpush1.bf16.msra.mxu0 %v1535
        %3333 = vmatprep.subr.bf16.mxu0 %v1540
        %3334 = vmatpush1.bf16.msra.mxu0 %v1539
        %3335 = vmatprep.subr.bf16.mxu0 %v1544
        %3336 = vmatpush1.bf16.msra.mxu0 %v1543
        %3337 = vmatprep.subr.bf16.mxu0 %v1548
        %3338 = vmatpush1.bf16.msra.mxu0 %v1547
        %3339 = vmatprep.subr.bf16.mxu0 %v1552
        %3340 = vmatpush1.bf16.msra.mxu0 %v1551
        %3341 = vmatprep.subr.bf16.mxu0 %v1556
        %3342 = vmatpush1.bf16.msra.mxu0 %v1555
        %3343 = vmatprep.subr.bf16.mxu0 %v1560
        %3344 = vmatpush1.bf16.msra.mxu0 %v1559
        %3345 = vmatprep.subr.bf16.mxu0 %v1564
        %3346 = vmatpush1.bf16.msra.mxu0 %v1563
        %3347 = vmatprep.subr.bf16.mxu0 %v1568
        %3348 = vmatpush1.bf16.msra.mxu0 %v1567
        %3349 = vmatprep.subr.bf16.mxu0 %v1572
        %3350 = vmatpush1.bf16.msra.mxu0 %v1571
        %3351 = vmatprep.subr.bf16.mxu0 %v1576
        %3352 = vmatpush1.bf16.msra.mxu0 %v1575
        %3353 = vmatprep.subr.bf16.mxu0 %v1580
        %3354 = vmatpush1.bf16.msra.mxu0 %v1579
        %3355 = vmatprep.subr.bf16.mxu0 %v1584
        %3356 = vmatpush1.bf16.msra.mxu0 %v1583
        %3357 = vmatprep.mubr.bf16.mxu0 %v2815
        %3358 = vmatmul.mubr.bf16.gmra.mrb[0].mxu0 %v2801
        %v3359 = vpop.f32.mrb[0].mxu0
        %v3360 = vadd.f32 %v3319, %v3359
        %v3361 = vpop.f32.mrb[0].mxu0
        %v3362 = vadd.f32 %v3321, %v3361
        %v3363 = vpop.f32.mrb[0].mxu0
        %v3364 = vpop.f32.mrb[0].mxu0
        %3365 = vdwg.mxu0
        %3366 = vmatprep.subr.bf16.mxu0 %v1588
        %3367 = vmatpush1.bf16.msra.mxu0 %v1587
        %3368 = vmatprep.subr.bf16.mxu0 %v1592
        %3369 = vmatpush1.bf16.msra.mxu0 %v1591
        %3370 = vmatprep.subr.bf16.mxu0 %v1596
        %3371 = vmatpush1.bf16.msra.mxu0 %v1595
        %3372 = vmatprep.subr.bf16.mxu0 %v1600
        %3373 = vmatpush1.bf16.msra.mxu0 %v1599
        %3374 = vmatprep.subr.bf16.mxu0 %v1604
        %3375 = vmatpush1.bf16.msra.mxu0 %v1603
        %3376 = vmatprep.subr.bf16.mxu0 %v1608
        %3377 = vmatpush1.bf16.msra.mxu0 %v1607
        %3378 = vmatprep.subr.bf16.mxu0 %v1612
        %3379 = vmatpush1.bf16.msra.mxu0 %v1611
        %3380 = vmatprep.subr.bf16.mxu0 %v1616
        %3381 = vmatpush1.bf16.msra.mxu0 %v1615
        %3382 = vmatprep.subr.bf16.mxu0 %v1620
        %3383 = vmatpush1.bf16.msra.mxu0 %v1619
        %3384 = vmatprep.subr.bf16.mxu0 %v1624
        %3385 = vmatpush1.bf16.msra.mxu0 %v1623
        %3386 = vmatprep.subr.bf16.mxu0 %v1628
        %3387 = vmatpush1.bf16.msra.mxu0 %v1627
        %3388 = vmatprep.subr.bf16.mxu0 %v1632
        %3389 = vmatpush1.bf16.msra.mxu0 %v1631
        %3390 = vmatprep.subr.bf16.mxu0 %v1636
        %3391 = vmatpush1.bf16.msra.mxu0 %v1635
        %3392 = vmatprep.subr.bf16.mxu0 %v1640
        %3393 = vmatpush1.bf16.msra.mxu0 %v1639
        %3394 = vmatprep.subr.bf16.mxu0 %v1644
        %3395 = vmatpush1.bf16.msra.mxu0 %v1643
        %3396 = vmatprep.subr.bf16.mxu0 %v1648
        %3397 = vmatpush1.bf16.msra.mxu0 %v1647
        %3398 = vmatprep.mubr.bf16.mxu0 %v2819
        %3399 = vmatmul.mubr.bf16.gmra.mrb[0].mxu0 %v2817
        %v3400 = vpop.f32.mrb[0].mxu0
        %v3401 = vadd.f32 %v3360, %v3400
        %v3402 = vpop.f32.mrb[0].mxu0
        %v3403 = vadd.f32 %v3362, %v3402
        %v3404 = vpop.f32.mrb[0].mxu0
        %v3405 = vpop.f32.mrb[0].mxu0
        %3406 = vdwg.mxu0
        %3407 = vmatprep.subr.bf16.mxu0 %v1652
        %3408 = vmatpush1.bf16.msra.mxu0 %v1651
        %3409 = vmatprep.subr.bf16.mxu0 %v1656
        %3410 = vmatpush1.bf16.msra.mxu0 %v1655
        %3411 = vmatprep.subr.bf16.mxu0 %v1660
        %3412 = vmatpush1.bf16.msra.mxu0 %v1659
        %3413 = vmatprep.subr.bf16.mxu0 %v1664
        %3414 = vmatpush1.bf16.msra.mxu0 %v1663
        %3415 = vmatprep.subr.bf16.mxu0 %v1668
        %3416 = vmatpush1.bf16.msra.mxu0 %v1667
        %3417 = vmatprep.subr.bf16.mxu0 %v1672
        %3418 = vmatpush1.bf16.msra.mxu0 %v1671
        %3419 = vmatprep.subr.bf16.mxu0 %v1676
        %3420 = vmatpush1.bf16.msra.mxu0 %v1675
        %3421 = vmatprep.subr.bf16.mxu0 %v1680
        %3422 = vmatpush1.bf16.msra.mxu0 %v1679
        %3423 = vmatprep.subr.bf16.mxu0 %v1684
        %3424 = vmatpush1.bf16.msra.mxu0 %v1683
        %3425 = vmatprep.subr.bf16.mxu0 %v1688
        %3426 = vmatpush1.bf16.msra.mxu0 %v1687
        %3427 = vmatprep.subr.bf16.mxu0 %v1692
        %3428 = vmatpush1.bf16.msra.mxu0 %v1691
        %3429 = vmatprep.subr.bf16.mxu0 %v1696
        %3430 = vmatpush1.bf16.msra.mxu0 %v1695
        %3431 = vmatprep.subr.bf16.mxu0 %v1700
        %3432 = vmatpush1.bf16.msra.mxu0 %v1699
        %3433 = vmatprep.subr.bf16.mxu0 %v1704
        %3434 = vmatpush1.bf16.msra.mxu0 %v1703
        %3435 = vmatprep.subr.bf16.mxu0 %v1708
        %3436 = vmatpush1.bf16.msra.mxu0 %v1707
        %3437 = vmatprep.subr.bf16.mxu0 %v1712
        %3438 = vmatpush1.bf16.msra.mxu0 %v1711
        %3439 = vmatprep.mubr.bf16.mxu0 %v2857
        %3440 = vmatmul.mubr.bf16.gmra.mrb[0].mxu0 %v2843
        %v3441 = vpop.f32.mrb[0].mxu0
        %v3442 = vadd.f32 %v3401, %v3441
        %v3443 = vpop.f32.mrb[0].mxu0
        %v3444 = vadd.f32 %v3403, %v3443
        %v3445 = vpop.f32.mrb[0].mxu0
        %v3446 = vpop.f32.mrb[0].mxu0
        %3447 = vdwg.mxu0
        %3448 = vmatprep.subr.bf16.mxu0 %v1716
        %3449 = vmatpush1.bf16.msra.mxu0 %v1715
        %3450 = vmatprep.subr.bf16.mxu0 %v1720
        %3451 = vmatpush1.bf16.msra.mxu0 %v1719
        %3452 = vmatprep.subr.bf16.mxu0 %v1724
        %3453 = vmatpush1.bf16.msra.mxu0 %v1723
        %3454 = vmatprep.subr.bf16.mxu0 %v1728
        %3455 = vmatpush1.bf16.msra.mxu0 %v1727
        %3456 = vmatprep.subr.bf16.mxu0 %v1732
        %3457 = vmatpush1.bf16.msra.mxu0 %v1731
        %3458 = vmatprep.subr.bf16.mxu0 %v1736
        %3459 = vmatpush1.bf16.msra.mxu0 %v1735
        %3460 = vmatprep.subr.bf16.mxu0 %v1740
        %3461 = vmatpush1.bf16.msra.mxu0 %v1739
        %3462 = vmatprep.subr.bf16.mxu0 %v1744
        %3463 = vmatpush1.bf16.msra.mxu0 %v1743
        %3464 = vmatprep.subr.bf16.mxu0 %v1748
        %3465 = vmatpush1.bf16.msra.mxu0 %v1747
        %3466 = vmatprep.subr.bf16.mxu0 %v1752
        %3467 = vmatpush1.bf16.msra.mxu0 %v1751
        %3468 = vmatprep.subr.bf16.mxu0 %v1756
        %3469 = vmatpush1.bf16.msra.mxu0 %v1755
        %3470 = vmatprep.subr.bf16.mxu0 %v1760
        %3471 = vmatpush1.bf16.msra.mxu0 %v1759
        %3472 = vmatprep.subr.bf16.mxu0 %v1764
        %3473 = vmatpush1.bf16.msra.mxu0 %v1763
        %3474 = vmatprep.subr.bf16.mxu0 %v1768
        %3475 = vmatpush1.bf16.msra.mxu0 %v1767
        %3476 = vmatprep.subr.bf16.mxu0 %v1772
        %3477 = vmatpush1.bf16.msra.mxu0 %v1771
        %3478 = vmatprep.subr.bf16.mxu0 %v1776
        %3479 = vmatpush1.bf16.msra.mxu0 %v1775
        %3480 = vmatprep.mubr.bf16.mxu0 %v2867
        %3481 = vmatmul.mubr.bf16.gmra.mrb[0].mxu0 %v2865
        %v3482 = vpop.f32.mrb[0].mxu0
        %v3483 = vadd.f32 %v3442, %v3482
        %v3484 = vpop.f32.mrb[0].mxu0
        %v3485 = vadd.f32 %v3444, %v3484
        %v3486 = vpop.f32.mrb[0].mxu0
        %v3487 = vpop.f32.mrb[0].mxu0
        %3488 = vdwg.mxu0
        %3489 = vmatprep.subr.bf16.mxu0 %v1780
        %3490 = vmatpush1.bf16.msra.mxu0 %v1779
        %3491 = vmatprep.subr.bf16.mxu0 %v1784
        %3492 = vmatpush1.bf16.msra.mxu0 %v1783
        %3493 = vmatprep.subr.bf16.mxu0 %v1788
        %3494 = vmatpush1.bf16.msra.mxu0 %v1787
        %3495 = vmatprep.subr.bf16.mxu0 %v1792
        %3496 = vmatpush1.bf16.msra.mxu0 %v1791
        %3497 = vmatprep.subr.bf16.mxu0 %v1796
        %3498 = vmatpush1.bf16.msra.mxu0 %v1795
        %3499 = vmatprep.subr.bf16.mxu0 %v1800
        %3500 = vmatpush1.bf16.msra.mxu0 %v1799
        %3501 = vmatprep.subr.bf16.mxu0 %v1804
        %3502 = vmatpush1.bf16.msra.mxu0 %v1803
        %3503 = vmatprep.subr.bf16.mxu0 %v1808
        %3504 = vmatpush1.bf16.msra.mxu0 %v1807
        %3505 = vmatprep.subr.bf16.mxu0 %v1812
        %3506 = vmatpush1.bf16.msra.mxu0 %v1811
        %3507 = vmatprep.subr.bf16.mxu0 %v1816
        %3508 = vmatpush1.bf16.msra.mxu0 %v1815
        %3509 = vmatprep.subr.bf16.mxu0 %v1820
        %3510 = vmatpush1.bf16.msra.mxu0 %v1819
        %3511 = vmatprep.subr.bf16.mxu0 %v1824
        %3512 = vmatpush1.bf16.msra.mxu0 %v1823
        %3513 = vmatprep.subr.bf16.mxu0 %v1828
        %3514 = vmatpush1.bf16.msra.mxu0 %v1827
        %3515 = vmatprep.subr.bf16.mxu0 %v1832
        %3516 = vmatpush1.bf16.msra.mxu0 %v1831
        %3517 = vmatprep.subr.bf16.mxu0 %v1836
        %3518 = vmatpush1.bf16.msra.mxu0 %v1835
        %3519 = vmatprep.subr.bf16.mxu0 %v1840
        %3520 = vmatpush1.bf16.msra.mxu0 %v1839
        %3521 = vmatprep.mubr.bf16.mxu0 %v2864
        %3522 = vmatmul.mubr.bf16.gmra.mrb[0].mxu0 %v2850
        %v3523 = vpop.f32.mrb[0].mxu0
        %v3524 = vadd.f32 %v3483, %v3523
        %v3525 = vpop.f32.mrb[0].mxu0
        %v3526 = vadd.f32 %v3485, %v3525
        %v3527 = vpop.f32.mrb[0].mxu0
        %v3528 = vpop.f32.mrb[0].mxu0
        %3529 = vdwg.mxu0
        %3530 = vmatprep.subr.bf16.mxu0 %v1844
        %3531 = vmatpush1.bf16.msra.mxu0 %v1843
        %3532 = vmatprep.subr.bf16.mxu0 %v1848
        %3533 = vmatpush1.bf16.msra.mxu0 %v1847
        %3534 = vmatprep.subr.bf16.mxu0 %v1852
        %3535 = vmatpush1.bf16.msra.mxu0 %v1851
        %3536 = vmatprep.subr.bf16.mxu0 %v1856
        %3537 = vmatpush1.bf16.msra.mxu0 %v1855
        %3538 = vmatprep.subr.bf16.mxu0 %v1860
        %3539 = vmatpush1.bf16.msra.mxu0 %v1859
        %3540 = vmatprep.subr.bf16.mxu0 %v1864
        %3541 = vmatpush1.bf16.msra.mxu0 %v1863
        %3542 = vmatprep.subr.bf16.mxu0 %v1868
        %3543 = vmatpush1.bf16.msra.mxu0 %v1867
        %3544 = vmatprep.subr.bf16.mxu0 %v1872
        %3545 = vmatpush1.bf16.msra.mxu0 %v1871
        %3546 = vmatprep.subr.bf16.mxu0 %v1876
        %3547 = vmatpush1.bf16.msra.mxu0 %v1875
        %3548 = vmatprep.subr.bf16.mxu0 %v1880
        %3549 = vmatpush1.bf16.msra.mxu0 %v1879
        %3550 = vmatprep.subr.bf16.mxu0 %v1884
        %3551 = vmatpush1.bf16.msra.mxu0 %v1883
        %3552 = vmatprep.subr.bf16.mxu0 %v1888
        %3553 = vmatpush1.bf16.msra.mxu0 %v1887
        %3554 = vmatprep.subr.bf16.mxu0 %v1892
        %3555 = vmatpush1.bf16.msra.mxu0 %v1891
        %3556 = vmatprep.subr.bf16.mxu0 %v1896
        %3557 = vmatpush1.bf16.msra.mxu0 %v1895
        %3558 = vmatprep.subr.bf16.mxu0 %v1900
        %3559 = vmatpush1.bf16.msra.mxu0 %v1899
        %3560 = vmatprep.subr.bf16.mxu0 %v1904
        %3561 = vmatpush1.bf16.msra.mxu0 %v1903
        %3562 = vmatprep.mubr.bf16.mxu0 %v2868
        %3563 = vmatmul.mubr.bf16.gmra.mrb[0].mxu0 %v2866
        %v3564 = vpop.f32.mrb[0].mxu0
        %v3565 = vadd.f32 %v3524, %v3564
        %v3566 = vpop.f32.mrb[0].mxu0
        %v3567 = vadd.f32 %v3526, %v3566
        %v3568 = vpop.f32.mrb[0].mxu0
        %v3569 = vpop.f32.mrb[0].mxu0
        %3570 = vdwg.mxu0
        %3571 = vmatprep.subr.bf16.mxu0 %v1908
        %3572 = vmatpush1.bf16.msra.mxu0 %v1907
        %3573 = vmatprep.subr.bf16.mxu0 %v1912
        %3574 = vmatpush1.bf16.msra.mxu0 %v1911
        %3575 = vmatprep.subr.bf16.mxu0 %v1916
        %3576 = vmatpush1.bf16.msra.mxu0 %v1915
        %3577 = vmatprep.subr.bf16.mxu0 %v1920
        %3578 = vmatpush1.bf16.msra.mxu0 %v1919
        %3579 = vmatprep.subr.bf16.mxu0 %v1924
        %3580 = vmatpush1.bf16.msra.mxu0 %v1923
        %3581 = vmatprep.subr.bf16.mxu0 %v1928
        %3582 = vmatpush1.bf16.msra.mxu0 %v1927
        %3583 = vmatprep.subr.bf16.mxu0 %v1932
        %3584 = vmatpush1.bf16.msra.mxu0 %v1931
        %3585 = vmatprep.subr.bf16.mxu0 %v1936
        %3586 = vmatpush1.bf16.msra.mxu0 %v1935
        %3587 = vmatprep.subr.bf16.mxu0 %v1940
        %3588 = vmatpush1.bf16.msra.mxu0 %v1939
        %3589 = vmatprep.subr.bf16.mxu0 %v1944
        %3590 = vmatpush1.bf16.msra.mxu0 %v1943
        %3591 = vmatprep.subr.bf16.mxu0 %v1948
        %3592 = vmatpush1.bf16.msra.mxu0 %v1947
        %3593 = vmatprep.subr.bf16.mxu0 %v1952
        %3594 = vmatpush1.bf16.msra.mxu0 %v1951
        %3595 = vmatprep.subr.bf16.mxu0 %v1956
        %3596 = vmatpush1.bf16.msra.mxu0 %v1955
        %3597 = vmatprep.subr.bf16.mxu0 %v1960
        %3598 = vmatpush1.bf16.msra.mxu0 %v1959
        %3599 = vmatprep.subr.bf16.mxu0 %v1964
        %3600 = vmatpush1.bf16.msra.mxu0 %v1963
        %3601 = vmatprep.subr.bf16.mxu0 %v1968
        %3602 = vmatpush1.bf16.msra.mxu0 %v1967
        %3603 = vmatprep.mubr.bf16.mxu0 %v2906
        %3604 = vmatmul.mubr.bf16.gmra.mrb[0].mxu0 %v2892
        %v3605 = vpop.f32.mrb[0].mxu0
        %v3606 = vadd.f32 %v3565, %v3605
        %v3607 = vpop.f32.mrb[0].mxu0
        %v3608 = vadd.f32 %v3567, %v3607
        %v3609 = vpop.f32.mrb[0].mxu0
        %v3610 = vpop.f32.mrb[0].mxu0
        %3611 = vdwg.mxu0
        %3612 = vmatprep.subr.bf16.mxu0 %v1972
        %3613 = vmatpush1.bf16.msra.mxu0 %v1971
        %3614 = vmatprep.subr.bf16.mxu0 %v1976
        %3615 = vmatpush1.bf16.msra.mxu0 %v1975
        %3616 = vmatprep.subr.bf16.mxu0 %v1980
        %3617 = vmatpush1.bf16.msra.mxu0 %v1979
        %3618 = vmatprep.subr.bf16.mxu0 %v1984
        %3619 = vmatpush1.bf16.msra.mxu0 %v1983
        %3620 = vmatprep.subr.bf16.mxu0 %v1988
        %3621 = vmatpush1.bf16.msra.mxu0 %v1987
        %3622 = vmatprep.subr.bf16.mxu0 %v1992
        %3623 = vmatpush1.bf16.msra.mxu0 %v1991
        %3624 = vmatprep.subr.bf16.mxu0 %v1996
        %3625 = vmatpush1.bf16.msra.mxu0 %v1995
        %3626 = vmatprep.subr.bf16.mxu0 %v2000
        %3627 = vmatpush1.bf16.msra.mxu0 %v1999
        %3628 = vmatprep.subr.bf16.mxu0 %v2004
        %3629 = vmatpush1.bf16.msra.mxu0 %v2003
        %3630 = vmatprep.subr.bf16.mxu0 %v2008
        %3631 = vmatpush1.bf16.msra.mxu0 %v2007
        %3632 = vmatprep.subr.bf16.mxu0 %v2012
        %3633 = vmatpush1.bf16.msra.mxu0 %v2011
        %3634 = vmatprep.subr.bf16.mxu0 %v2016
        %3635 = vmatpush1.bf16.msra.mxu0 %v2015
        %3636 = vmatprep.subr.bf16.mxu0 %v2020
        %3637 = vmatpush1.bf16.msra.mxu0 %v2019
        %3638 = vmatprep.subr.bf16.mxu0 %v2024
        %3639 = vmatpush1.bf16.msra.mxu0 %v2023
        %3640 = vmatprep.subr.bf16.mxu0 %v2028
        %3641 = vmatpush1.bf16.msra.mxu0 %v2027
        %3642 = vmatprep.subr.bf16.mxu0 %v2032
        %3643 = vmatpush1.bf16.msra.mxu0 %v2031
        %3644 = vmatprep.mubr.bf16.mxu0 %v2916
        %3645 = vmatmul.mubr.bf16.gmra.mrb[0].mxu0 %v2914
        %v3646 = vpop.f32.mrb[0].mxu0
        %v3647 = vadd.f32 %v3606, %v3646
        %v3648 = vpop.f32.mrb[0].mxu0
        %v3649 = vadd.f32 %v3608, %v3648
        %v3650 = vpop.f32.mrb[0].mxu0
        %v3651 = vpop.f32.mrb[0].mxu0
        %3652 = vdwg.mxu0
        %3653 = vmatprep.subr.bf16.mxu0 %v2036
        %3654 = vmatpush1.bf16.msra.mxu0 %v2035
        %3655 = vmatprep.subr.bf16.mxu0 %v2040
        %3656 = vmatpush1.bf16.msra.mxu0 %v2039
        %3657 = vmatprep.subr.bf16.mxu0 %v2044
        %3658 = vmatpush1.bf16.msra.mxu0 %v2043
        %3659 = vmatprep.subr.bf16.mxu0 %v2048
        %3660 = vmatpush1.bf16.msra.mxu0 %v2047
        %3661 = vmatprep.subr.bf16.mxu0 %v2052
        %3662 = vmatpush1.bf16.msra.mxu0 %v2051
        %3663 = vmatprep.subr.bf16.mxu0 %v2056
        %3664 = vmatpush1.bf16.msra.mxu0 %v2055
        %3665 = vmatprep.subr.bf16.mxu0 %v2060
        %3666 = vmatpush1.bf16.msra.mxu0 %v2059
        %3667 = vmatprep.subr.bf16.mxu0 %v2064
        %3668 = vmatpush1.bf16.msra.mxu0 %v2063
        %3669 = vmatprep.subr.bf16.mxu0 %v2068
        %3670 = vmatpush1.bf16.msra.mxu0 %v2067
        %3671 = vmatprep.subr.bf16.mxu0 %v2072
        %3672 = vmatpush1.bf16.msra.mxu0 %v2071
        %3673 = vmatprep.subr.bf16.mxu0 %v2076
        %3674 = vmatpush1.bf16.msra.mxu0 %v2075
        %3675 = vmatprep.subr.bf16.mxu0 %v2080
        %3676 = vmatpush1.bf16.msra.mxu0 %v2079
        %3677 = vmatprep.subr.bf16.mxu0 %v2084
        %3678 = vmatpush1.bf16.msra.mxu0 %v2083
        %3679 = vmatprep.subr.bf16.mxu0 %v2088
        %3680 = vmatpush1.bf16.msra.mxu0 %v2087
        %3681 = vmatprep.subr.bf16.mxu0 %v2092
        %3682 = vmatpush1.bf16.msra.mxu0 %v2091
        %3683 = vmatprep.subr.bf16.mxu0 %v2096
        %3684 = vmatpush1.bf16.msra.mxu0 %v2095
        %3685 = vmatprep.mubr.bf16.mxu0 %v2913
        %3686 = vmatmul.mubr.bf16.gmra.mrb[0].mxu0 %v2899
        %v3687 = vpop.f32.mrb[0].mxu0
        %v3688 = vadd.f32 %v3647, %v3687
        %v3689 = vpop.f32.mrb[0].mxu0
        %v3690 = vadd.f32 %v3649, %v3689
        %v3691 = vpop.f32.mrb[0].mxu0
        %v3692 = vpop.f32.mrb[0].mxu0
        %3693 = vdwg.mxu0
        %3694 = vmatprep.subr.bf16.mxu0 %v2100
        %3695 = vmatpush1.bf16.msra.mxu0 %v2099
        %3696 = vmatprep.subr.bf16.mxu0 %v2104
        %3697 = vmatpush1.bf16.msra.mxu0 %v2103
        %3698 = vmatprep.subr.bf16.mxu0 %v2108
        %3699 = vmatpush1.bf16.msra.mxu0 %v2107
        %3700 = vmatprep.subr.bf16.mxu0 %v2112
        %3701 = vmatpush1.bf16.msra.mxu0 %v2111
        %3702 = vmatprep.subr.bf16.mxu0 %v2116
        %3703 = vmatpush1.bf16.msra.mxu0 %v2115
        %3704 = vmatprep.subr.bf16.mxu0 %v2120
        %3705 = vmatpush1.bf16.msra.mxu0 %v2119
        %3706 = vmatprep.subr.bf16.mxu0 %v2124
        %3707 = vmatpush1.bf16.msra.mxu0 %v2123
        %3708 = vmatprep.subr.bf16.mxu0 %v2128
        %3709 = vmatpush1.bf16.msra.mxu0 %v2127
        %3710 = vmatprep.subr.bf16.mxu0 %v2132
        %3711 = vmatpush1.bf16.msra.mxu0 %v2131
        %3712 = vmatprep.subr.bf16.mxu0 %v2136
        %3713 = vmatpush1.bf16.msra.mxu0 %v2135
        %3714 = vmatprep.subr.bf16.mxu0 %v2140
        %3715 = vmatpush1.bf16.msra.mxu0 %v2139
        %3716 = vmatprep.subr.bf16.mxu0 %v2144
        %3717 = vmatpush1.bf16.msra.mxu0 %v2143
        %3718 = vmatprep.subr.bf16.mxu0 %v2148
        %3719 = vmatpush1.bf16.msra.mxu0 %v2147
        %3720 = vmatprep.subr.bf16.mxu0 %v2152
        %3721 = vmatpush1.bf16.msra.mxu0 %v2151
        %3722 = vmatprep.subr.bf16.mxu0 %v2156
        %3723 = vmatpush1.bf16.msra.mxu0 %v2155
        %3724 = vmatprep.subr.bf16.mxu0 %v2160
        %3725 = vmatpush1.bf16.msra.mxu0 %v2159
        %3726 = vmatprep.mubr.bf16.mxu0 %v2917
        %3727 = vmatmul.mubr.bf16.gmra.mrb[0].mxu0 %v2915
        %v3728 = vpop.f32.mrb[0].mxu0
        %v3729 = vadd.f32 %v3688, %v3728
        %v3730 = vpop.f32.mrb[0].mxu0
        %v3731 = vadd.f32 %v3690, %v3730
        %v3732 = vpop.f32.mrb[0].mxu0
        %v3733 = vpop.f32.mrb[0].mxu0
        %3734 = vdwg.mxu0
        %3735 = vmatprep.subr.bf16.mxu0 %v2164
        %3736 = vmatpush1.bf16.msra.mxu0 %v2163
        %3737 = vmatprep.subr.bf16.mxu0 %v2168
        %3738 = vmatpush1.bf16.msra.mxu0 %v2167
        %3739 = vmatprep.subr.bf16.mxu0 %v2172
        %3740 = vmatpush1.bf16.msra.mxu0 %v2171
        %3741 = vmatprep.subr.bf16.mxu0 %v2176
        %3742 = vmatpush1.bf16.msra.mxu0 %v2175
        %3743 = vmatprep.subr.bf16.mxu0 %v2180
        %3744 = vmatpush1.bf16.msra.mxu0 %v2179
        %3745 = vmatprep.subr.bf16.mxu0 %v2184
        %3746 = vmatpush1.bf16.msra.mxu0 %v2183
        %3747 = vmatprep.subr.bf16.mxu0 %v2188
        %3748 = vmatpush1.bf16.msra.mxu0 %v2187
        %3749 = vmatprep.subr.bf16.mxu0 %v2192
        %3750 = vmatpush1.bf16.msra.mxu0 %v2191
        %3751 = vmatprep.subr.bf16.mxu0 %v2196
        %3752 = vmatpush1.bf16.msra.mxu0 %v2195
        %3753 = vmatprep.subr.bf16.mxu0 %v2200
        %3754 = vmatpush1.bf16.msra.mxu0 %v2199
        %3755 = vmatprep.subr.bf16.mxu0 %v2204
        %3756 = vmatpush1.bf16.msra.mxu0 %v2203
        %3757 = vmatprep.subr.bf16.mxu0 %v2208
        %3758 = vmatpush1.bf16.msra.mxu0 %v2207
        %3759 = vmatprep.subr.bf16.mxu0 %v2212
        %3760 = vmatpush1.bf16.msra.mxu0 %v2211
        %3761 = vmatprep.subr.bf16.mxu0 %v2216
        %3762 = vmatpush1.bf16.msra.mxu0 %v2215
        %3763 = vmatprep.subr.bf16.mxu0 %v2220
        %3764 = vmatpush1.bf16.msra.mxu0 %v2219
        %3765 = vmatprep.subr.bf16.mxu0 %v2224
        %3766 = vmatpush1.bf16.msra.mxu0 %v2223
        %3767 = vmatprep.mubr.bf16.mxu0 %v2955
        %3768 = vmatmul.mubr.bf16.gmra.mrb[0].mxu0 %v2941
        %v3769 = vpop.f32.mrb[0].mxu0
        %v3770 = vadd.f32 %v3729, %v3769
        %v3771 = vpop.f32.mrb[0].mxu0
        %v3772 = vadd.f32 %v3731, %v3771
        %v3773 = vpop.f32.mrb[0].mxu0
        %v3774 = vpop.f32.mrb[0].mxu0
        %3775 = vdwg.mxu0
        %3776 = vmatprep.subr.bf16.mxu0 %v2228
        %3777 = vmatpush1.bf16.msra.mxu0 %v2227
        %3778 = vmatprep.subr.bf16.mxu0 %v2232
        %3779 = vmatpush1.bf16.msra.mxu0 %v2231
        %3780 = vmatprep.subr.bf16.mxu0 %v2236
        %3781 = vmatpush1.bf16.msra.mxu0 %v2235
        %3782 = vmatprep.subr.bf16.mxu0 %v2240
        %3783 = vmatpush1.bf16.msra.mxu0 %v2239
        %3784 = vmatprep.subr.bf16.mxu0 %v2244
        %3785 = vmatpush1.bf16.msra.mxu0 %v2243
        %3786 = vmatprep.subr.bf16.mxu0 %v2248
        %3787 = vmatpush1.bf16.msra.mxu0 %v2247
        %3788 = vmatprep.subr.bf16.mxu0 %v2252
        %3789 = vmatpush1.bf16.msra.mxu0 %v2251
        %3790 = vmatprep.subr.bf16.mxu0 %v2256
        %3791 = vmatpush1.bf16.msra.mxu0 %v2255
        %3792 = vmatprep.subr.bf16.mxu0 %v2260
        %3793 = vmatpush1.bf16.msra.mxu0 %v2259
        %3794 = vmatprep.subr.bf16.mxu0 %v2264
        %3795 = vmatpush1.bf16.msra.mxu0 %v2263
        %3796 = vmatprep.subr.bf16.mxu0 %v2268
        %3797 = vmatpush1.bf16.msra.mxu0 %v2267
        %3798 = vmatprep.subr.bf16.mxu0 %v2272
        %3799 = vmatpush1.bf16.msra.mxu0 %v2271
        %3800 = vmatprep.subr.bf16.mxu0 %v2276
        %3801 = vmatpush1.bf16.msra.mxu0 %v2275
        %3802 = vmatprep.subr.bf16.mxu0 %v2280
        %3803 = vmatpush1.bf16.msra.mxu0 %v2279
        %3804 = vmatprep.subr.bf16.mxu0 %v2284
        %3805 = vmatpush1.bf16.msra.mxu0 %v2283
        %3806 = vmatprep.subr.bf16.mxu0 %v2288
        %3807 = vmatpush1.bf16.msra.mxu0 %v2287
        %3808 = vmatprep.mubr.bf16.mxu0 %v2965
        %3809 = vmatmul.mubr.bf16.gmra.mrb[0].mxu0 %v2963
        %v3810 = vpop.f32.mrb[0].mxu0
        %v3811 = vadd.f32 %v3770, %v3810
        %v3812 = vpop.f32.mrb[0].mxu0
        %v3813 = vadd.f32 %v3772, %v3812
        %v3814 = vpop.f32.mrb[0].mxu0
        %v3815 = vpop.f32.mrb[0].mxu0
        %3816 = vdwg.mxu0
        %3817 = vmatprep.subr.bf16.mxu0 %v2292
        %3818 = vmatpush1.bf16.msra.mxu0 %v2291
        %3819 = vmatprep.subr.bf16.mxu0 %v2296
        %3820 = vmatpush1.bf16.msra.mxu0 %v2295
        %3821 = vmatprep.subr.bf16.mxu0 %v2300
        %3822 = vmatpush1.bf16.msra.mxu0 %v2299
        %3823 = vmatprep.subr.bf16.mxu0 %v2304
        %3824 = vmatpush1.bf16.msra.mxu0 %v2303
        %3825 = vmatprep.subr.bf16.mxu0 %v2308
        %3826 = vmatpush1.bf16.msra.mxu0 %v2307
        %3827 = vmatprep.subr.bf16.mxu0 %v2312
        %3828 = vmatpush1.bf16.msra.mxu0 %v2311
        %3829 = vmatprep.subr.bf16.mxu0 %v2316
        %3830 = vmatpush1.bf16.msra.mxu0 %v2315
        %3831 = vmatprep.subr.bf16.mxu0 %v2320
        %3832 = vmatpush1.bf16.msra.mxu0 %v2319
        %3833 = vmatprep.subr.bf16.mxu0 %v2324
        %3834 = vmatpush1.bf16.msra.mxu0 %v2323
        %3835 = vmatprep.subr.bf16.mxu0 %v2328
        %3836 = vmatpush1.bf16.msra.mxu0 %v2327
        %3837 = vmatprep.subr.bf16.mxu0 %v2332
        %3838 = vmatpush1.bf16.msra.mxu0 %v2331
        %3839 = vmatprep.subr.bf16.mxu0 %v2336
        %3840 = vmatpush1.bf16.msra.mxu0 %v2335
        %3841 = vmatprep.subr.bf16.mxu0 %v2340
        %3842 = vmatpush1.bf16.msra.mxu0 %v2339
        %3843 = vmatprep.subr.bf16.mxu0 %v2344
        %3844 = vmatpush1.bf16.msra.mxu0 %v2343
        %3845 = vmatprep.subr.bf16.mxu0 %v2348
        %3846 = vmatpush1.bf16.msra.mxu0 %v2347
        %3847 = vmatprep.subr.bf16.mxu0 %v2352
        %3848 = vmatpush1.bf16.msra.mxu0 %v2351
        %3849 = vmatprep.mubr.bf16.mxu0 %v2962
        %3850 = vmatmul.mubr.bf16.gmra.mrb[0].mxu0 %v2948
        %v3851 = vpop.f32.mrb[0].mxu0
        %v3852 = vadd.f32 %v3811, %v3851
        %v3853 = vpop.f32.mrb[0].mxu0
        %v3854 = vadd.f32 %v3813, %v3853
        %v3855 = vpop.f32.mrb[0].mxu0
        %v3856 = vpop.f32.mrb[0].mxu0
        %3857 = vdwg.mxu0
        %3858 = vmatprep.subr.bf16.mxu0 %v2356
        %3859 = vmatpush1.bf16.msra.mxu0 %v2355
        %3860 = vmatprep.subr.bf16.mxu0 %v2360
        %3861 = vmatpush1.bf16.msra.mxu0 %v2359
        %3862 = vmatprep.subr.bf16.mxu0 %v2364
        %3863 = vmatpush1.bf16.msra.mxu0 %v2363
        %3864 = vmatprep.subr.bf16.mxu0 %v2368
        %3865 = vmatpush1.bf16.msra.mxu0 %v2367
        %3866 = vmatprep.subr.bf16.mxu0 %v2372
        %3867 = vmatpush1.bf16.msra.mxu0 %v2371
        %3868 = vmatprep.subr.bf16.mxu0 %v2376
        %3869 = vmatpush1.bf16.msra.mxu0 %v2375
        %3870 = vmatprep.subr.bf16.mxu0 %v2380
        %3871 = vmatpush1.bf16.msra.mxu0 %v2379
        %3872 = vmatprep.subr.bf16.mxu0 %v2384
        %3873 = vmatpush1.bf16.msra.mxu0 %v2383
        %3874 = vmatprep.subr.bf16.mxu0 %v2388
        %3875 = vmatpush1.bf16.msra.mxu0 %v2387
        %3876 = vmatprep.subr.bf16.mxu0 %v2392
        %3877 = vmatpush1.bf16.msra.mxu0 %v2391
        %3878 = vmatprep.subr.bf16.mxu0 %v2396
        %3879 = vmatpush1.bf16.msra.mxu0 %v2395
        %3880 = vmatprep.subr.bf16.mxu0 %v2400
        %3881 = vmatpush1.bf16.msra.mxu0 %v2399
        %3882 = vmatprep.subr.bf16.mxu0 %v2404
        %3883 = vmatpush1.bf16.msra.mxu0 %v2403
        %3884 = vmatprep.subr.bf16.mxu0 %v2408
        %3885 = vmatpush1.bf16.msra.mxu0 %v2407
        %3886 = vmatprep.subr.bf16.mxu0 %v2412
        %3887 = vmatpush1.bf16.msra.mxu0 %v2411
        %3888 = vmatprep.subr.bf16.mxu0 %v2416
        %3889 = vmatpush1.bf16.msra.mxu0 %v2415
        %3890 = vmatprep.mubr.bf16.mxu0 %v2966
        %3891 = vmatmul.mubr.bf16.gmra.mrb[0].mxu0 %v2964
        %v3892 = vpop.f32.mrb[0].mxu0
        %v3893 = vadd.f32 %v3852, %v3892
        %v3894 = vpop.f32.mrb[0].mxu0
        %v3895 = vadd.f32 %v3854, %v3894
        %v3896 = vpop.f32.mrb[0].mxu0
        %v3897 = vpop.f32.mrb[0].mxu0
        %3898 = vdwg.mxu0
        %3899 = vmatprep.subr.bf16.mxu0 %v2420
        %3900 = vmatpush1.bf16.msra.mxu0 %v2419
        %3901 = vmatprep.subr.bf16.mxu0 %v2424
        %3902 = vmatpush1.bf16.msra.mxu0 %v2423
        %3903 = vmatprep.subr.bf16.mxu0 %v2428
        %3904 = vmatpush1.bf16.msra.mxu0 %v2427
        %3905 = vmatprep.subr.bf16.mxu0 %v2432
        %3906 = vmatpush1.bf16.msra.mxu0 %v2431
        %3907 = vmatprep.subr.bf16.mxu0 %v2436
        %3908 = vmatpush1.bf16.msra.mxu0 %v2435
        %3909 = vmatprep.subr.bf16.mxu0 %v2440
        %3910 = vmatpush1.bf16.msra.mxu0 %v2439
        %3911 = vmatprep.subr.bf16.mxu0 %v2444
        %3912 = vmatpush1.bf16.msra.mxu0 %v2443
        %3913 = vmatprep.subr.bf16.mxu0 %v2448
        %3914 = vmatpush1.bf16.msra.mxu0 %v2447
        %3915 = vmatprep.subr.bf16.mxu0 %v2452
        %3916 = vmatpush1.bf16.msra.mxu0 %v2451
        %3917 = vmatprep.subr.bf16.mxu0 %v2456
        %3918 = vmatpush1.bf16.msra.mxu0 %v2455
        %3919 = vmatprep.subr.bf16.mxu0 %v2460
        %3920 = vmatpush1.bf16.msra.mxu0 %v2459
        %3921 = vmatprep.subr.bf16.mxu0 %v2464
        %3922 = vmatpush1.bf16.msra.mxu0 %v2463
        %3923 = vmatprep.subr.bf16.mxu0 %v2468
        %3924 = vmatpush1.bf16.msra.mxu0 %v2467
        %3925 = vmatprep.subr.bf16.mxu0 %v2472
        %3926 = vmatpush1.bf16.msra.mxu0 %v2471
        %3927 = vmatprep.subr.bf16.mxu0 %v2476
        %3928 = vmatpush1.bf16.msra.mxu0 %v2475
        %3929 = vmatprep.subr.bf16.mxu0 %v2480
        %3930 = vmatpush1.bf16.msra.mxu0 %v2479
        %3931 = vmatprep.mubr.bf16.mxu0 %v3004
        %3932 = vmatmul.mubr.bf16.gmra.mrb[0].mxu0 %v2990
        %v3933 = vpop.f32.mrb[0].mxu0
        %v3934 = vadd.f32 %v3893, %v3933
        %v3935 = vpop.f32.mrb[0].mxu0
        %v3936 = vadd.f32 %v3895, %v3935
        %v3937 = vpop.f32.mrb[0].mxu0
        %v3938 = vpop.f32.mrb[0].mxu0
        %3939 = vdwg.mxu0
        %3940 = vmatprep.subr.bf16.mxu0 %v2484
        %3941 = vmatpush1.bf16.msra.mxu0 %v2483
        %3942 = vmatprep.subr.bf16.mxu0 %v2488
        %3943 = vmatpush1.bf16.msra.mxu0 %v2487
        %3944 = vmatprep.subr.bf16.mxu0 %v2492
        %3945 = vmatpush1.bf16.msra.mxu0 %v2491
        %3946 = vmatprep.subr.bf16.mxu0 %v2496
        %3947 = vmatpush1.bf16.msra.mxu0 %v2495
        %3948 = vmatprep.subr.bf16.mxu0 %v2500
        %3949 = vmatpush1.bf16.msra.mxu0 %v2499
        %3950 = vmatprep.subr.bf16.mxu0 %v2504
        %3951 = vmatpush1.bf16.msra.mxu0 %v2503
        %3952 = vmatprep.subr.bf16.mxu0 %v2508
        %3953 = vmatpush1.bf16.msra.mxu0 %v2507
        %3954 = vmatprep.subr.bf16.mxu0 %v2512
        %3955 = vmatpush1.bf16.msra.mxu0 %v2511
        %3956 = vmatprep.subr.bf16.mxu0 %v2516
        %3957 = vmatpush1.bf16.msra.mxu0 %v2515
        %3958 = vmatprep.subr.bf16.mxu0 %v2520
        %3959 = vmatpush1.bf16.msra.mxu0 %v2519
        %3960 = vmatprep.subr.bf16.mxu0 %v2524
        %3961 = vmatpush1.bf16.msra.mxu0 %v2523
        %3962 = vmatprep.subr.bf16.mxu0 %v2528
        %3963 = vmatpush1.bf16.msra.mxu0 %v2527
        %3964 = vmatprep.subr.bf16.mxu0 %v2532
        %3965 = vmatpush1.bf16.msra.mxu0 %v2531
        %3966 = vmatprep.subr.bf16.mxu0 %v2536
        %3967 = vmatpush1.bf16.msra.mxu0 %v2535
        %3968 = vmatprep.subr.bf16.mxu0 %v2540
        %3969 = vmatpush1.bf16.msra.mxu0 %v2539
        %3970 = vmatprep.subr.bf16.mxu0 %v2544
        %3971 = vmatpush1.bf16.msra.mxu0 %v2543
        %3972 = vmatprep.mubr.bf16.mxu0 %v3014
        %3973 = vmatmul.mubr.bf16.gmra.mrb[0].mxu0 %v3012
        %v3974 = vpop.f32.mrb[0].mxu0
        %v3975 = vadd.f32 %v3934, %v3974
        %v3976 = vpop.f32.mrb[0].mxu0
        %v3977 = vadd.f32 %v3936, %v3976
        %v3978 = vpop.f32.mrb[0].mxu0
        %v3979 = vpop.f32.mrb[0].mxu0
        %3980 = vdwg.mxu0
        %3981 = vmatprep.subr.bf16.mxu0 %v2548
        %3982 = vmatpush1.bf16.msra.mxu0 %v2547
        %3983 = vmatprep.subr.bf16.mxu0 %v2552
        %3984 = vmatpush1.bf16.msra.mxu0 %v2551
        %3985 = vmatprep.subr.bf16.mxu0 %v2556
        %3986 = vmatpush1.bf16.msra.mxu0 %v2555
        %3987 = vmatprep.subr.bf16.mxu0 %v2560
        %3988 = vmatpush1.bf16.msra.mxu0 %v2559
        %3989 = vmatprep.subr.bf16.mxu0 %v2564
        %3990 = vmatpush1.bf16.msra.mxu0 %v2563
        %3991 = vmatprep.subr.bf16.mxu0 %v2568
        %3992 = vmatpush1.bf16.msra.mxu0 %v2567
        %3993 = vmatprep.subr.bf16.mxu0 %v2572
        %3994 = vmatpush1.bf16.msra.mxu0 %v2571
        %3995 = vmatprep.subr.bf16.mxu0 %v2576
        %3996 = vmatpush1.bf16.msra.mxu0 %v2575
        %3997 = vmatprep.subr.bf16.mxu0 %v2580
        %3998 = vmatpush1.bf16.msra.mxu0 %v2579
        %3999 = vmatprep.subr.bf16.mxu0 %v2584
        %4000 = vmatpush1.bf16.msra.mxu0 %v2583
        %4001 = vmatprep.subr.bf16.mxu0 %v2588
        %4002 = vmatpush1.bf16.msra.mxu0 %v2587
        %4003 = vmatprep.subr.bf16.mxu0 %v2592
        %4004 = vmatpush1.bf16.msra.mxu0 %v2591
        %4005 = vmatprep.subr.bf16.mxu0 %v2596
        %4006 = vmatpush1.bf16.msra.mxu0 %v2595
        %4007 = vmatprep.subr.bf16.mxu0 %v2600
        %4008 = vmatpush1.bf16.msra.mxu0 %v2599
        %4009 = vmatprep.subr.bf16.mxu0 %v2604
        %4010 = vmatpush1.bf16.msra.mxu0 %v2603
        %4011 = vmatprep.subr.bf16.mxu0 %v2608
        %4012 = vmatpush1.bf16.msra.mxu0 %v2607
        %4013 = vmatprep.mubr.bf16.mxu0 %v3011
        %4014 = vmatmul.mubr.bf16.gmra.mrb[0].mxu0 %v2997
        %v4015 = vpop.f32.mrb[0].mxu0
        %v4016 = vadd.f32 %v3975, %v4015
        %v4017 = vpop.f32.mrb[0].mxu0
        %v4018 = vadd.f32 %v3977, %v4017
        %v4019 = vpop.f32.mrb[0].mxu0
        %v4020 = vpop.f32.mrb[0].mxu0
        %4021 = vdwg.mxu0
        %4022 = vmatprep.subr.bf16.mxu0 %v2612
        %4023 = vmatpush1.bf16.msra.mxu0 %v2611
        %4024 = vmatprep.subr.bf16.mxu0 %v2616
        %4025 = vmatpush1.bf16.msra.mxu0 %v2615
        %4026 = vmatprep.subr.bf16.mxu0 %v2620
        %4027 = vmatpush1.bf16.msra.mxu0 %v2619
        %4028 = vmatprep.subr.bf16.mxu0 %v2624
        %4029 = vmatpush1.bf16.msra.mxu0 %v2623
        %4030 = vmatprep.subr.bf16.mxu0 %v2628
        %4031 = vmatpush1.bf16.msra.mxu0 %v2627
        %4032 = vmatprep.subr.bf16.mxu0 %v2632
        %4033 = vmatpush1.bf16.msra.mxu0 %v2631
        %4034 = vmatprep.subr.bf16.mxu0 %v2636
        %4035 = vmatpush1.bf16.msra.mxu0 %v2635
        %4036 = vmatprep.subr.bf16.mxu0 %v2640
        %4037 = vmatpush1.bf16.msra.mxu0 %v2639
        %4038 = vmatprep.subr.bf16.mxu0 %v2644
        %4039 = vmatpush1.bf16.msra.mxu0 %v2643
        %4040 = vmatprep.subr.bf16.mxu0 %v2648
        %4041 = vmatpush1.bf16.msra.mxu0 %v2647
        %4042 = vmatprep.subr.bf16.mxu0 %v2652
        %4043 = vmatpush1.bf16.msra.mxu0 %v2651
        %4044 = vmatprep.subr.bf16.mxu0 %v2656
        %4045 = vmatpush1.bf16.msra.mxu0 %v2655
        %4046 = vmatprep.subr.bf16.mxu0 %v2660
        %4047 = vmatpush1.bf16.msra.mxu0 %v2659
        %4048 = vmatprep.subr.bf16.mxu0 %v2664
        %4049 = vmatpush1.bf16.msra.mxu0 %v2663
        %4050 = vmatprep.subr.bf16.mxu0 %v2668
        %4051 = vmatpush1.bf16.msra.mxu0 %v2667
        %4052 = vmatprep.subr.bf16.mxu0 %v2672
        %4053 = vmatpush1.bf16.msra.mxu0 %v2671
        %4054 = vmatprep.mubr.bf16.mxu0 %v3015
        %4055 = vmatmul.mubr.bf16.gmra.mrb[0].mxu0 %v3013
        %v4056 = vpop.f32.mrb[0].mxu0
        %v4057 = vadd.f32 %v4016, %v4056
        %v4058 = vpop.f32.mrb[0].mxu0
        %v4059 = vadd.f32 %v4018, %v4058
        %v4060 = vpop.f32.mrb[0].mxu0
        %v4061 = vpop.f32.mrb[0].mxu0
        %4062 = vdwg.mxu0
        %4063 = vmatprep.subr.bf16.mxu0 %v2676
        %4064 = vmatpush1.bf16.msra.mxu0 %v2675
        %4065 = vmatprep.subr.bf16.mxu0 %v2680
        %4066 = vmatpush1.bf16.msra.mxu0 %v2679
        %4067 = vmatprep.subr.bf16.mxu0 %v2684
        %4068 = vmatpush1.bf16.msra.mxu0 %v2683
        %4069 = vmatprep.subr.bf16.mxu0 %v2688
        %4070 = vmatpush1.bf16.msra.mxu0 %v2687
        %4071 = vmatprep.subr.bf16.mxu0 %v2692
        %4072 = vmatpush1.bf16.msra.mxu0 %v2691
        %4073 = vmatprep.subr.bf16.mxu0 %v2696
        %4074 = vmatpush1.bf16.msra.mxu0 %v2695
        %4075 = vmatprep.subr.bf16.mxu0 %v2700
        %4076 = vmatpush1.bf16.msra.mxu0 %v2699
        %4077 = vmatprep.subr.bf16.mxu0 %v2704
        %4078 = vmatpush1.bf16.msra.mxu0 %v2703
        %4079 = vmatprep.subr.bf16.mxu0 0
        %4080 = vmatpush1.bf16.msra.mxu0 0
        %4081 = vmatprep.subr.bf16.mxu0 0
        %4082 = vmatpush1.bf16.msra.mxu0 0
        %4083 = vmatprep.subr.bf16.mxu0 0
        %4084 = vmatpush1.bf16.msra.mxu0 0
        %4085 = vmatprep.subr.bf16.mxu0 0
        %4086 = vmatpush1.bf16.msra.mxu0 0
        %4087 = vmatprep.subr.bf16.mxu0 0
        %4088 = vmatpush1.bf16.msra.mxu0 0
        %4089 = vmatprep.subr.bf16.mxu0 0
        %4090 = vmatpush1.bf16.msra.mxu0 0
        %4091 = vmatprep.subr.bf16.mxu0 0
        %4092 = vmatpush1.bf16.msra.mxu0 0
        %4093 = vmatprep.subr.bf16.mxu0 0
        %4094 = vmatpush1.bf16.msra.mxu0 0
        %4095 = vmatprep.mubr.bf16.mxu0 0
        %4096 = vmatmul.mubr.bf16.gmra.mrb[0].mxu0 %v3029
        %v4097 = vpop.f32.mrb[0].mxu0
        %v4098 = vadd.f32 %v4057, %v4097
        %v4099 = vpop.f32.mrb[0].mxu0
        %v4100 = vadd.f32 %v4059, %v4099
        %v4101 = vpop.f32.mrb[0].mxu0
        %v4102 = vpop.f32.mrb[0].mxu0
        %4103 = vdwg.mxu0
        %4104 = vmatprep.subr.bf16.mxu0 %v1142
        %4105 = vmatpush1.bf16.msra.mxu0 %v1141
        %4106 = vmatprep.subr.bf16.mxu0 %v1146
        %4107 = vmatpush1.bf16.msra.mxu0 %v1145
        %4108 = vmatprep.subr.bf16.mxu0 %v1150
        %4109 = vmatpush1.bf16.msra.mxu0 %v1149
        %4110 = vmatprep.subr.bf16.mxu0 %v1154
        %4111 = vmatpush1.bf16.msra.mxu0 %v1153
        %4112 = vmatprep.subr.bf16.mxu0 %v1158
        %4113 = vmatpush1.bf16.msra.mxu0 %v1157
        %4114 = vmatprep.subr.bf16.mxu0 %v1162
        %4115 = vmatpush1.bf16.msra.mxu0 %v1161
        %4116 = vmatprep.subr.bf16.mxu0 %v1166
        %4117 = vmatpush1.bf16.msra.mxu0 %v1165
        %4118 = vmatprep.subr.bf16.mxu0 %v1170
        %4119 = vmatpush1.bf16.msra.mxu0 %v1169
        %4120 = vmatprep.subr.bf16.mxu0 %v1174
        %4121 = vmatpush1.bf16.msra.mxu0 %v1173
        %4122 = vmatprep.subr.bf16.mxu0 %v1178
        %4123 = vmatpush1.bf16.msra.mxu0 %v1177
        %4124 = vmatprep.subr.bf16.mxu0 %v1182
        %4125 = vmatpush1.bf16.msra.mxu0 %v1181
        %4126 = vmatprep.subr.bf16.mxu0 %v1186
        %4127 = vmatpush1.bf16.msra.mxu0 %v1185
        %4128 = vmatprep.subr.bf16.mxu0 %v1190
        %4129 = vmatpush1.bf16.msra.mxu0 %v1189
        %4130 = vmatprep.subr.bf16.mxu0 %v1194
        %4131 = vmatpush1.bf16.msra.mxu0 %v1193
        %4132 = vmatprep.subr.bf16.mxu0 %v1198
        %4133 = vmatpush1.bf16.msra.mxu0 %v1197
        %4134 = vmatprep.subr.bf16.mxu0 %v1202
        %4135 = vmatpush1.bf16.msra.mxu0 %v1201
        %4136 = vmatprep.mubr.bf16.mxu0 %v2759
        %4137 = vmatmul.mubr.bf16.gmra.mrb[0].mxu0 %v2745
        %v4138 = vpop.f32.mrb[0].mxu0
        %v4139 = vadd.f32 0.0, %v4138
        %v4140 = vpop.f32.mrb[0].mxu0
        %v4141 = vadd.f32 0.0, %v4140
        %v4142 = vpop.f32.mrb[0].mxu0
        %v4143 = vpop.f32.mrb[0].mxu0
        %4144 = vdwg.mxu0
        %4145 = vmatprep.subr.bf16.mxu0 %v1206
        %4146 = vmatpush1.bf16.msra.mxu0 %v1205
        %4147 = vmatprep.subr.bf16.mxu0 %v1210
        %4148 = vmatpush1.bf16.msra.mxu0 %v1209
        %4149 = vmatprep.subr.bf16.mxu0 %v1214
        %4150 = vmatpush1.bf16.msra.mxu0 %v1213
        %4151 = vmatprep.subr.bf16.mxu0 %v1218
        %4152 = vmatpush1.bf16.msra.mxu0 %v1217
        %4153 = vmatprep.subr.bf16.mxu0 %v1222
        %4154 = vmatpush1.bf16.msra.mxu0 %v1221
        %4155 = vmatprep.subr.bf16.mxu0 %v1226
        %4156 = vmatpush1.bf16.msra.mxu0 %v1225
        %4157 = vmatprep.subr.bf16.mxu0 %v1230
        %4158 = vmatpush1.bf16.msra.mxu0 %v1229
        %4159 = vmatprep.subr.bf16.mxu0 %v1234
        %4160 = vmatpush1.bf16.msra.mxu0 %v1233
        %4161 = vmatprep.subr.bf16.mxu0 %v1238
        %4162 = vmatpush1.bf16.msra.mxu0 %v1237
        %4163 = vmatprep.subr.bf16.mxu0 %v1242
        %4164 = vmatpush1.bf16.msra.mxu0 %v1241
        %4165 = vmatprep.subr.bf16.mxu0 %v1246
        %4166 = vmatpush1.bf16.msra.mxu0 %v1245
        %4167 = vmatprep.subr.bf16.mxu0 %v1250
        %4168 = vmatpush1.bf16.msra.mxu0 %v1249
        %4169 = vmatprep.subr.bf16.mxu0 %v1254
        %4170 = vmatpush1.bf16.msra.mxu0 %v1253
        %4171 = vmatprep.subr.bf16.mxu0 %v1258
        %4172 = vmatpush1.bf16.msra.mxu0 %v1257
        %4173 = vmatprep.subr.bf16.mxu0 %v1262
        %4174 = vmatpush1.bf16.msra.mxu0 %v1261
        %4175 = vmatprep.subr.bf16.mxu0 %v1266
        %4176 = vmatpush1.bf16.msra.mxu0 %v1265
        %4177 = vmatprep.mubr.bf16.mxu0 %v2769
        %4178 = vmatmul.mubr.bf16.gmra.mrb[0].mxu0 %v2767
        %v4179 = vpop.f32.mrb[0].mxu0
        %v4180 = vadd.f32 %v4139, %v4179
        %v4181 = vpop.f32.mrb[0].mxu0
        %v4182 = vadd.f32 %v4141, %v4181
        %v4183 = vpop.f32.mrb[0].mxu0
        %v4184 = vpop.f32.mrb[0].mxu0
        %4185 = vdwg.mxu0
        %4186 = vmatprep.subr.bf16.mxu0 %v1270
        %4187 = vmatpush1.bf16.msra.mxu0 %v1269
        %4188 = vmatprep.subr.bf16.mxu0 %v1274
        %4189 = vmatpush1.bf16.msra.mxu0 %v1273
        %4190 = vmatprep.subr.bf16.mxu0 %v1278
        %4191 = vmatpush1.bf16.msra.mxu0 %v1277
        %4192 = vmatprep.subr.bf16.mxu0 %v1282
        %4193 = vmatpush1.bf16.msra.mxu0 %v1281
        %4194 = vmatprep.subr.bf16.mxu0 %v1286
        %4195 = vmatpush1.bf16.msra.mxu0 %v1285
        %4196 = vmatprep.subr.bf16.mxu0 %v1290
        %4197 = vmatpush1.bf16.msra.mxu0 %v1289
        %4198 = vmatprep.subr.bf16.mxu0 %v1294
        %4199 = vmatpush1.bf16.msra.mxu0 %v1293
        %4200 = vmatprep.subr.bf16.mxu0 %v1298
        %4201 = vmatpush1.bf16.msra.mxu0 %v1297
        %4202 = vmatprep.subr.bf16.mxu0 %v1302
        %4203 = vmatpush1.bf16.msra.mxu0 %v1301
        %4204 = vmatprep.subr.bf16.mxu0 %v1306
        %4205 = vmatpush1.bf16.msra.mxu0 %v1305
        %4206 = vmatprep.subr.bf16.mxu0 %v1310
        %4207 = vmatpush1.bf16.msra.mxu0 %v1309
        %4208 = vmatprep.subr.bf16.mxu0 %v1314
        %4209 = vmatpush1.bf16.msra.mxu0 %v1313
        %4210 = vmatprep.subr.bf16.mxu0 %v1318
        %4211 = vmatpush1.bf16.msra.mxu0 %v1317
        %4212 = vmatprep.subr.bf16.mxu0 %v1322
        %4213 = vmatpush1.bf16.msra.mxu0 %v1321
        %4214 = vmatprep.subr.bf16.mxu0 %v1326
        %4215 = vmatpush1.bf16.msra.mxu0 %v1325
        %4216 = vmatprep.subr.bf16.mxu0 %v1330
        %4217 = vmatpush1.bf16.msra.mxu0 %v1329
        %4218 = vmatprep.mubr.bf16.mxu0 %v2766
        %4219 = vmatmul.mubr.bf16.gmra.mrb[0].mxu0 %v2752
        %v4220 = vpop.f32.mrb[0].mxu0
        %v4221 = vadd.f32 %v4180, %v4220
        %v4222 = vpop.f32.mrb[0].mxu0
        %v4223 = vadd.f32 %v4182, %v4222
        %v4224 = vpop.f32.mrb[0].mxu0
        %v4225 = vpop.f32.mrb[0].mxu0
        %4226 = vdwg.mxu0
        %4227 = vmatprep.subr.bf16.mxu0 %v1334
        %4228 = vmatpush1.bf16.msra.mxu0 %v1333
        %4229 = vmatprep.subr.bf16.mxu0 %v1338
        %4230 = vmatpush1.bf16.msra.mxu0 %v1337
        %4231 = vmatprep.subr.bf16.mxu0 %v1342
        %4232 = vmatpush1.bf16.msra.mxu0 %v1341
        %4233 = vmatprep.subr.bf16.mxu0 %v1346
        %4234 = vmatpush1.bf16.msra.mxu0 %v1345
        %4235 = vmatprep.subr.bf16.mxu0 %v1350
        %4236 = vmatpush1.bf16.msra.mxu0 %v1349
        %4237 = vmatprep.subr.bf16.mxu0 %v1354
        %4238 = vmatpush1.bf16.msra.mxu0 %v1353
        %4239 = vmatprep.subr.bf16.mxu0 %v1358
        %4240 = vmatpush1.bf16.msra.mxu0 %v1357
        %4241 = vmatprep.subr.bf16.mxu0 %v1362
        %4242 = vmatpush1.bf16.msra.mxu0 %v1361
        %4243 = vmatprep.subr.bf16.mxu0 %v1366
        %4244 = vmatpush1.bf16.msra.mxu0 %v1365
        %4245 = vmatprep.subr.bf16.mxu0 %v1370
        %4246 = vmatpush1.bf16.msra.mxu0 %v1369
        %4247 = vmatprep.subr.bf16.mxu0 %v1374
        %4248 = vmatpush1.bf16.msra.mxu0 %v1373
        %4249 = vmatprep.subr.bf16.mxu0 %v1378
        %4250 = vmatpush1.bf16.msra.mxu0 %v1377
        %4251 = vmatprep.subr.bf16.mxu0 %v1382
        %4252 = vmatpush1.bf16.msra.mxu0 %v1381
        %4253 = vmatprep.subr.bf16.mxu0 %v1386
        %4254 = vmatpush1.bf16.msra.mxu0 %v1385
        %4255 = vmatprep.subr.bf16.mxu0 %v1390
        %4256 = vmatpush1.bf16.msra.mxu0 %v1389
        %4257 = vmatprep.subr.bf16.mxu0 %v1394
        %4258 = vmatpush1.bf16.msra.mxu0 %v1393
        %4259 = vmatprep.mubr.bf16.mxu0 %v2770
        %4260 = vmatmul.mubr.bf16.gmra.mrb[0].mxu0 %v2768
        %v4261 = vpop.f32.mrb[0].mxu0
        %v4262 = vadd.f32 %v4221, %v4261
        %v4263 = vpop.f32.mrb[0].mxu0
        %v4264 = vadd.f32 %v4223, %v4263
        %v4265 = vpop.f32.mrb[0].mxu0
        %v4266 = vpop.f32.mrb[0].mxu0
        %4267 = vdwg.mxu0
        %4268 = vmatprep.subr.bf16.mxu0 %v1398
        %4269 = vmatpush1.bf16.msra.mxu0 %v1397
        %4270 = vmatprep.subr.bf16.mxu0 %v1402
        %4271 = vmatpush1.bf16.msra.mxu0 %v1401
        %4272 = vmatprep.subr.bf16.mxu0 %v1406
        %4273 = vmatpush1.bf16.msra.mxu0 %v1405
        %4274 = vmatprep.subr.bf16.mxu0 %v1410
        %4275 = vmatpush1.bf16.msra.mxu0 %v1409
        %4276 = vmatprep.subr.bf16.mxu0 %v1414
        %4277 = vmatpush1.bf16.msra.mxu0 %v1413
        %4278 = vmatprep.subr.bf16.mxu0 %v1418
        %4279 = vmatpush1.bf16.msra.mxu0 %v1417
        %4280 = vmatprep.subr.bf16.mxu0 %v1422
        %4281 = vmatpush1.bf16.msra.mxu0 %v1421
        %4282 = vmatprep.subr.bf16.mxu0 %v1426
        %4283 = vmatpush1.bf16.msra.mxu0 %v1425
        %4284 = vmatprep.subr.bf16.mxu0 %v1430
        %4285 = vmatpush1.bf16.msra.mxu0 %v1429
        %4286 = vmatprep.subr.bf16.mxu0 %v1434
        %4287 = vmatpush1.bf16.msra.mxu0 %v1433
        %4288 = vmatprep.subr.bf16.mxu0 %v1438
        %4289 = vmatpush1.bf16.msra.mxu0 %v1437
        %4290 = vmatprep.subr.bf16.mxu0 %v1442
        %4291 = vmatpush1.bf16.msra.mxu0 %v1441
        %4292 = vmatprep.subr.bf16.mxu0 %v1446
        %4293 = vmatpush1.bf16.msra.mxu0 %v1445
        %4294 = vmatprep.subr.bf16.mxu0 %v1450
        %4295 = vmatpush1.bf16.msra.mxu0 %v1449
        %4296 = vmatprep.subr.bf16.mxu0 %v1454
        %4297 = vmatpush1.bf16.msra.mxu0 %v1453
        %4298 = vmatprep.subr.bf16.mxu0 %v1458
        %4299 = vmatpush1.bf16.msra.mxu0 %v1457
        %4300 = vmatprep.mubr.bf16.mxu0 %v2808
        %4301 = vmatmul.mubr.bf16.gmra.mrb[0].mxu0 %v2794
        %v4302 = vpop.f32.mrb[0].mxu0
        %v4303 = vadd.f32 %v4262, %v4302
        %v4304 = vpop.f32.mrb[0].mxu0
        %v4305 = vadd.f32 %v4264, %v4304
        %v4306 = vpop.f32.mrb[0].mxu0
        %v4307 = vpop.f32.mrb[0].mxu0
        %4308 = vdwg.mxu0
        %4309 = vmatprep.subr.bf16.mxu0 %v1462
        %4310 = vmatpush1.bf16.msra.mxu0 %v1461
        %4311 = vmatprep.subr.bf16.mxu0 %v1466
        %4312 = vmatpush1.bf16.msra.mxu0 %v1465
        %4313 = vmatprep.subr.bf16.mxu0 %v1470
        %4314 = vmatpush1.bf16.msra.mxu0 %v1469
        %4315 = vmatprep.subr.bf16.mxu0 %v1474
        %4316 = vmatpush1.bf16.msra.mxu0 %v1473
        %4317 = vmatprep.subr.bf16.mxu0 %v1478
        %4318 = vmatpush1.bf16.msra.mxu0 %v1477
        %4319 = vmatprep.subr.bf16.mxu0 %v1482
        %4320 = vmatpush1.bf16.msra.mxu0 %v1481
        %4321 = vmatprep.subr.bf16.mxu0 %v1486
        %4322 = vmatpush1.bf16.msra.mxu0 %v1485
        %4323 = vmatprep.subr.bf16.mxu0 %v1490
        %4324 = vmatpush1.bf16.msra.mxu0 %v1489
        %4325 = vmatprep.subr.bf16.mxu0 %v1494
        %4326 = vmatpush1.bf16.msra.mxu0 %v1493
        %4327 = vmatprep.subr.bf16.mxu0 %v1498
        %4328 = vmatpush1.bf16.msra.mxu0 %v1497
        %4329 = vmatprep.subr.bf16.mxu0 %v1502
        %4330 = vmatpush1.bf16.msra.mxu0 %v1501
        %4331 = vmatprep.subr.bf16.mxu0 %v1506
        %4332 = vmatpush1.bf16.msra.mxu0 %v1505
        %4333 = vmatprep.subr.bf16.mxu0 %v1510
        %4334 = vmatpush1.bf16.msra.mxu0 %v1509
        %4335 = vmatprep.subr.bf16.mxu0 %v1514
        %4336 = vmatpush1.bf16.msra.mxu0 %v1513
        %4337 = vmatprep.subr.bf16.mxu0 %v1518
        %4338 = vmatpush1.bf16.msra.mxu0 %v1517
        %4339 = vmatprep.subr.bf16.mxu0 %v1522
        %4340 = vmatpush1.bf16.msra.mxu0 %v1521
        %4341 = vmatprep.mubr.bf16.mxu0 %v2818
        %4342 = vmatmul.mubr.bf16.gmra.mrb[0].mxu0 %v2816
        %v4343 = vpop.f32.mrb[0].mxu0
        %v4344 = vadd.f32 %v4303, %v4343
        %v4345 = vpop.f32.mrb[0].mxu0
        %v4346 = vadd.f32 %v4305, %v4345
        %v4347 = vpop.f32.mrb[0].mxu0
        %v4348 = vpop.f32.mrb[0].mxu0
        %4349 = vdwg.mxu0
        %4350 = vmatprep.subr.bf16.mxu0 %v1526
        %4351 = vmatpush1.bf16.msra.mxu0 %v1525
        %4352 = vmatprep.subr.bf16.mxu0 %v1530
        %4353 = vmatpush1.bf16.msra.mxu0 %v1529
        %4354 = vmatprep.subr.bf16.mxu0 %v1534
        %4355 = vmatpush1.bf16.msra.mxu0 %v1533
        %4356 = vmatprep.subr.bf16.mxu0 %v1538
        %4357 = vmatpush1.bf16.msra.mxu0 %v1537
        %4358 = vmatprep.subr.bf16.mxu0 %v1542
        %4359 = vmatpush1.bf16.msra.mxu0 %v1541
        %4360 = vmatprep.subr.bf16.mxu0 %v1546
        %4361 = vmatpush1.bf16.msra.mxu0 %v1545
        %4362 = vmatprep.subr.bf16.mxu0 %v1550
        %4363 = vmatpush1.bf16.msra.mxu0 %v1549
        %4364 = vmatprep.subr.bf16.mxu0 %v1554
        %4365 = vmatpush1.bf16.msra.mxu0 %v1553
        %4366 = vmatprep.subr.bf16.mxu0 %v1558
        %4367 = vmatpush1.bf16.msra.mxu0 %v1557
        %4368 = vmatprep.subr.bf16.mxu0 %v1562
        %4369 = vmatpush1.bf16.msra.mxu0 %v1561
        %4370 = vmatprep.subr.bf16.mxu0 %v1566
        %4371 = vmatpush1.bf16.msra.mxu0 %v1565
        %4372 = vmatprep.subr.bf16.mxu0 %v1570
        %4373 = vmatpush1.bf16.msra.mxu0 %v1569
        %4374 = vmatprep.subr.bf16.mxu0 %v1574
        %4375 = vmatpush1.bf16.msra.mxu0 %v1573
        %4376 = vmatprep.subr.bf16.mxu0 %v1578
        %4377 = vmatpush1.bf16.msra.mxu0 %v1577
        %4378 = vmatprep.subr.bf16.mxu0 %v1582
        %4379 = vmatpush1.bf16.msra.mxu0 %v1581
        %4380 = vmatprep.subr.bf16.mxu0 %v1586
        %4381 = vmatpush1.bf16.msra.mxu0 %v1585
        %4382 = vmatprep.mubr.bf16.mxu0 %v2815
        %4383 = vmatmul.mubr.bf16.gmra.mrb[0].mxu0 %v2801
        %v4384 = vpop.f32.mrb[0].mxu0
        %v4385 = vadd.f32 %v4344, %v4384
        %v4386 = vpop.f32.mrb[0].mxu0
        %v4387 = vadd.f32 %v4346, %v4386
        %v4388 = vpop.f32.mrb[0].mxu0
        %v4389 = vpop.f32.mrb[0].mxu0
        %4390 = vdwg.mxu0
        %4391 = vmatprep.subr.bf16.mxu0 %v1590
        %4392 = vmatpush1.bf16.msra.mxu0 %v1589
        %4393 = vmatprep.subr.bf16.mxu0 %v1594
        %4394 = vmatpush1.bf16.msra.mxu0 %v1593
        %4395 = vmatprep.subr.bf16.mxu0 %v1598
        %4396 = vmatpush1.bf16.msra.mxu0 %v1597
        %4397 = vmatprep.subr.bf16.mxu0 %v1602
        %4398 = vmatpush1.bf16.msra.mxu0 %v1601
        %4399 = vmatprep.subr.bf16.mxu0 %v1606
        %4400 = vmatpush1.bf16.msra.mxu0 %v1605
        %4401 = vmatprep.subr.bf16.mxu0 %v1610
        %4402 = vmatpush1.bf16.msra.mxu0 %v1609
        %4403 = vmatprep.subr.bf16.mxu0 %v1614
        %4404 = vmatpush1.bf16.msra.mxu0 %v1613
        %4405 = vmatprep.subr.bf16.mxu0 %v1618
        %4406 = vmatpush1.bf16.msra.mxu0 %v1617
        %4407 = vmatprep.subr.bf16.mxu0 %v1622
        %4408 = vmatpush1.bf16.msra.mxu0 %v1621
        %4409 = vmatprep.subr.bf16.mxu0 %v1626
        %4410 = vmatpush1.bf16.msra.mxu0 %v1625
        %4411 = vmatprep.subr.bf16.mxu0 %v1630
        %4412 = vmatpush1.bf16.msra.mxu0 %v1629
        %4413 = vmatprep.subr.bf16.mxu0 %v1634
        %4414 = vmatpush1.bf16.msra.mxu0 %v1633
        %4415 = vmatprep.subr.bf16.mxu0 %v1638
        %4416 = vmatpush1.bf16.msra.mxu0 %v1637
        %4417 = vmatprep.subr.bf16.mxu0 %v1642
        %4418 = vmatpush1.bf16.msra.mxu0 %v1641
        %4419 = vmatprep.subr.bf16.mxu0 %v1646
        %4420 = vmatpush1.bf16.msra.mxu0 %v1645
        %4421 = vmatprep.subr.bf16.mxu0 %v1650
        %4422 = vmatpush1.bf16.msra.mxu0 %v1649
        %4423 = vmatprep.mubr.bf16.mxu0 %v2819
        %4424 = vmatmul.mubr.bf16.gmra.mrb[0].mxu0 %v2817
        %v4425 = vpop.f32.mrb[0].mxu0
        %v4426 = vadd.f32 %v4385, %v4425
        %v4427 = vpop.f32.mrb[0].mxu0
        %v4428 = vadd.f32 %v4387, %v4427
        %v4429 = vpop.f32.mrb[0].mxu0
        %v4430 = vpop.f32.mrb[0].mxu0
        %4431 = vdwg.mxu0
        %4432 = vmatprep.subr.bf16.mxu0 %v1654
        %4433 = vmatpush1.bf16.msra.mxu0 %v1653
        %4434 = vmatprep.subr.bf16.mxu0 %v1658
        %4435 = vmatpush1.bf16.msra.mxu0 %v1657
        %4436 = vmatprep.subr.bf16.mxu0 %v1662
        %4437 = vmatpush1.bf16.msra.mxu0 %v1661
        %4438 = vmatprep.subr.bf16.mxu0 %v1666
        %4439 = vmatpush1.bf16.msra.mxu0 %v1665
        %4440 = vmatprep.subr.bf16.mxu0 %v1670
        %4441 = vmatpush1.bf16.msra.mxu0 %v1669
        %4442 = vmatprep.subr.bf16.mxu0 %v1674
        %4443 = vmatpush1.bf16.msra.mxu0 %v1673
        %4444 = vmatprep.subr.bf16.mxu0 %v1678
        %4445 = vmatpush1.bf16.msra.mxu0 %v1677
        %4446 = vmatprep.subr.bf16.mxu0 %v1682
        %4447 = vmatpush1.bf16.msra.mxu0 %v1681
        %4448 = vmatprep.subr.bf16.mxu0 %v1686
        %4449 = vmatpush1.bf16.msra.mxu0 %v1685
        %4450 = vmatprep.subr.bf16.mxu0 %v1690
        %4451 = vmatpush1.bf16.msra.mxu0 %v1689
        %4452 = vmatprep.subr.bf16.mxu0 %v1694
        %4453 = vmatpush1.bf16.msra.mxu0 %v1693
        %4454 = vmatprep.subr.bf16.mxu0 %v1698
        %4455 = vmatpush1.bf16.msra.mxu0 %v1697
        %4456 = vmatprep.subr.bf16.mxu0 %v1702
        %4457 = vmatpush1.bf16.msra.mxu0 %v1701
        %4458 = vmatprep.subr.bf16.mxu0 %v1706
        %4459 = vmatpush1.bf16.msra.mxu0 %v1705
        %4460 = vmatprep.subr.bf16.mxu0 %v1710
        %4461 = vmatpush1.bf16.msra.mxu0 %v1709
        %4462 = vmatprep.subr.bf16.mxu0 %v1714
        %4463 = vmatpush1.bf16.msra.mxu0 %v1713
        %4464 = vmatprep.mubr.bf16.mxu0 %v2857
        %4465 = vmatmul.mubr.bf16.gmra.mrb[0].mxu0 %v2843
        %v4466 = vpop.f32.mrb[0].mxu0
        %v4467 = vadd.f32 %v4426, %v4466
        %v4468 = vpop.f32.mrb[0].mxu0
        %v4469 = vadd.f32 %v4428, %v4468
        %v4470 = vpop.f32.mrb[0].mxu0
        %v4471 = vpop.f32.mrb[0].mxu0
        %4472 = vdwg.mxu0
        %4473 = vmatprep.subr.bf16.mxu0 %v1718
        %4474 = vmatpush1.bf16.msra.mxu0 %v1717
        %4475 = vmatprep.subr.bf16.mxu0 %v1722
        %4476 = vmatpush1.bf16.msra.mxu0 %v1721
        %4477 = vmatprep.subr.bf16.mxu0 %v1726
        %4478 = vmatpush1.bf16.msra.mxu0 %v1725
        %4479 = vmatprep.subr.bf16.mxu0 %v1730
        %4480 = vmatpush1.bf16.msra.mxu0 %v1729
        %4481 = vmatprep.subr.bf16.mxu0 %v1734
        %4482 = vmatpush1.bf16.msra.mxu0 %v1733
        %4483 = vmatprep.subr.bf16.mxu0 %v1738
        %4484 = vmatpush1.bf16.msra.mxu0 %v1737
        %4485 = vmatprep.subr.bf16.mxu0 %v1742
        %4486 = vmatpush1.bf16.msra.mxu0 %v1741
        %4487 = vmatprep.subr.bf16.mxu0 %v1746
        %4488 = vmatpush1.bf16.msra.mxu0 %v1745
        %4489 = vmatprep.subr.bf16.mxu0 %v1750
        %4490 = vmatpush1.bf16.msra.mxu0 %v1749
        %4491 = vmatprep.subr.bf16.mxu0 %v1754
        %4492 = vmatpush1.bf16.msra.mxu0 %v1753
        %4493 = vmatprep.subr.bf16.mxu0 %v1758
        %4494 = vmatpush1.bf16.msra.mxu0 %v1757
        %4495 = vmatprep.subr.bf16.mxu0 %v1762
        %4496 = vmatpush1.bf16.msra.mxu0 %v1761
        %4497 = vmatprep.subr.bf16.mxu0 %v1766
        %4498 = vmatpush1.bf16.msra.mxu0 %v1765
        %4499 = vmatprep.subr.bf16.mxu0 %v1770
        %4500 = vmatpush1.bf16.msra.mxu0 %v1769
        %4501 = vmatprep.subr.bf16.mxu0 %v1774
        %4502 = vmatpush1.bf16.msra.mxu0 %v1773
        %4503 = vmatprep.subr.bf16.mxu0 %v1778
        %4504 = vmatpush1.bf16.msra.mxu0 %v1777
        %4505 = vmatprep.mubr.bf16.mxu0 %v2867
        %4506 = vmatmul.mubr.bf16.gmra.mrb[0].mxu0 %v2865
        %v4507 = vpop.f32.mrb[0].mxu0
        %v4508 = vadd.f32 %v4467, %v4507
        %v4509 = vpop.f32.mrb[0].mxu0
        %v4510 = vadd.f32 %v4469, %v4509
        %v4511 = vpop.f32.mrb[0].mxu0
        %v4512 = vpop.f32.mrb[0].mxu0
        %4513 = vdwg.mxu0
        %4514 = vmatprep.subr.bf16.mxu0 %v1782
        %4515 = vmatpush1.bf16.msra.mxu0 %v1781
        %4516 = vmatprep.subr.bf16.mxu0 %v1786
        %4517 = vmatpush1.bf16.msra.mxu0 %v1785
        %4518 = vmatprep.subr.bf16.mxu0 %v1790
        %4519 = vmatpush1.bf16.msra.mxu0 %v1789
        %4520 = vmatprep.subr.bf16.mxu0 %v1794
        %4521 = vmatpush1.bf16.msra.mxu0 %v1793
        %4522 = vmatprep.subr.bf16.mxu0 %v1798
        %4523 = vmatpush1.bf16.msra.mxu0 %v1797
        %4524 = vmatprep.subr.bf16.mxu0 %v1802
        %4525 = vmatpush1.bf16.msra.mxu0 %v1801
        %4526 = vmatprep.subr.bf16.mxu0 %v1806
        %4527 = vmatpush1.bf16.msra.mxu0 %v1805
        %4528 = vmatprep.subr.bf16.mxu0 %v1810
        %4529 = vmatpush1.bf16.msra.mxu0 %v1809
        %4530 = vmatprep.subr.bf16.mxu0 %v1814
        %4531 = vmatpush1.bf16.msra.mxu0 %v1813
        %4532 = vmatprep.subr.bf16.mxu0 %v1818
        %4533 = vmatpush1.bf16.msra.mxu0 %v1817
        %4534 = vmatprep.subr.bf16.mxu0 %v1822
        %4535 = vmatpush1.bf16.msra.mxu0 %v1821
        %4536 = vmatprep.subr.bf16.mxu0 %v1826
        %4537 = vmatpush1.bf16.msra.mxu0 %v1825
        %4538 = vmatprep.subr.bf16.mxu0 %v1830
        %4539 = vmatpush1.bf16.msra.mxu0 %v1829
        %4540 = vmatprep.subr.bf16.mxu0 %v1834
        %4541 = vmatpush1.bf16.msra.mxu0 %v1833
        %4542 = vmatprep.subr.bf16.mxu0 %v1838
        %4543 = vmatpush1.bf16.msra.mxu0 %v1837
        %4544 = vmatprep.subr.bf16.mxu0 %v1842
        %4545 = vmatpush1.bf16.msra.mxu0 %v1841
        %4546 = vmatprep.mubr.bf16.mxu0 %v2864
        %4547 = vmatmul.mubr.bf16.gmra.mrb[0].mxu0 %v2850
        %v4548 = vpop.f32.mrb[0].mxu0
        %v4549 = vadd.f32 %v4508, %v4548
        %v4550 = vpop.f32.mrb[0].mxu0
        %v4551 = vadd.f32 %v4510, %v4550
        %v4552 = vpop.f32.mrb[0].mxu0
        %v4553 = vpop.f32.mrb[0].mxu0
        %4554 = vdwg.mxu0
        %4555 = vmatprep.subr.bf16.mxu0 %v1846
        %4556 = vmatpush1.bf16.msra.mxu0 %v1845
        %4557 = vmatprep.subr.bf16.mxu0 %v1850
        %4558 = vmatpush1.bf16.msra.mxu0 %v1849
        %4559 = vmatprep.subr.bf16.mxu0 %v1854
        %4560 = vmatpush1.bf16.msra.mxu0 %v1853
        %4561 = vmatprep.subr.bf16.mxu0 %v1858
        %4562 = vmatpush1.bf16.msra.mxu0 %v1857
        %4563 = vmatprep.subr.bf16.mxu0 %v1862
        %4564 = vmatpush1.bf16.msra.mxu0 %v1861
        %4565 = vmatprep.subr.bf16.mxu0 %v1866
        %4566 = vmatpush1.bf16.msra.mxu0 %v1865
        %4567 = vmatprep.subr.bf16.mxu0 %v1870
        %4568 = vmatpush1.bf16.msra.mxu0 %v1869
        %4569 = vmatprep.subr.bf16.mxu0 %v1874
        %4570 = vmatpush1.bf16.msra.mxu0 %v1873
        %4571 = vmatprep.subr.bf16.mxu0 %v1878
        %4572 = vmatpush1.bf16.msra.mxu0 %v1877
        %4573 = vmatprep.subr.bf16.mxu0 %v1882
        %4574 = vmatpush1.bf16.msra.mxu0 %v1881
        %4575 = vmatprep.subr.bf16.mxu0 %v1886
        %4576 = vmatpush1.bf16.msra.mxu0 %v1885
        %4577 = vmatprep.subr.bf16.mxu0 %v1890
        %4578 = vmatpush1.bf16.msra.mxu0 %v1889
        %4579 = vmatprep.subr.bf16.mxu0 %v1894
        %4580 = vmatpush1.bf16.msra.mxu0 %v1893
        %4581 = vmatprep.subr.bf16.mxu0 %v1898
        %4582 = vmatpush1.bf16.msra.mxu0 %v1897
        %4583 = vmatprep.subr.bf16.mxu0 %v1902
        %4584 = vmatpush1.bf16.msra.mxu0 %v1901
        %4585 = vmatprep.subr.bf16.mxu0 %v1906
        %4586 = vmatpush1.bf16.msra.mxu0 %v1905
        %4587 = vmatprep.mubr.bf16.mxu0 %v2868
        %4588 = vmatmul.mubr.bf16.gmra.mrb[0].mxu0 %v2866
        %v4589 = vpop.f32.mrb[0].mxu0
        %v4590 = vadd.f32 %v4549, %v4589
        %v4591 = vpop.f32.mrb[0].mxu0
        %v4592 = vadd.f32 %v4551, %v4591
        %v4593 = vpop.f32.mrb[0].mxu0
        %v4594 = vpop.f32.mrb[0].mxu0
        %4595 = vdwg.mxu0
        %4596 = vmatprep.subr.bf16.mxu0 %v1910
        %4597 = vmatpush1.bf16.msra.mxu0 %v1909
        %4598 = vmatprep.subr.bf16.mxu0 %v1914
        %4599 = vmatpush1.bf16.msra.mxu0 %v1913
        %4600 = vmatprep.subr.bf16.mxu0 %v1918
        %4601 = vmatpush1.bf16.msra.mxu0 %v1917
        %4602 = vmatprep.subr.bf16.mxu0 %v1922
        %4603 = vmatpush1.bf16.msra.mxu0 %v1921
        %4604 = vmatprep.subr.bf16.mxu0 %v1926
        %4605 = vmatpush1.bf16.msra.mxu0 %v1925
        %4606 = vmatprep.subr.bf16.mxu0 %v1930
        %4607 = vmatpush1.bf16.msra.mxu0 %v1929
        %4608 = vmatprep.subr.bf16.mxu0 %v1934
        %4609 = vmatpush1.bf16.msra.mxu0 %v1933
        %4610 = vmatprep.subr.bf16.mxu0 %v1938
        %4611 = vmatpush1.bf16.msra.mxu0 %v1937
        %4612 = vmatprep.subr.bf16.mxu0 %v1942
        %4613 = vmatpush1.bf16.msra.mxu0 %v1941
        %4614 = vmatprep.subr.bf16.mxu0 %v1946
        %4615 = vmatpush1.bf16.msra.mxu0 %v1945
        %4616 = vmatprep.subr.bf16.mxu0 %v1950
        %4617 = vmatpush1.bf16.msra.mxu0 %v1949
        %4618 = vmatprep.subr.bf16.mxu0 %v1954
        %4619 = vmatpush1.bf16.msra.mxu0 %v1953
        %4620 = vmatprep.subr.bf16.mxu0 %v1958
        %4621 = vmatpush1.bf16.msra.mxu0 %v1957
        %4622 = vmatprep.subr.bf16.mxu0 %v1962
        %4623 = vmatpush1.bf16.msra.mxu0 %v1961
        %4624 = vmatprep.subr.bf16.mxu0 %v1966
        %4625 = vmatpush1.bf16.msra.mxu0 %v1965
        %4626 = vmatprep.subr.bf16.mxu0 %v1970
        %4627 = vmatpush1.bf16.msra.mxu0 %v1969
        %4628 = vmatprep.mubr.bf16.mxu0 %v2906
        %4629 = vmatmul.mubr.bf16.gmra.mrb[0].mxu0 %v2892
        %v4630 = vpop.f32.mrb[0].mxu0
        %v4631 = vadd.f32 %v4590, %v4630
        %v4632 = vpop.f32.mrb[0].mxu0
        %v4633 = vadd.f32 %v4592, %v4632
        %v4634 = vpop.f32.mrb[0].mxu0
        %v4635 = vpop.f32.mrb[0].mxu0
        %4636 = vdwg.mxu0
        %4637 = vmatprep.subr.bf16.mxu0 %v1974
        %4638 = vmatpush1.bf16.msra.mxu0 %v1973
        %4639 = vmatprep.subr.bf16.mxu0 %v1978
        %4640 = vmatpush1.bf16.msra.mxu0 %v1977
        %4641 = vmatprep.subr.bf16.mxu0 %v1982
        %4642 = vmatpush1.bf16.msra.mxu0 %v1981
        %4643 = vmatprep.subr.bf16.mxu0 %v1986
        %4644 = vmatpush1.bf16.msra.mxu0 %v1985
        %4645 = vmatprep.subr.bf16.mxu0 %v1990
        %4646 = vmatpush1.bf16.msra.mxu0 %v1989
        %4647 = vmatprep.subr.bf16.mxu0 %v1994
        %4648 = vmatpush1.bf16.msra.mxu0 %v1993
        %4649 = vmatprep.subr.bf16.mxu0 %v1998
        %4650 = vmatpush1.bf16.msra.mxu0 %v1997
        %4651 = vmatprep.subr.bf16.mxu0 %v2002
        %4652 = vmatpush1.bf16.msra.mxu0 %v2001
        %4653 = vmatprep.subr.bf16.mxu0 %v2006
        %4654 = vmatpush1.bf16.msra.mxu0 %v2005
        %4655 = vmatprep.subr.bf16.mxu0 %v2010
        %4656 = vmatpush1.bf16.msra.mxu0 %v2009
        %4657 = vmatprep.subr.bf16.mxu0 %v2014
        %4658 = vmatpush1.bf16.msra.mxu0 %v2013
        %4659 = vmatprep.subr.bf16.mxu0 %v2018
        %4660 = vmatpush1.bf16.msra.mxu0 %v2017
        %4661 = vmatprep.subr.bf16.mxu0 %v2022
        %4662 = vmatpush1.bf16.msra.mxu0 %v2021
        %4663 = vmatprep.subr.bf16.mxu0 %v2026
        %4664 = vmatpush1.bf16.msra.mxu0 %v2025
        %4665 = vmatprep.subr.bf16.mxu0 %v2030
        %4666 = vmatpush1.bf16.msra.mxu0 %v2029
        %4667 = vmatprep.subr.bf16.mxu0 %v2034
        %4668 = vmatpush1.bf16.msra.mxu0 %v2033
        %4669 = vmatprep.mubr.bf16.mxu0 %v2916
        %4670 = vmatmul.mubr.bf16.gmra.mrb[0].mxu0 %v2914
        %v4671 = vpop.f32.mrb[0].mxu0
        %v4672 = vadd.f32 %v4631, %v4671
        %v4673 = vpop.f32.mrb[0].mxu0
        %v4674 = vadd.f32 %v4633, %v4673
        %v4675 = vpop.f32.mrb[0].mxu0
        %v4676 = vpop.f32.mrb[0].mxu0
        %4677 = vdwg.mxu0
        %4678 = vmatprep.subr.bf16.mxu0 %v2038
        %4679 = vmatpush1.bf16.msra.mxu0 %v2037
        %4680 = vmatprep.subr.bf16.mxu0 %v2042
        %4681 = vmatpush1.bf16.msra.mxu0 %v2041
        %4682 = vmatprep.subr.bf16.mxu0 %v2046
        %4683 = vmatpush1.bf16.msra.mxu0 %v2045
        %4684 = vmatprep.subr.bf16.mxu0 %v2050
        %4685 = vmatpush1.bf16.msra.mxu0 %v2049
        %4686 = vmatprep.subr.bf16.mxu0 %v2054
        %4687 = vmatpush1.bf16.msra.mxu0 %v2053
        %4688 = vmatprep.subr.bf16.mxu0 %v2058
        %4689 = vmatpush1.bf16.msra.mxu0 %v2057
        %4690 = vmatprep.subr.bf16.mxu0 %v2062
        %4691 = vmatpush1.bf16.msra.mxu0 %v2061
        %4692 = vmatprep.subr.bf16.mxu0 %v2066
        %4693 = vmatpush1.bf16.msra.mxu0 %v2065
        %4694 = vmatprep.subr.bf16.mxu0 %v2070
        %4695 = vmatpush1.bf16.msra.mxu0 %v2069
        %4696 = vmatprep.subr.bf16.mxu0 %v2074
        %4697 = vmatpush1.bf16.msra.mxu0 %v2073
        %4698 = vmatprep.subr.bf16.mxu0 %v2078
        %4699 = vmatpush1.bf16.msra.mxu0 %v2077
        %4700 = vmatprep.subr.bf16.mxu0 %v2082
        %4701 = vmatpush1.bf16.msra.mxu0 %v2081
        %4702 = vmatprep.subr.bf16.mxu0 %v2086
        %4703 = vmatpush1.bf16.msra.mxu0 %v2085
        %4704 = vmatprep.subr.bf16.mxu0 %v2090
        %4705 = vmatpush1.bf16.msra.mxu0 %v2089
        %4706 = vmatprep.subr.bf16.mxu0 %v2094
        %4707 = vmatpush1.bf16.msra.mxu0 %v2093
        %4708 = vmatprep.subr.bf16.mxu0 %v2098
        %4709 = vmatpush1.bf16.msra.mxu0 %v2097
        %4710 = vmatprep.mubr.bf16.mxu0 %v2913
        %4711 = vmatmul.mubr.bf16.gmra.mrb[0].mxu0 %v2899
        %v4712 = vpop.f32.mrb[0].mxu0
        %v4713 = vadd.f32 %v4672, %v4712
        %v4714 = vpop.f32.mrb[0].mxu0
        %v4715 = vadd.f32 %v4674, %v4714
        %v4716 = vpop.f32.mrb[0].mxu0
        %v4717 = vpop.f32.mrb[0].mxu0
        %4718 = vdwg.mxu0
        %4719 = vmatprep.subr.bf16.mxu0 %v2102
        %4720 = vmatpush1.bf16.msra.mxu0 %v2101
        %4721 = vmatprep.subr.bf16.mxu0 %v2106
        %4722 = vmatpush1.bf16.msra.mxu0 %v2105
        %4723 = vmatprep.subr.bf16.mxu0 %v2110
        %4724 = vmatpush1.bf16.msra.mxu0 %v2109
        %4725 = vmatprep.subr.bf16.mxu0 %v2114
        %4726 = vmatpush1.bf16.msra.mxu0 %v2113
        %4727 = vmatprep.subr.bf16.mxu0 %v2118
        %4728 = vmatpush1.bf16.msra.mxu0 %v2117
        %4729 = vmatprep.subr.bf16.mxu0 %v2122
        %4730 = vmatpush1.bf16.msra.mxu0 %v2121
        %4731 = vmatprep.subr.bf16.mxu0 %v2126
        %4732 = vmatpush1.bf16.msra.mxu0 %v2125
        %4733 = vmatprep.subr.bf16.mxu0 %v2130
        %4734 = vmatpush1.bf16.msra.mxu0 %v2129
        %4735 = vmatprep.subr.bf16.mxu0 %v2134
        %4736 = vmatpush1.bf16.msra.mxu0 %v2133
        %4737 = vmatprep.subr.bf16.mxu0 %v2138
        %4738 = vmatpush1.bf16.msra.mxu0 %v2137
        %4739 = vmatprep.subr.bf16.mxu0 %v2142
        %4740 = vmatpush1.bf16.msra.mxu0 %v2141
        %4741 = vmatprep.subr.bf16.mxu0 %v2146
        %4742 = vmatpush1.bf16.msra.mxu0 %v2145
        %4743 = vmatprep.subr.bf16.mxu0 %v2150
        %4744 = vmatpush1.bf16.msra.mxu0 %v2149
        %4745 = vmatprep.subr.bf16.mxu0 %v2154
        %4746 = vmatpush1.bf16.msra.mxu0 %v2153
        %4747 = vmatprep.subr.bf16.mxu0 %v2158
        %4748 = vmatpush1.bf16.msra.mxu0 %v2157
        %4749 = vmatprep.subr.bf16.mxu0 %v2162
        %4750 = vmatpush1.bf16.msra.mxu0 %v2161
        %4751 = vmatprep.mubr.bf16.mxu0 %v2917
        %4752 = vmatmul.mubr.bf16.gmra.mrb[0].mxu0 %v2915
        %v4753 = vpop.f32.mrb[0].mxu0
        %v4754 = vadd.f32 %v4713, %v4753
        %v4755 = vpop.f32.mrb[0].mxu0
        %v4756 = vadd.f32 %v4715, %v4755
        %v4757 = vpop.f32.mrb[0].mxu0
        %v4758 = vpop.f32.mrb[0].mxu0
        %4759 = vdwg.mxu0
        %4760 = vmatprep.subr.bf16.mxu0 %v2166
        %4761 = vmatpush1.bf16.msra.mxu0 %v2165
        %4762 = vmatprep.subr.bf16.mxu0 %v2170
        %4763 = vmatpush1.bf16.msra.mxu0 %v2169
        %4764 = vmatprep.subr.bf16.mxu0 %v2174
        %4765 = vmatpush1.bf16.msra.mxu0 %v2173
        %4766 = vmatprep.subr.bf16.mxu0 %v2178
        %4767 = vmatpush1.bf16.msra.mxu0 %v2177
        %4768 = vmatprep.subr.bf16.mxu0 %v2182
        %4769 = vmatpush1.bf16.msra.mxu0 %v2181
        %4770 = vmatprep.subr.bf16.mxu0 %v2186
        %4771 = vmatpush1.bf16.msra.mxu0 %v2185
        %4772 = vmatprep.subr.bf16.mxu0 %v2190
        %4773 = vmatpush1.bf16.msra.mxu0 %v2189
        %4774 = vmatprep.subr.bf16.mxu0 %v2194
        %4775 = vmatpush1.bf16.msra.mxu0 %v2193
        %4776 = vmatprep.subr.bf16.mxu0 %v2198
        %4777 = vmatpush1.bf16.msra.mxu0 %v2197
        %4778 = vmatprep.subr.bf16.mxu0 %v2202
        %4779 = vmatpush1.bf16.msra.mxu0 %v2201
        %4780 = vmatprep.subr.bf16.mxu0 %v2206
        %4781 = vmatpush1.bf16.msra.mxu0 %v2205
        %4782 = vmatprep.subr.bf16.mxu0 %v2210
        %4783 = vmatpush1.bf16.msra.mxu0 %v2209
        %4784 = vmatprep.subr.bf16.mxu0 %v2214
        %4785 = vmatpush1.bf16.msra.mxu0 %v2213
        %4786 = vmatprep.subr.bf16.mxu0 %v2218
        %4787 = vmatpush1.bf16.msra.mxu0 %v2217
        %4788 = vmatprep.subr.bf16.mxu0 %v2222
        %4789 = vmatpush1.bf16.msra.mxu0 %v2221
        %4790 = vmatprep.subr.bf16.mxu0 %v2226
        %4791 = vmatpush1.bf16.msra.mxu0 %v2225
        %4792 = vmatprep.mubr.bf16.mxu0 %v2955
        %4793 = vmatmul.mubr.bf16.gmra.mrb[0].mxu0 %v2941
        %v4794 = vpop.f32.mrb[0].mxu0
        %v4795 = vadd.f32 %v4754, %v4794
        %v4796 = vpop.f32.mrb[0].mxu0
        %v4797 = vadd.f32 %v4756, %v4796
        %v4798 = vpop.f32.mrb[0].mxu0
        %v4799 = vpop.f32.mrb[0].mxu0
        %4800 = vdwg.mxu0
        %4801 = vmatprep.subr.bf16.mxu0 %v2230
        %4802 = vmatpush1.bf16.msra.mxu0 %v2229
        %4803 = vmatprep.subr.bf16.mxu0 %v2234
        %4804 = vmatpush1.bf16.msra.mxu0 %v2233
        %4805 = vmatprep.subr.bf16.mxu0 %v2238
        %4806 = vmatpush1.bf16.msra.mxu0 %v2237
        %4807 = vmatprep.subr.bf16.mxu0 %v2242
        %4808 = vmatpush1.bf16.msra.mxu0 %v2241
        %4809 = vmatprep.subr.bf16.mxu0 %v2246
        %4810 = vmatpush1.bf16.msra.mxu0 %v2245
        %4811 = vmatprep.subr.bf16.mxu0 %v2250
        %4812 = vmatpush1.bf16.msra.mxu0 %v2249
        %4813 = vmatprep.subr.bf16.mxu0 %v2254
        %4814 = vmatpush1.bf16.msra.mxu0 %v2253
        %4815 = vmatprep.subr.bf16.mxu0 %v2258
        %4816 = vmatpush1.bf16.msra.mxu0 %v2257
        %4817 = vmatprep.subr.bf16.mxu0 %v2262
        %4818 = vmatpush1.bf16.msra.mxu0 %v2261
        %4819 = vmatprep.subr.bf16.mxu0 %v2266
        %4820 = vmatpush1.bf16.msra.mxu0 %v2265
        %4821 = vmatprep.subr.bf16.mxu0 %v2270
        %4822 = vmatpush1.bf16.msra.mxu0 %v2269
        %4823 = vmatprep.subr.bf16.mxu0 %v2274
        %4824 = vmatpush1.bf16.msra.mxu0 %v2273
        %4825 = vmatprep.subr.bf16.mxu0 %v2278
        %4826 = vmatpush1.bf16.msra.mxu0 %v2277
        %4827 = vmatprep.subr.bf16.mxu0 %v2282
        %4828 = vmatpush1.bf16.msra.mxu0 %v2281
        %4829 = vmatprep.subr.bf16.mxu0 %v2286
        %4830 = vmatpush1.bf16.msra.mxu0 %v2285
        %4831 = vmatprep.subr.bf16.mxu0 %v2290
        %4832 = vmatpush1.bf16.msra.mxu0 %v2289
        %4833 = vmatprep.mubr.bf16.mxu0 %v2965
        %4834 = vmatmul.mubr.bf16.gmra.mrb[0].mxu0 %v2963
        %v4835 = vpop.f32.mrb[0].mxu0
        %v4836 = vadd.f32 %v4795, %v4835
        %v4837 = vpop.f32.mrb[0].mxu0
        %v4838 = vadd.f32 %v4797, %v4837
        %v4839 = vpop.f32.mrb[0].mxu0
        %v4840 = vpop.f32.mrb[0].mxu0
        %4841 = vdwg.mxu0
        %4842 = vmatprep.subr.bf16.mxu0 %v2294
        %4843 = vmatpush1.bf16.msra.mxu0 %v2293
        %4844 = vmatprep.subr.bf16.mxu0 %v2298
        %4845 = vmatpush1.bf16.msra.mxu0 %v2297
        %4846 = vmatprep.subr.bf16.mxu0 %v2302
        %4847 = vmatpush1.bf16.msra.mxu0 %v2301
        %4848 = vmatprep.subr.bf16.mxu0 %v2306
        %4849 = vmatpush1.bf16.msra.mxu0 %v2305
        %4850 = vmatprep.subr.bf16.mxu0 %v2310
        %4851 = vmatpush1.bf16.msra.mxu0 %v2309
        %4852 = vmatprep.subr.bf16.mxu0 %v2314
        %4853 = vmatpush1.bf16.msra.mxu0 %v2313
        %4854 = vmatprep.subr.bf16.mxu0 %v2318
        %4855 = vmatpush1.bf16.msra.mxu0 %v2317
        %4856 = vmatprep.subr.bf16.mxu0 %v2322
        %4857 = vmatpush1.bf16.msra.mxu0 %v2321
        %4858 = vmatprep.subr.bf16.mxu0 %v2326
        %4859 = vmatpush1.bf16.msra.mxu0 %v2325
        %4860 = vmatprep.subr.bf16.mxu0 %v2330
        %4861 = vmatpush1.bf16.msra.mxu0 %v2329
        %4862 = vmatprep.subr.bf16.mxu0 %v2334
        %4863 = vmatpush1.bf16.msra.mxu0 %v2333
        %4864 = vmatprep.subr.bf16.mxu0 %v2338
        %4865 = vmatpush1.bf16.msra.mxu0 %v2337
        %4866 = vmatprep.subr.bf16.mxu0 %v2342
        %4867 = vmatpush1.bf16.msra.mxu0 %v2341
        %4868 = vmatprep.subr.bf16.mxu0 %v2346
        %4869 = vmatpush1.bf16.msra.mxu0 %v2345
        %4870 = vmatprep.subr.bf16.mxu0 %v2350
        %4871 = vmatpush1.bf16.msra.mxu0 %v2349
        %4872 = vmatprep.subr.bf16.mxu0 %v2354
        %4873 = vmatpush1.bf16.msra.mxu0 %v2353
        %4874 = vmatprep.mubr.bf16.mxu0 %v2962
        %4875 = vmatmul.mubr.bf16.gmra.mrb[0].mxu0 %v2948
        %v4876 = vpop.f32.mrb[0].mxu0
        %v4877 = vadd.f32 %v4836, %v4876
        %v4878 = vpop.f32.mrb[0].mxu0
        %v4879 = vadd.f32 %v4838, %v4878
        %v4880 = vpop.f32.mrb[0].mxu0
        %v4881 = vpop.f32.mrb[0].mxu0
        %4882 = vdwg.mxu0
        %4883 = vmatprep.subr.bf16.mxu0 %v2358
        %4884 = vmatpush1.bf16.msra.mxu0 %v2357
        %4885 = vmatprep.subr.bf16.mxu0 %v2362
        %4886 = vmatpush1.bf16.msra.mxu0 %v2361
        %4887 = vmatprep.subr.bf16.mxu0 %v2366
        %4888 = vmatpush1.bf16.msra.mxu0 %v2365
        %4889 = vmatprep.subr.bf16.mxu0 %v2370
        %4890 = vmatpush1.bf16.msra.mxu0 %v2369
        %4891 = vmatprep.subr.bf16.mxu0 %v2374
        %4892 = vmatpush1.bf16.msra.mxu0 %v2373
        %4893 = vmatprep.subr.bf16.mxu0 %v2378
        %4894 = vmatpush1.bf16.msra.mxu0 %v2377
        %4895 = vmatprep.subr.bf16.mxu0 %v2382
        %4896 = vmatpush1.bf16.msra.mxu0 %v2381
        %4897 = vmatprep.subr.bf16.mxu0 %v2386
        %4898 = vmatpush1.bf16.msra.mxu0 %v2385
        %4899 = vmatprep.subr.bf16.mxu0 %v2390
        %4900 = vmatpush1.bf16.msra.mxu0 %v2389
        %4901 = vmatprep.subr.bf16.mxu0 %v2394
        %4902 = vmatpush1.bf16.msra.mxu0 %v2393
        %4903 = vmatprep.subr.bf16.mxu0 %v2398
        %4904 = vmatpush1.bf16.msra.mxu0 %v2397
        %4905 = vmatprep.subr.bf16.mxu0 %v2402
        %4906 = vmatpush1.bf16.msra.mxu0 %v2401
        %4907 = vmatprep.subr.bf16.mxu0 %v2406
        %4908 = vmatpush1.bf16.msra.mxu0 %v2405
        %4909 = vmatprep.subr.bf16.mxu0 %v2410
        %4910 = vmatpush1.bf16.msra.mxu0 %v2409
        %4911 = vmatprep.subr.bf16.mxu0 %v2414
        %4912 = vmatpush1.bf16.msra.mxu0 %v2413
        %4913 = vmatprep.subr.bf16.mxu0 %v2418
        %4914 = vmatpush1.bf16.msra.mxu0 %v2417
        %4915 = vmatprep.mubr.bf16.mxu0 %v2966
        %4916 = vmatmul.mubr.bf16.gmra.mrb[0].mxu0 %v2964
        %v4917 = vpop.f32.mrb[0].mxu0
        %v4918 = vadd.f32 %v4877, %v4917
        %v4919 = vpop.f32.mrb[0].mxu0
        %v4920 = vadd.f32 %v4879, %v4919
        %v4921 = vpop.f32.mrb[0].mxu0
        %v4922 = vpop.f32.mrb[0].mxu0
        %4923 = vdwg.mxu0
        %4924 = vmatprep.subr.bf16.mxu0 %v2422
        %4925 = vmatpush1.bf16.msra.mxu0 %v2421
        %4926 = vmatprep.subr.bf16.mxu0 %v2426
        %4927 = vmatpush1.bf16.msra.mxu0 %v2425
        %4928 = vmatprep.subr.bf16.mxu0 %v2430
        %4929 = vmatpush1.bf16.msra.mxu0 %v2429
        %4930 = vmatprep.subr.bf16.mxu0 %v2434
        %4931 = vmatpush1.bf16.msra.mxu0 %v2433
        %4932 = vmatprep.subr.bf16.mxu0 %v2438
        %4933 = vmatpush1.bf16.msra.mxu0 %v2437
        %4934 = vmatprep.subr.bf16.mxu0 %v2442
        %4935 = vmatpush1.bf16.msra.mxu0 %v2441
        %4936 = vmatprep.subr.bf16.mxu0 %v2446
        %4937 = vmatpush1.bf16.msra.mxu0 %v2445
        %4938 = vmatprep.subr.bf16.mxu0 %v2450
        %4939 = vmatpush1.bf16.msra.mxu0 %v2449
        %4940 = vmatprep.subr.bf16.mxu0 %v2454
        %4941 = vmatpush1.bf16.msra.mxu0 %v2453
        %4942 = vmatprep.subr.bf16.mxu0 %v2458
        %4943 = vmatpush1.bf16.msra.mxu0 %v2457
        %4944 = vmatprep.subr.bf16.mxu0 %v2462
        %4945 = vmatpush1.bf16.msra.mxu0 %v2461
        %4946 = vmatprep.subr.bf16.mxu0 %v2466
        %4947 = vmatpush1.bf16.msra.mxu0 %v2465
        %4948 = vmatprep.subr.bf16.mxu0 %v2470
        %4949 = vmatpush1.bf16.msra.mxu0 %v2469
        %4950 = vmatprep.subr.bf16.mxu0 %v2474
        %4951 = vmatpush1.bf16.msra.mxu0 %v2473
        %4952 = vmatprep.subr.bf16.mxu0 %v2478
        %4953 = vmatpush1.bf16.msra.mxu0 %v2477
        %4954 = vmatprep.subr.bf16.mxu0 %v2482
        %4955 = vmatpush1.bf16.msra.mxu0 %v2481
        %4956 = vmatprep.mubr.bf16.mxu0 %v3004
        %4957 = vmatmul.mubr.bf16.gmra.mrb[0].mxu0 %v2990
        %v4958 = vpop.f32.mrb[0].mxu0
        %v4959 = vadd.f32 %v4918, %v4958
        %v4960 = vpop.f32.mrb[0].mxu0
        %v4961 = vadd.f32 %v4920, %v4960
        %v4962 = vpop.f32.mrb[0].mxu0
        %v4963 = vpop.f32.mrb[0].mxu0
        %4964 = vdwg.mxu0
        %4965 = vmatprep.subr.bf16.mxu0 %v2486
        %4966 = vmatpush1.bf16.msra.mxu0 %v2485
        %4967 = vmatprep.subr.bf16.mxu0 %v2490
        %4968 = vmatpush1.bf16.msra.mxu0 %v2489
        %4969 = vmatprep.subr.bf16.mxu0 %v2494
        %4970 = vmatpush1.bf16.msra.mxu0 %v2493
        %4971 = vmatprep.subr.bf16.mxu0 %v2498
        %4972 = vmatpush1.bf16.msra.mxu0 %v2497
        %4973 = vmatprep.subr.bf16.mxu0 %v2502
        %4974 = vmatpush1.bf16.msra.mxu0 %v2501
        %4975 = vmatprep.subr.bf16.mxu0 %v2506
        %4976 = vmatpush1.bf16.msra.mxu0 %v2505
        %4977 = vmatprep.subr.bf16.mxu0 %v2510
        %4978 = vmatpush1.bf16.msra.mxu0 %v2509
        %4979 = vmatprep.subr.bf16.mxu0 %v2514
        %4980 = vmatpush1.bf16.msra.mxu0 %v2513
        %4981 = vmatprep.subr.bf16.mxu0 %v2518
        %4982 = vmatpush1.bf16.msra.mxu0 %v2517
        %4983 = vmatprep.subr.bf16.mxu0 %v2522
        %4984 = vmatpush1.bf16.msra.mxu0 %v2521
        %4985 = vmatprep.subr.bf16.mxu0 %v2526
        %4986 = vmatpush1.bf16.msra.mxu0 %v2525
        %4987 = vmatprep.subr.bf16.mxu0 %v2530
        %4988 = vmatpush1.bf16.msra.mxu0 %v2529
        %4989 = vmatprep.subr.bf16.mxu0 %v2534
        %4990 = vmatpush1.bf16.msra.mxu0 %v2533
        %4991 = vmatprep.subr.bf16.mxu0 %v2538
        %4992 = vmatpush1.bf16.msra.mxu0 %v2537
        %4993 = vmatprep.subr.bf16.mxu0 %v2542
        %4994 = vmatpush1.bf16.msra.mxu0 %v2541
        %4995 = vmatprep.subr.bf16.mxu0 %v2546
        %4996 = vmatpush1.bf16.msra.mxu0 %v2545
        %4997 = vmatprep.mubr.bf16.mxu0 %v3014
        %4998 = vmatmul.mubr.bf16.gmra.mrb[0].mxu0 %v3012
        %v4999 = vpop.f32.mrb[0].mxu0
        %v5000 = vadd.f32 %v4959, %v4999
        %v5001 = vpop.f32.mrb[0].mxu0
        %v5002 = vadd.f32 %v4961, %v5001
        %v5003 = vpop.f32.mrb[0].mxu0
        %v5004 = vpop.f32.mrb[0].mxu0
        %5005 = vdwg.mxu0
        %5006 = vmatprep.subr.bf16.mxu0 %v2550
        %5007 = vmatpush1.bf16.msra.mxu0 %v2549
        %5008 = vmatprep.subr.bf16.mxu0 %v2554
        %5009 = vmatpush1.bf16.msra.mxu0 %v2553
        %5010 = vmatprep.subr.bf16.mxu0 %v2558
        %5011 = vmatpush1.bf16.msra.mxu0 %v2557
        %5012 = vmatprep.subr.bf16.mxu0 %v2562
        %5013 = vmatpush1.bf16.msra.mxu0 %v2561
        %5014 = vmatprep.subr.bf16.mxu0 %v2566
        %5015 = vmatpush1.bf16.msra.mxu0 %v2565
        %5016 = vmatprep.subr.bf16.mxu0 %v2570
        %5017 = vmatpush1.bf16.msra.mxu0 %v2569
        %5018 = vmatprep.subr.bf16.mxu0 %v2574
        %5019 = vmatpush1.bf16.msra.mxu0 %v2573
        %5020 = vmatprep.subr.bf16.mxu0 %v2578
        %5021 = vmatpush1.bf16.msra.mxu0 %v2577
        %5022 = vmatprep.subr.bf16.mxu0 %v2582
        %5023 = vmatpush1.bf16.msra.mxu0 %v2581
        %5024 = vmatprep.subr.bf16.mxu0 %v2586
        %5025 = vmatpush1.bf16.msra.mxu0 %v2585
        %5026 = vmatprep.subr.bf16.mxu0 %v2590
        %5027 = vmatpush1.bf16.msra.mxu0 %v2589
        %5028 = vmatprep.subr.bf16.mxu0 %v2594
        %5029 = vmatpush1.bf16.msra.mxu0 %v2593
        %5030 = vmatprep.subr.bf16.mxu0 %v2598
        %5031 = vmatpush1.bf16.msra.mxu0 %v2597
        %5032 = vmatprep.subr.bf16.mxu0 %v2602
        %5033 = vmatpush1.bf16.msra.mxu0 %v2601
        %5034 = vmatprep.subr.bf16.mxu0 %v2606
        %5035 = vmatpush1.bf16.msra.mxu0 %v2605
        %5036 = vmatprep.subr.bf16.mxu0 %v2610
        %5037 = vmatpush1.bf16.msra.mxu0 %v2609
        %5038 = vmatprep.mubr.bf16.mxu0 %v3011
        %5039 = vmatmul.mubr.bf16.gmra.mrb[0].mxu0 %v2997
        %v5040 = vpop.f32.mrb[0].mxu0
        %v5041 = vadd.f32 %v5000, %v5040
        %v5042 = vpop.f32.mrb[0].mxu0
        %v5043 = vadd.f32 %v5002, %v5042
        %v5044 = vpop.f32.mrb[0].mxu0
        %v5045 = vpop.f32.mrb[0].mxu0
        %5046 = vdwg.mxu0
        %5047 = vmatprep.subr.bf16.mxu0 %v2614
        %5048 = vmatpush1.bf16.msra.mxu0 %v2613
        %5049 = vmatprep.subr.bf16.mxu0 %v2618
        %5050 = vmatpush1.bf16.msra.mxu0 %v2617
        %5051 = vmatprep.subr.bf16.mxu0 %v2622
        %5052 = vmatpush1.bf16.msra.mxu0 %v2621
        %5053 = vmatprep.subr.bf16.mxu0 %v2626
        %5054 = vmatpush1.bf16.msra.mxu0 %v2625
        %5055 = vmatprep.subr.bf16.mxu0 %v2630
        %5056 = vmatpush1.bf16.msra.mxu0 %v2629
        %5057 = vmatprep.subr.bf16.mxu0 %v2634
        %5058 = vmatpush1.bf16.msra.mxu0 %v2633
        %5059 = vmatprep.subr.bf16.mxu0 %v2638
        %5060 = vmatpush1.bf16.msra.mxu0 %v2637
        %5061 = vmatprep.subr.bf16.mxu0 %v2642
        %5062 = vmatpush1.bf16.msra.mxu0 %v2641
        %5063 = vmatprep.subr.bf16.mxu0 %v2646
        %5064 = vmatpush1.bf16.msra.mxu0 %v2645
        %5065 = vmatprep.subr.bf16.mxu0 %v2650
        %5066 = vmatpush1.bf16.msra.mxu0 %v2649
        %5067 = vmatprep.subr.bf16.mxu0 %v2654
        %5068 = vmatpush1.bf16.msra.mxu0 %v2653
        %5069 = vmatprep.subr.bf16.mxu0 %v2658
        %5070 = vmatpush1.bf16.msra.mxu0 %v2657
        %5071 = vmatprep.subr.bf16.mxu0 %v2662
        %5072 = vmatpush1.bf16.msra.mxu0 %v2661
        %5073 = vmatprep.subr.bf16.mxu0 %v2666
        %5074 = vmatpush1.bf16.msra.mxu0 %v2665
        %5075 = vmatprep.subr.bf16.mxu0 %v2670
        %5076 = vmatpush1.bf16.msra.mxu0 %v2669
        %5077 = vmatprep.subr.bf16.mxu0 %v2674
        %5078 = vmatpush1.bf16.msra.mxu0 %v2673
        %5079 = vmatprep.mubr.bf16.mxu0 %v3015
        %5080 = vmatmul.mubr.bf16.gmra.mrb[0].mxu0 %v3013
        %v5081 = vpop.f32.mrb[0].mxu0
        %v5082 = vadd.f32 %v5041, %v5081
        %v5083 = vpop.f32.mrb[0].mxu0
        %v5084 = vadd.f32 %v5043, %v5083
        %v5085 = vpop.f32.mrb[0].mxu0
        %v5086 = vpop.f32.mrb[0].mxu0
        %5087 = vdwg.mxu0
        %5088 = vmatprep.subr.bf16.mxu0 %v2678
        %5089 = vmatpush1.bf16.msra.mxu0 %v2677
        %5090 = vmatprep.subr.bf16.mxu0 %v2682
        %5091 = vmatpush1.bf16.msra.mxu0 %v2681
        %5092 = vmatprep.subr.bf16.mxu0 %v2686
        %5093 = vmatpush1.bf16.msra.mxu0 %v2685
        %5094 = vmatprep.subr.bf16.mxu0 %v2690
        %5095 = vmatpush1.bf16.msra.mxu0 %v2689
        %5096 = vmatprep.subr.bf16.mxu0 %v2694
        %5097 = vmatpush1.bf16.msra.mxu0 %v2693
        %5098 = vmatprep.subr.bf16.mxu0 %v2698
        %5099 = vmatpush1.bf16.msra.mxu0 %v2697
        %5100 = vmatprep.subr.bf16.mxu0 %v2702
        %5101 = vmatpush1.bf16.msra.mxu0 %v2701
        %5102 = vmatprep.subr.bf16.mxu0 %v2706
        %5103 = vmatpush1.bf16.msra.mxu0 %v2705
        %5104 = vmatprep.subr.bf16.mxu0 0
        %5105 = vmatpush1.bf16.msra.mxu0 0
        %5106 = vmatprep.subr.bf16.mxu0 0
        %5107 = vmatpush1.bf16.msra.mxu0 0
        %5108 = vmatprep.subr.bf16.mxu0 0
        %5109 = vmatpush1.bf16.msra.mxu0 0
        %5110 = vmatprep.subr.bf16.mxu0 0
        %5111 = vmatpush1.bf16.msra.mxu0 0
        %5112 = vmatprep.subr.bf16.mxu0 0
        %5113 = vmatpush1.bf16.msra.mxu0 0
        %5114 = vmatprep.subr.bf16.mxu0 0
        %5115 = vmatpush1.bf16.msra.mxu0 0
        %5116 = vmatprep.subr.bf16.mxu0 0
        %5117 = vmatpush1.bf16.msra.mxu0 0
        %5118 = vmatprep.subr.bf16.mxu0 0
        %5119 = vmatpush1.bf16.msra.mxu0 0
        %5120 = vmatprep.mubr.bf16.mxu0 0
        %5121 = vmatmul.mubr.bf16.gmra.mrb[0].mxu0 %v3029
        %v5122 = vpop.f32.mrb[0].mxu0
        %v5123 = vadd.f32 %v5082, %v5122
        %v5124 = vpop.f32.mrb[0].mxu0
        %v5125 = vadd.f32 %v5084, %v5124
        %v5126 = vpop.f32.mrb[0].mxu0
        %v5127 = vpop.f32.mrb[0].mxu0
        %5128 = vdwg.mxu0
        %v5133 = vcombine.low %v4098, %v4100
        %v5134 = vcombine.low %v5123, %v5125
        %v5136 = vunpack.c.l.s4 1983009808
        %v5137 = vunpack.c.0.s8 %v5136
        %v5138 = vlaneseq
        %v5139 = vshrl.u32 %v5138, 7
        %v5140 = vsub.s32 %v5137, %v5139
        %v5141 = vrot.slane %v5133, %v5140
        %v5143 = vunpack.c.l.s4 1983009808
        %v5144 = vunpack.c.0.s8 %v5143
        %v5145 = vlaneseq
        %v5146 = vshrl.u32 %v5145, 7
        %v5147 = vsub.s32 %v5144, %v5146
        %v5148 = vrot.slane %v5134, %v5147
        %v5149 = vcombine.low %v5141, %v5148
        %v5151 = vadd.f32 %v2707, %v5149
        %5152 = vst [vmem:[%s343] sm:$0xff] %v5151
        %p5153 = scmp.eq.s32.totalorder %s32, 5
        // Predicated region
        $region57: #{fr_embed.1} parent=35 // pred_check
          %p5154 = pneg %p5153
        $region58: #{fr_embed.1} parent=35 // pred_check_branch
          %5156 = sbr.rel (%p5154) target = $region60
        $region59: #{fr_embed.1} parent=35 // pred_region
          %v5157 = vld [vmem:[%s343] sm:$0xff]
          %v5158 = vld [vmem:[%s295] sm:$0xf]
          %v5160 = vlaneseq
          %v5161 = vshrl.u32 %v5160, 7
          %v5162 = vsub.s32 0, %v5161
          %v5163 = vrot.slane %v5158, %v5162
          %v5164 = vlaneseq
          %v5165 = vshrl.u32 %v5164, 7
          %v5166 = vsub.s32 1, %v5165
          %v5167 = vrot.slane %v5158, %v5166
          %v5168 = vlaneseq
          %v5169 = vshrl.u32 %v5168, 7
          %v5170 = vsub.s32 2, %v5169
          %v5171 = vrot.slane %v5158, %v5170
          %v5172 = vlaneseq
          %v5173 = vshrl.u32 %v5172, 7
          %v5174 = vsub.s32 3, %v5173
          %v5175 = vrot.slane %v5158, %v5174
          %v5176 = vcombine.low %v5163, %v5167
          %v5177 = vcombine.low %v5171, %v5175
          %v5179 = vunpack.c.l.s4 1983009808
          %v5180 = vunpack.c.0.s8 %v5179
          %v5181 = vlaneseq
          %v5182 = vshrl.u32 %v5181, 7
          %v5183 = vsub.s32 %v5180, %v5182
          %v5184 = vrot.slane %v5176, %v5183
          %v5186 = vunpack.c.l.s4 1983009808
          %v5187 = vunpack.c.0.s8 %v5186
          %v5188 = vlaneseq
          %v5189 = vshrl.u32 %v5188, 7
          %v5190 = vsub.s32 %v5187, %v5189
          %v5191 = vrot.slane %v5177, %v5190
          %v5192 = vcombine.low %v5184, %v5191
          %v5194 = vmul.f32 %v5157, %v5192
          %v5195 = vld [vmem:[%s304] sm:$0xf]
          %v5197 = vlaneseq
          %v5198 = vshrl.u32 %v5197, 7
          %v5199 = vsub.s32 0, %v5198
          %v5200 = vrot.slane %v5195, %v5199
          %v5201 = vlaneseq
          %v5202 = vshrl.u32 %v5201, 7
          %v5203 = vsub.s32 1, %v5202
          %v5204 = vrot.slane %v5195, %v5203
          %v5205 = vlaneseq
          %v5206 = vshrl.u32 %v5205, 7
          %v5207 = vsub.s32 2, %v5206
          %v5208 = vrot.slane %v5195, %v5207
          %v5209 = vlaneseq
          %v5210 = vshrl.u32 %v5209, 7
          %v5211 = vsub.s32 3, %v5210
          %v5212 = vrot.slane %v5195, %v5211
          %v5213 = vcombine.low %v5200, %v5204
          %v5214 = vcombine.low %v5208, %v5212
          %v5216 = vunpack.c.l.s4 1983009808
          %v5217 = vunpack.c.0.s8 %v5216
          %v5218 = vlaneseq
          %v5219 = vshrl.u32 %v5218, 7
          %v5220 = vsub.s32 %v5217, %v5219
          %v5221 = vrot.slane %v5213, %v5220
          %v5223 = vunpack.c.l.s4 1983009808
          %v5224 = vunpack.c.0.s8 %v5223
          %v5225 = vlaneseq
          %v5226 = vshrl.u32 %v5225, 7
          %v5227 = vsub.s32 %v5224, %v5226
          %v5228 = vrot.slane %v5214, %v5227
          %v5229 = vcombine.low %v5221, %v5228
          %v5231 = vadd.f32 %v5194, %v5229
          %5232 = vst [vmem:[%s343] sm:$0xff] %v5231
        $region60: #{fr_embed.1} parent=35 // pred_fallthru
          _
        %s5233 = sand.u32 %s153, 1
        %s5234 = scalar_lea.sflag [#allocation4], %s5233
        %s5235 = sand.u32 %s153, 1
        %s5236 = smul.addr %s5235, 8
        %s5237 = scalar_lea.vmem [#allocation10], %s5236
        // Predicated region
        $region61: #{fr_embed.1} parent=35 // pred_check
          %p5238 = pneg %p163
        $region62: #{fr_embed.1} parent=35 // pred_check_branch
          %5240 = sbr.rel (%p5238) target = $region64
        $region63: #{fr_embed.1} parent=35 // pred_region
          %s5241 = smul.u32 4, %s31
          %s5243 = ssub.s32 128, 128
          %5244 = vsyncadd %s5234, %s5243
          %s5245 = smul.addr %s5241, 32
          %s5246 = scalar_lea.hbm %s4, %s5245
          %s5248 = sshll.u32 %s5237, 4
          %s5249 = int_to_ptr.vmem [resolvable:$true] %s5248
          %5251 = dma.vmem_to_hbm [thread:$0]  %s5249, 128, %s5246, %s5234
        $region64: #{fr_embed.1} parent=35 // pred_fallthru
          _
      $region36: #{fr_embed.1} parent=5 // pred_fallthru
        _
      %p5252 = scmp.le.s32.totalorder 2, %s22
      // Predicated region
      $region65: #{fr_embed.1} parent=5 // pred_check
        %p5253 = pneg %p5252
      $region66: #{fr_embed.1} parent=5 // pred_check_branch
        %5255 = sbr.rel (%p5253) target = $region68
      $region67: #{fr_embed.1} parent=5 // pred_region
        %s5256 = ssub.s32 %s22, 2
        // Predicated region
        $region69: #{fr_embed.1} parent=67 // pred_check
          %p5257 = pneg %p169
        $region70: #{fr_embed.1} parent=67 // pred_check_branch
          %5259 = sbr.rel (%p5257) target = $region72
        $region71: #{fr_embed.1} parent=67 // pred_region
          %s5260 = sand.u32 %s154, 1
          %s5261 = scalar_lea.sflag [#allocation4], %s5260
          %s5262 = sand.u32 %s154, 1
          %s5263 = smul.addr %s5262, 8
          %s5264 = scalar_lea.vmem [#allocation10], %s5263
          %5265 = dma.done %s5261, 128
        $region72: #{fr_embed.1} parent=67 // pred_fallthru
          _
      $region68: #{fr_embed.1} parent=5 // pred_fallthru
        _
    $region6: #{fr_embed.1} parent=1 // loop_footer
      %s26 = sadd.s32 1, %s22
    $region7: #{fr_embed.1} parent=1 // loop_footer_branch
      %21 = sbr.rel target = $region3
    $region8: #{fr_embed.1} parent=1 // loop_exit
      _
    %5266 = vsyncpa [#allocation3], 1
    %s5267 = scalar_lea.sflag [#allocation3], 1
    %5268 = vsyncpa %s5267, 1
    %5269 = vsyncpa [#allocation6], 1
    %s5270 = scalar_lea.sflag [#allocation6], 1
    %5271 = vsyncpa %s5270, 1
    %5272 = vsyncpa [#allocation9], 1
    %s5273 = scalar_lea.sflag [#allocation9], 1
    %5274 = vsyncpa %s5273, 1
    %5275 = vsyncpa [#allocation4], 1
    %s5276 = scalar_lea.sflag [#allocation4], 1
    %5277 = vsyncpa %s5276, 1

</llo_original>
